<compile_context>
chip_gen: v7x
topology: tpu7x:2x2x1
jax: 0.10.0
libtpu: 0.0.40
codegen_flags: <defaults>
</compile_context>

<pallas_src>
import functools
from collections import namedtuple

import jax
import jax.numpy as jnp
from jax.experimental import pallas as pl
from jax.experimental.pallas import tpu as pltpu


# ----------------------------------------------------------------------------
# Helpers
# ----------------------------------------------------------------------------
def _round_up(x, m):
    return (x + m - 1) // m * m


def _vreg_padded_bytes(shape, dtype):
    """VMEM footprint of one buffer of `shape` (lane dim padded to 128, sublane to 8)."""
    s = list(shape)
    s[-1] = _round_up(s[-1], 128)
    if len(s) >= 2:
        s[-2] = _round_up(s[-2], 8)
    n = 1
    for d in s:
        n *= d
    return n * jnp.dtype(dtype).itemsize


def _pick_tile_h(H, need_even, target):
    """Largest divisor of H that is <= min(target, H//2); even when pooling.

    Capping at H//2 guarantees >=2 row tiles so the "parallel" spatial axis can be
    split across TensorCores (v7x) even at batch 1.
    """
    cap = min(int(target), max(H // 2, 1))
    divs = [t for t in range(1, H + 1)
            if H % t == 0 and (not need_even or t % 2 == 0)]
    assert divs, f"no valid row tile for H={H} (need_even={need_even})"
    under = [t for t in divs if t <= cap]
    return max(under) if under else min(divs)


def _compiler_params(vmem_need_bytes):
    # Generation-friendly: request what we need (+50% and 8 MiB headroom), never a
    # blanket 64 MiB (= all of v7x's physical VMEM per TensorCore).
    limit = int(min(max(1.5 * vmem_need_bytes + (8 << 20), 24 << 20), 100 << 20))
    return pltpu.CompilerParams(
        dimension_semantics=("parallel", "parallel"),
        vmem_limit_bytes=limit)


# ----------------------------------------------------------------------------
# Shared conv epilogue: bias + (ReLU) + (fused 2x2 max-pool) + store
# ----------------------------------------------------------------------------
def _epilogue(acc, bias, o_ref, *, tile_h, W, Cout, relu, pool):
    # acc: (tile_h*W, Cout) f32, bias: (1, Cout) f32
    acc = acc + bias
    if relu:
        acc = jnp.maximum(acc, 0.0)
    if pool:
        # Full 2x2 max-pool fused in VMEM (minor-dim-preserving reshapes only).
        a = acc.reshape(tile_h // 2, 2, W, Cout)
        a = jnp.maximum(a[:, 0], a[:, 1])                      # H-pair max
        a = a.reshape((tile_h // 2) * (W // 2), 2, Cout)
        a = jnp.max(a, axis=1)                                 # W-pair max
        o_ref[0] = a.reshape(tile_h // 2, W // 2, Cout).astype(o_ref.dtype)
    else:
        # TODO(synk): a lane-dense (th, W*Cout) store would give unmasked vst for the
        # Cout=64 layers; kept NHWC here to avoid a minor-dim-changing value reshape.
        o_ref[0] = acc.reshape(tile_h, W, Cout).astype(o_ref.dtype)


# ----------------------------------------------------------------------------
# 3x3 "same" conv kernel: im2col patch assembled once in VMEM, single MXU dot
# ----------------------------------------------------------------------------
def _conv3x3_kernel(x_ref, w_ref, b_ref, o_ref, patch_ref, *,
                    tile_h, W, Cin, Cout, relu, pool):
    # x_ref:     (1, H+2, W+2, Cin)  zero-padded full image (bf16), constant over i
    # w_ref:     (9*Cin, Cout)       K-stacked HWIO weights (bf16)
    # b_ref:     (1, Cout)           f32 bias
    # o_ref:     (1, th_out, w_out, Cout)
    # patch_ref: (tile_h*W, 9*Cin)   bf16 im2col scratch
    i = pl.program_id(1)
    r0 = pl.multiple_of(i * tile_h, tile_h)
    M = tile_h * W

    # Assemble the K-stacked patch once: taps go on the contraction dim so a single
    # matmul replaces nine accumulator read-modify-write passes.
    for dy in range(3):
        for dx in range(3):
            k = dy * 3 + dx
            piece = x_ref[0, pl.ds(r0 + dy, tile_h), pl.ds(dx, W), :]
            patch_ref[:, pl.ds(k * Cin, Cin)] = piece.reshape(M, Cin)

    acc = jnp.dot(patch_ref[...], w_ref[...], preferred_element_type=jnp.float32)
    _epilogue(acc, b_ref[...], o_ref, tile_h=tile_h, W=W, Cout=Cout,
              relu=relu, pool=pool)


# 1-dot kernel for inputs that were already im2col'd in the wrapper (tiny Cin stem).
def _matmul_conv_kernel(x_ref, w_ref, b_ref, o_ref, *,
                        tile_h, W, K, Cout, relu, pool):
    # x_ref: (1, tile_h, W, K) -- no halo needed, pipelined per row tile.
    patch = x_ref[0].reshape(tile_h * W, K)
    acc = jnp.dot(patch, w_ref[...], preferred_element_type=jnp.float32)
    _epilogue(acc, b_ref[...], o_ref, tile_h=tile_h, W=W, Cout=Cout,
              relu=relu, pool=pool)


# ----------------------------------------------------------------------------
# Wrappers
# ----------------------------------------------------------------------------
def conv3x3(x_nhwc, w, b, *, relu, pool=False, out_dtype=jnp.bfloat16, tile_h=None):
    """3x3 conv, stride 1, pad 1 (+ fused ReLU, + optional fused 2x2 max-pool)."""
    N, H, W, Cin = x_nhwc.shape
    Cout = w.shape[-1]
    if tile_h is None:
        # VMEM-aware default: keep the im2col patch around ~8 MiB.
        tile_h = max(8, min(64, (8 << 20) // max(1, W * 9 * Cin * 2)))
    tile_h = _pick_tile_h(H, pool, tile_h)
    if pool:
        assert tile_h % 2 == 0 and W % 2 == 0, (tile_h, W)
    nt = H // tile_h
    h_out, w_out = (H // 2, W // 2) if pool else (H, W)
    th_out = tile_h // 2 if pool else tile_h

    # TODO(synk): wrapper-side zero padding still costs one extra HBM round trip of
    # the activation; a padded-output / manual halo-DMA input path would remove it.
    xp = jnp.pad(x_nhwc, ((0, 0), (1, 1), (1, 1), (0, 0)))
    wk = w.reshape(9 * Cin, Cout).astype(jnp.bfloat16)        # taps stacked on K
    b2 = b.astype(jnp.float32).reshape(1, Cout)

    kernel = functools.partial(_conv3x3_kernel, tile_h=tile_h, W=W, Cin=Cin,
                               Cout=Cout, relu=relu, pool=pool)

    img_blk = (1, H + 2, W + 2, Cin)
    out_blk = (1, th_out, w_out, Cout)
    patch_shape = (tile_h * W, 9 * Cin)
    vmem_need = (2 * _vreg_padded_bytes(img_blk, jnp.bfloat16)
                 + 2 * _vreg_padded_bytes(wk.shape, jnp.bfloat16)
                 + 2 * _vreg_padded_bytes(b2.shape, jnp.float32)
                 + 2 * _vreg_padded_bytes(out_blk, out_dtype)
                 + _vreg_padded_bytes(patch_shape, jnp.bfloat16)
                 + 2 * _vreg_padded_bytes((tile_h * W, Cout), jnp.float32))

    flops = 2 * N * H * W * 9 * Cin * Cout
    bytes_accessed = (xp.size * xp.dtype.itemsize
                      + wk.size * wk.dtype.itemsize + b2.size * 4
                      + N * h_out * w_out * Cout * jnp.dtype(out_dtype).itemsize)

    return pl.pallas_call(
        kernel,
        out_shape=jax.ShapeDtypeStruct((N, h_out, w_out, Cout), out_dtype),
        grid_spec=pltpu.PrefetchScalarGridSpec(
            num_scalar_prefetch=0,
            grid=(N, nt),
            in_specs=[
                # Whole padded image as a per-image constant block; row tiles read
                # their 2-row halo from it via dynamic pl.ds slices.
                # TODO(synk): pipeline_mode=pl.Buffered(1) here would halve its VMEM
                # footprint (its block index is constant over the row-tile axis).
                pl.BlockSpec(img_blk, lambda n, i: (n, 0, 0, 0)),
                pl.BlockSpec(wk.shape, lambda n, i: (0, 0)),
                pl.BlockSpec(b2.shape, lambda n, i: (0, 0)),
            ],
            out_specs=pl.BlockSpec(out_blk, lambda n, i: (n, i, 0, 0)),
            scratch_shapes=[pltpu.VMEM(patch_shape, jnp.bfloat16)],
        ),
        compiler_params=_compiler_params(vmem_need),
        cost_estimate=pl.CostEstimate(flops=flops, transcendentals=0,
                                      bytes_accessed=int(bytes_accessed)),
    )(xp, wk, b2)


def conv3x3_im2col(x_nhwc, w, b, *, relu, pool=False, out_dtype=jnp.bfloat16,
                   tile_h=None):
    """3x3 conv for tiny Cin (the RGB stem): im2col in the wrapper (K=9*Cin=27 is
    small and cheap in HBM), then a row-tiled matmul kernel.  No halo => per-tile
    pipelined input blocks; avoids a whole lane-padded image block in VMEM (v7x)."""
    N, H, W, Cin = x_nhwc.shape
    Cout = w.shape[-1]
    K = 9 * Cin
    if tile_h is None:
        tile_h = max(8, min(64, (8 << 20) // max(1, W * K * 2)))
    tile_h = _pick_tile_h(H, pool, tile_h)
    if pool:
        assert tile_h % 2 == 0 and W % 2 == 0, (tile_h, W)
    nt = H // tile_h
    h_out, w_out = (H // 2, W // 2) if pool else (H, W)
    th_out = tile_h // 2 if pool else tile_h

    xp = jnp.pad(x_nhwc, ((0, 0), (1, 1), (1, 1), (0, 0)))
    cols = jnp.concatenate(
        [xp[:, dy:dy + H, dx:dx + W, :] for dy in range(3) for dx in range(3)],
        axis=-1)                                              # (N, H, W, 9*Cin)
    wk = w.reshape(K, Cout).astype(jnp.bfloat16)
    b2 = b.astype(jnp.float32).reshape(1, Cout)

    kernel = functools.partial(_matmul_conv_kernel, tile_h=tile_h, W=W, K=K,
                               Cout=Cout, relu=relu, pool=pool)

    in_blk = (1, tile_h, W, K)
    out_blk = (1, th_out, w_out, Cout)
    vmem_need = (2 * _vreg_padded_bytes(in_blk, jnp.bfloat16)
                 + 2 * _vreg_padded_bytes(wk.shape, jnp.bfloat16)
                 + 2 * _vreg_padded_bytes(b2.shape, jnp.float32)
                 + 2 * _vreg_padded_bytes(out_blk, out_dtype)
                 + 2 * _vreg_padded_bytes((tile_h * W, Cout), jnp.float32))

    flops = 2 * N * H * W * K * Cout
    bytes_accessed = (cols.size * cols.dtype.itemsize
                      + wk.size * wk.dtype.itemsize + b2.size * 4
                      + N * h_out * w_out * Cout * jnp.dtype(out_dtype).itemsize)

    return pl.pallas_call(
        kernel,
        out_shape=jax.ShapeDtypeStruct((N, h_out, w_out, Cout), out_dtype),
        grid_spec=pltpu.PrefetchScalarGridSpec(
            num_scalar_prefetch=0,
            grid=(N, nt),
            in_specs=[
                pl.BlockSpec(in_blk, lambda n, i: (n, i, 0, 0)),
                pl.BlockSpec(wk.shape, lambda n, i: (0, 0)),
                pl.BlockSpec(b2.shape, lambda n, i: (0, 0)),
            ],
            out_specs=pl.BlockSpec(out_blk, lambda n, i: (n, i, 0, 0)),
        ),
        compiler_params=_compiler_params(vmem_need),
        cost_estimate=pl.CostEstimate(flops=flops, transcendentals=0,
                                      bytes_accessed=int(bytes_accessed)),
    )(cols, wk, b2)


# ----------------------------------------------------------------------------
# Vgg16 module: params + forward
# ----------------------------------------------------------------------------
VggOutputs = namedtuple('VggOutputs', ['relu2_2'])

_CONV_SHAPES = [
    (3, 3, 3, 64),     # features[0]
    (3, 3, 64, 64),    # features[2]
    (3, 3, 64, 128),   # features[5]
    (3, 3, 128, 128),  # features[7]
]


def init_vgg16_params(key):
    # TODO(synk): pretrained torchvision weights are replaced by deterministic
    # random init (self-contained script; no checkpoint loading). Weights in bf16.
    params = []
    for shp in _CONV_SHAPES:
        key, kw, kb = jax.random.split(key, 3)
        fan_in = shp[0] * shp[1] * shp[2]
        w = (jax.random.normal(kw, shp, jnp.float32)
             / jnp.sqrt(float(fan_in))).astype(jnp.bfloat16)
        b = 0.01 * jax.random.normal(kb, (shp[-1],), jnp.float32)
        params.append((w, b))
    return params


def vgg16_forward(params, x_nchw, tile_h=None):
    x = jnp.transpose(x_nchw, (0, 2, 3, 1)).astype(jnp.bfloat16)     # NCHW -> NHWC
    (w1, b1), (w2, b2), (w3, b3), (w4, b4) = params

    # slice1: Conv-ReLU-Conv-ReLU; the MaxPool2d(2,2) at features[4] is fully fused
    # into conv1_2's epilogue (H- and W-pair max in VMEM, no extra HBM round trip).
    h = conv3x3_im2col(x, w1, b1, relu=True, tile_h=tile_h)          # (N,H,W,64)
    h = conv3x3(h, w2, b2, relu=True, pool=True, tile_h=tile_h)      # (N,H/2,W/2,64)
    # slice2: [MaxPool already applied above] Conv-ReLU-Conv (no trailing ReLU:
    # torchvision features[4:8] stops before the ReLU at index 8).
    h = conv3x3(h, w3, b3, relu=True, tile_h=tile_h)                 # (N,H/2,W/2,128)
    h = conv3x3(h, w4, b4, relu=False, out_dtype=jnp.float32, tile_h=tile_h)

    return VggOutputs(relu2_2=jnp.transpose(h, (0, 3, 1, 2)))        # back to NCHW


# ----------------------------------------------------------------------------
# Pure-JAX reference (same bf16-in / f32-accumulate dtype policy)
# ----------------------------------------------------------------------------
def _conv_ref(x, w, b, relu):
    y = jax.lax.conv_general_dilated(
        x, w, window_strides=(1, 1), padding='SAME',
        dimension_numbers=('NHWC', 'HWIO', 'NHWC'),
        preferred_element_type=jnp.float32)
    y = y + b
    return jnp.maximum(y, 0.0) if relu else y


def vgg16_forward_ref(params, x_nchw):
    x = jnp.transpose(x_nchw, (0, 2, 3, 1)).astype(jnp.bfloat16)
    (w1, b1), (w2, b2), (w3, b3), (w4, b4) = params
    h = _conv_ref(x, w1, b1, True).astype(jnp.bfloat16)
    h = _conv_ref(h, w2, b2, True)                                   # f32
    h = jax.lax.reduce_window(h, -jnp.inf, jax.lax.max,
                              (1, 2, 2, 1), (1, 2, 2, 1), 'VALID')
    h = h.astype(jnp.bfloat16)
    h = _conv_ref(h, w3, b3, True).astype(jnp.bfloat16)
    h = _conv_ref(h, w4, b4, False)                                  # f32
    return jnp.transpose(h, (0, 3, 1, 2))


if __name__ == "__main__":
    key = jax.random.PRNGKey(0)
    key, kx = jax.random.split(key)
    X = jax.random.normal(kx, (2, 3, 16, 16), jnp.float32)   # NCHW like PyTorch

    params = init_vgg16_params(key)

    fwd = jax.jit(vgg16_forward)
    out = fwd(params, X)
    relu2_2 = jax.block_until_ready(out.relu2_2)
    assert relu2_2.shape == (2, 128, 8, 8), relu2_2.shape

    ref = jax.block_until_ready(vgg16_forward_ref(params, X))
    max_err = float(jnp.max(jnp.abs(relu2_2 - ref)))
    assert jnp.allclose(relu2_2, ref, rtol=3e-2, atol=3e-2), max_err

    print("KERNEL_OK")
</pallas_src>

<mosaic_0001>
module attributes {stable_mosaic.version = 11 : i64} {
  func.func @_matmul_conv_kernel(%arg0: i32, %arg1: i32, %arg2: memref<1x8x16x27xbf16, #tpu.memory_space<vmem>>, %arg3: memref<27x64xbf16, #tpu.memory_space<vmem>>, %arg4: memref<1x64xf32, #tpu.memory_space<vmem>>, %arg5: memref<1x8x16x64xbf16, #tpu.memory_space<vmem>>) attributes {dimension_semantics = [#tpu.dimension_semantics<parallel>, #tpu.dimension_semantics<parallel>], iteration_bounds = array<i64: 2, 2>, scalar_prefetch = 0 : i64, scratch_operands = 0 : i64, tpu.core_type = #tpu.core_type<tc>, window_params = [{transform_indices = @transform_0, window_bounds = array<i64: 1, 8, 16, 27>}, {pipeline_mode = #tpu.pipeline_mode<synchronous>, transform_indices = @transform_1, window_bounds = array<i64: 27, 64>}, {pipeline_mode = #tpu.pipeline_mode<synchronous>, transform_indices = @transform_2, window_bounds = array<i64: 1, 64>}, {transform_indices = @transform_3, window_bounds = array<i64: 1, 8, 16, 64>}]} {
    %c0 = arith.constant 0 : index
    %c0_0 = arith.constant 0 : index
    %c0_1 = arith.constant 0 : index
    %c0_2 = arith.constant 0 : index
    %0 = vector.load %arg2[%c0, %c0_0, %c0_1, %c0_2] : memref<1x8x16x27xbf16, #tpu.memory_space<vmem>>, vector<1x8x16x27xbf16>
    %1 = vector.shape_cast %0 : vector<1x8x16x27xbf16> to vector<8x16x27xbf16>
    %2 = vector.shape_cast %1 : vector<8x16x27xbf16> to vector<128x27xbf16>
    %c0_3 = arith.constant 0 : index
    %c0_4 = arith.constant 0 : index
    %3 = vector.load %arg3[%c0_3, %c0_4] : memref<27x64xbf16, #tpu.memory_space<vmem>>, vector<27x64xbf16>
    %cst = arith.constant dense<0.000000e+00> : vector<128x64xf32>
    %4 = tpu.matmul %2, %3, %cst {dimension_numbers = #tpu.dot_dimension_numbers<[1], [0], [0], [1], [0, 0, 1, 1], [], []>} : vector<128x27xbf16>, vector<27x64xbf16>, vector<128x64xf32> -> vector<128x64xf32>
    %c0_5 = arith.constant 0 : index
    %c0_6 = arith.constant 0 : index
    %5 = vector.load %arg4[%c0_5, %c0_6] : memref<1x64xf32, #tpu.memory_space<vmem>>, vector<1x64xf32>
    %6 = vector.broadcast %5 : vector<1x64xf32> to vector<128x64xf32>
    %7 = arith.addf %4, %6 : vector<128x64xf32>
    %cst_7 = arith.constant 0.000000e+00 : f32
    %8 = vector.broadcast %cst_7 : f32 to vector<128x64xf32>
    %9 = arith.maximumf %7, %8 : vector<128x64xf32>
    %10 = vector.shape_cast %9 : vector<128x64xf32> to vector<8x16x64xf32>
    %11 = arith.truncf %10 : vector<8x16x64xf32> to vector<8x16x64xbf16>
    %c0_8 = arith.constant 0 : index
    %c0_9 = arith.constant 0 : index
    %c0_10 = arith.constant 0 : index
    %c0_11 = arith.constant 0 : index
    %12 = vector.load %arg5[%c0_8, %c0_9, %c0_10, %c0_11] : memref<1x8x16x64xbf16, #tpu.memory_space<vmem>>, vector<1x8x16x64xbf16>
    %13 = vector.shape_cast %12 : vector<1x8x16x64xbf16> to vector<8x16x64xbf16>
    %14 = vector.shape_cast %11 : vector<8x16x64xbf16> to vector<1x8x16x64xbf16>
    tpu.vector_store %arg5[%c0_8, %c0_9, %c0_10, %c0_11], %14 {strides = array<i32>} : memref<1x8x16x64xbf16, #tpu.memory_space<vmem>>, vector<1x8x16x64xbf16>,
    return
  }
  func.func @transform_0(%arg0: i32, %arg1: i32) -> (i32, i32, i32, i32) {
    %c0_i32 = arith.constant 0 : i32
    %c0_i32_0 = arith.constant 0 : i32
    %c0_i32_1 = arith.constant 0 : i32
    return %arg0, %arg1, %c0_i32, %c0_i32_0 : i32, i32, i32, i32
  }
  func.func @transform_1(%arg0: i32, %arg1: i32) -> (i32, i32) {
    %c0_i32 = arith.constant 0 : i32
    %c0_i32_0 = arith.constant 0 : i32
    %c0_i32_1 = arith.constant 0 : i32
    return %c0_i32, %c0_i32_0 : i32, i32
  }
  func.func @transform_2(%arg0: i32, %arg1: i32) -> (i32, i32) {
    %c0_i32 = arith.constant 0 : i32
    %c0_i32_0 = arith.constant 0 : i32
    %c0_i32_1 = arith.constant 0 : i32
    return %c0_i32, %c0_i32_0 : i32, i32
  }
  func.func @transform_3(%arg0: i32, %arg1: i32) -> (i32, i32, i32, i32) {
    %c0_i32 = arith.constant 0 : i32
    %c0_i32_0 = arith.constant 0 : i32
    %c0_i32_1 = arith.constant 0 : i32
    return %arg0, %arg1, %c0_i32, %c0_i32_0 : i32, i32, i32, i32
  }
}

module attributes {stable_mosaic.version = 11 : i64} {
  func.func @_conv3x3_kernel(%arg0: i32, %arg1: i32, %arg2: memref<1x18x18x64xbf16, #tpu.memory_space<vmem>>, %arg3: memref<576x64xbf16, #tpu.memory_space<vmem>>, %arg4: memref<1x64xf32, #tpu.memory_space<vmem>>, %arg5: memref<1x4x8x64xbf16, #tpu.memory_space<vmem>>, %arg6: memref<128x576xbf16, #tpu.memory_space<vmem>>) attributes {dimension_semantics = [#tpu.dimension_semantics<parallel>, #tpu.dimension_semantics<parallel>], iteration_bounds = array<i64: 2, 2>, scalar_prefetch = 0 : i64, scratch_operands = 1 : i64, tpu.core_type = #tpu.core_type<tc>, window_params = [{transform_indices = @transform_0, window_bounds = array<i64: 1, 18, 18, 64>}, {pipeline_mode = #tpu.pipeline_mode<synchronous>, transform_indices = @transform_1, window_bounds = array<i64: 576, 64>}, {pipeline_mode = #tpu.pipeline_mode<synchronous>, transform_indices = @transform_2, window_bounds = array<i64: 1, 64>}, {transform_indices = @transform_3, window_bounds = array<i64: 1, 4, 8, 64>}]} {
    %c8_i32 = arith.constant 8 : i32
    %0 = arith.muli %arg1, %c8_i32 : i32
    %1 = tpu.assume_multiple %0, 8 : i32
    %c0_i32 = arith.constant 0 : i32
    %2 = arith.addi %1, %c0_i32 : i32
    %c0 = arith.constant 0 : index
    %3 = arith.index_cast %2 : i32 to index
    %c0_0 = arith.constant 0 : index
    %c0_1 = arith.constant 0 : index
    %4 = vector.load %arg2[%c0, %3, %c0_0, %c0_1] : memref<1x18x18x64xbf16, #tpu.memory_space<vmem>>, vector<1x8x16x64xbf16>
    %5 = vector.shape_cast %4 : vector<1x8x16x64xbf16> to vector<8x16x64xbf16>
    %6 = vector.shape_cast %5 : vector<8x16x64xbf16> to vector<128x64xbf16>
    %c0_2 = arith.constant 0 : index
    %c0_3 = arith.constant 0 : index
    %7 = vector.load %arg6[%c0_2, %c0_3] : memref<128x576xbf16, #tpu.memory_space<vmem>>, vector<128x64xbf16>
    tpu.vector_store %arg6[%c0_2, %c0_3], %6 {strides = array<i32>} : memref<128x576xbf16, #tpu.memory_space<vmem>>, vector<128x64xbf16>,
    %c0_i32_4 = arith.constant 0 : i32
    %8 = arith.addi %1, %c0_i32_4 : i32
    %c0_5 = arith.constant 0 : index
    %9 = arith.index_cast %8 : i32 to index
    %c1 = arith.constant 1 : index
    %c0_6 = arith.constant 0 : index
    %10 = vector.load %arg2[%c0_5, %9, %c1, %c0_6] : memref<1x18x18x64xbf16, #tpu.memory_space<vmem>>, vector<1x8x16x64xbf16>
    %11 = vector.shape_cast %10 : vector<1x8x16x64xbf16> to vector<8x16x64xbf16>
    %12 = vector.shape_cast %11 : vector<8x16x64xbf16> to vector<128x64xbf16>
    %c0_7 = arith.constant 0 : index
    %c64 = arith.constant 64 : index
    %13 = vector.load %arg6[%c0_7, %c64] : memref<128x576xbf16, #tpu.memory_space<vmem>>, vector<128x64xbf16>
    tpu.vector_store %arg6[%c0_7, %c64], %12 {strides = array<i32>} : memref<128x576xbf16, #tpu.memory_space<vmem>>, vector<128x64xbf16>,
    %c0_i32_8 = arith.constant 0 : i32
    %14 = arith.addi %1, %c0_i32_8 : i32
    %c0_9 = arith.constant 0 : index
    %15 = arith.index_cast %14 : i32 to index
    %c2 = arith.constant 2 : index
    %c0_10 = arith.constant 0 : index
    %16 = vector.load %arg2[%c0_9, %15, %c2, %c0_10] : memref<1x18x18x64xbf16, #tpu.memory_space<vmem>>, vector<1x8x16x64xbf16>
    %17 = vector.shape_cast %16 : vector<1x8x16x64xbf16> to vector<8x16x64xbf16>
    %18 = vector.shape_cast %17 : vector<8x16x64xbf16> to vector<128x64xbf16>
    %c0_11 = arith.constant 0 : index
    %c128 = arith.constant 128 : index
    %19 = vector.load %arg6[%c0_11, %c128] : memref<128x576xbf16, #tpu.memory_space<vmem>>, vector<128x64xbf16>
    tpu.vector_store %arg6[%c0_11, %c128], %18 {strides = array<i32>} : memref<128x576xbf16, #tpu.memory_space<vmem>>, vector<128x64xbf16>,
    %c1_i32 = arith.constant 1 : i32
    %20 = arith.addi %1, %c1_i32 : i32
    %c0_12 = arith.constant 0 : index
    %21 = arith.index_cast %20 : i32 to index
    %c0_13 = arith.constant 0 : index
    %c0_14 = arith.constant 0 : index
    %22 = vector.load %arg2[%c0_12, %21, %c0_13, %c0_14] : memref<1x18x18x64xbf16, #tpu.memory_space<vmem>>, vector<1x8x16x64xbf16>
    %23 = vector.shape_cast %22 : vector<1x8x16x64xbf16> to vector<8x16x64xbf16>
    %24 = vector.shape_cast %23 : vector<8x16x64xbf16> to vector<128x64xbf16>
    %c0_15 = arith.constant 0 : index
    %c192 = arith.constant 192 : index
    %25 = vector.load %arg6[%c0_15, %c192] : memref<128x576xbf16, #tpu.memory_space<vmem>>, vector<128x64xbf16>
    tpu.vector_store %arg6[%c0_15, %c192], %24 {strides = array<i32>} : memref<128x576xbf16, #tpu.memory_space<vmem>>, vector<128x64xbf16>,
    %c1_i32_16 = arith.constant 1 : i32
    %26 = arith.addi %1, %c1_i32_16 : i32
    %c0_17 = arith.constant 0 : index
    %27 = arith.index_cast %26 : i32 to index
    %c1_18 = arith.constant 1 : index
    %c0_19 = arith.constant 0 : index
    %28 = vector.load %arg2[%c0_17, %27, %c1_18, %c0_19] : memref<1x18x18x64xbf16, #tpu.memory_space<vmem>>, vector<1x8x16x64xbf16>
    %29 = vector.shape_cast %28 : vector<1x8x16x64xbf16> to vector<8x16x64xbf16>
    %30 = vector.shape_cast %29 : vector<8x16x64xbf16> to vector<128x64xbf16>
    %c0_20 = arith.constant 0 : index
    %c256 = arith.constant 256 : index
    %31 = vector.load %arg6[%c0_20, %c256] : memref<128x576xbf16, #tpu.memory_space<vmem>>, vector<128x64xbf16>
    tpu.vector_store %arg6[%c0_20, %c256], %30 {strides = array<i32>} : memref<128x576xbf16, #tpu.memory_space<vmem>>, vector<128x64xbf16>,
    %c1_i32_21 = arith.constant 1 : i32
    %32 = arith.addi %1, %c1_i32_21 : i32
    %c0_22 = arith.constant 0 : index
    %33 = arith.index_cast %32 : i32 to index
    %c2_23 = arith.constant 2 : index
    %c0_24 = arith.constant 0 : index
    %34 = vector.load %arg2[%c0_22, %33, %c2_23, %c0_24] : memref<1x18x18x64xbf16, #tpu.memory_space<vmem>>, vector<1x8x16x64xbf16>
    %35 = vector.shape_cast %34 : vector<1x8x16x64xbf16> to vector<8x16x64xbf16>
    %36 = vector.shape_cast %35 : vector<8x16x64xbf16> to vector<128x64xbf16>
    %c0_25 = arith.constant 0 : index
    %c320 = arith.constant 320 : index
    %37 = vector.load %arg6[%c0_25, %c320] : memref<128x576xbf16, #tpu.memory_space<vmem>>, vector<128x64xbf16>
    tpu.vector_store %arg6[%c0_25, %c320], %36 {strides = array<i32>} : memref<128x576xbf16, #tpu.memory_space<vmem>>, vector<128x64xbf16>,
    %c2_i32 = arith.constant 2 : i32
    %38 = arith.addi %1, %c2_i32 : i32
    %c0_26 = arith.constant 0 : index
    %39 = arith.index_cast %38 : i32 to index
    %c0_27 = arith.constant 0 : index
    %c0_28 = arith.constant 0 : index
    %40 = vector.load %arg2[%c0_26, %39, %c0_27, %c0_28] : memref<1x18x18x64xbf16, #tpu.memory_space<vmem>>, vector<1x8x16x64xbf16>
    %41 = vector.shape_cast %40 : vector<1x8x16x64xbf16> to vector<8x16x64xbf16>
    %42 = vector.shape_cast %41 : vector<8x16x64xbf16> to vector<128x64xbf16>
    %c0_29 = arith.constant 0 : index
    %c384 = arith.constant 384 : index
    %43 = vector.load %arg6[%c0_29, %c384] : memref<128x576xbf16, #tpu.memory_space<vmem>>, vector<128x64xbf16>
    tpu.vector_store %arg6[%c0_29, %c384], %42 {strides = array<i32>} : memref<128x576xbf16, #tpu.memory_space<vmem>>, vector<128x64xbf16>,
    %c2_i32_30 = arith.constant 2 : i32
    %44 = arith.addi %1, %c2_i32_30 : i32
    %c0_31 = arith.constant 0 : index
    %45 = arith.index_cast %44 : i32 to index
    %c1_32 = arith.constant 1 : index
    %c0_33 = arith.constant 0 : index
    %46 = vector.load %arg2[%c0_31, %45, %c1_32, %c0_33] : memref<1x18x18x64xbf16, #tpu.memory_space<vmem>>, vector<1x8x16x64xbf16>
    %47 = vector.shape_cast %46 : vector<1x8x16x64xbf16> to vector<8x16x64xbf16>
    %48 = vector.shape_cast %47 : vector<8x16x64xbf16> to vector<128x64xbf16>
    %c0_34 = arith.constant 0 : index
    %c448 = arith.constant 448 : index
    %49 = vector.load %arg6[%c0_34, %c448] : memref<128x576xbf16, #tpu.memory_space<vmem>>, vector<128x64xbf16>
    tpu.vector_store %arg6[%c0_34, %c448], %48 {strides = array<i32>} : memref<128x576xbf16, #tpu.memory_space<vmem>>, vector<128x64xbf16>,
    %c2_i32_35 = arith.constant 2 : i32
    %50 = arith.addi %1, %c2_i32_35 : i32
    %c0_36 = arith.constant 0 : index
    %51 = arith.index_cast %50 : i32 to index
    %c2_37 = arith.constant 2 : index
    %c0_38 = arith.constant 0 : index
    %52 = vector.load %arg2[%c0_36, %51, %c2_37, %c0_38] : memref<1x18x18x64xbf16, #tpu.memory_space<vmem>>, vector<1x8x16x64xbf16>
    %53 = vector.shape_cast %52 : vector<1x8x16x64xbf16> to vector<8x16x64xbf16>
    %54 = vector.shape_cast %53 : vector<8x16x64xbf16> to vector<128x64xbf16>
    %c0_39 = arith.constant 0 : index
    %c512 = arith.constant 512 : index
    %55 = vector.load %arg6[%c0_39, %c512] : memref<128x576xbf16, #tpu.memory_space<vmem>>, vector<128x64xbf16>
    tpu.vector_store %arg6[%c0_39, %c512], %54 {strides = array<i32>} : memref<128x576xbf16, #tpu.memory_space<vmem>>, vector<128x64xbf16>,
    %c0_40 = arith.constant 0 : index
    %c0_41 = arith.constant 0 : index
    %56 = vector.load %arg6[%c0_40, %c0_41] : memref<128x576xbf16, #tpu.memory_space<vmem>>, vector<128x576xbf16>
    %c0_42 = arith.constant 0 : index
    %c0_43 = arith.constant 0 : index
    %57 = vector.load %arg3[%c0_42, %c0_43] : memref<576x64xbf16, #tpu.memory_space<vmem>>, vector<576x64xbf16>
    %cst = arith.constant dense<0.000000e+00> : vector<128x64xf32>
    %58 = tpu.matmul %56, %57, %cst {dimension_numbers = #tpu.dot_dimension_numbers<[1], [0], [0], [1], [0, 0, 1, 1], [], []>} : vector<128x576xbf16>, vector<576x64xbf16>, vector<128x64xf32> -> vector<128x64xf32>
    %c0_44 = arith.constant 0 : index
    %c0_45 = arith.constant 0 : index
    %59 = vector.load %arg4[%c0_44, %c0_45] : memref<1x64xf32, #tpu.memory_space<vmem>>, vector<1x64xf32>
    %60 = vector.broadcast %59 : vector<1x64xf32> to vector<128x64xf32>
    %61 = arith.addf %58, %60 : vector<128x64xf32>
    %cst_46 = arith.constant 0.000000e+00 : f32
    %62 = vector.broadcast %cst_46 : f32 to vector<128x64xf32>
    %63 = arith.maximumf %61, %62 : vector<128x64xf32>
    %64 = vector.shape_cast %63 : vector<128x64xf32> to vector<4x2x16x64xf32>
    %65 = vector.extract_strided_slice %64 {offsets = [0, 0, 0, 0], sizes = [4, 1, 16, 64], strides = [1, 1, 1, 1]} : vector<4x2x16x64xf32> to vector<4x1x16x64xf32>
    %66 = vector.shape_cast %65 : vector<4x1x16x64xf32> to vector<4x16x64xf32>
    %67 = vector.extract_strided_slice %64 {offsets = [0, 1, 0, 0], sizes = [4, 1, 16, 64], strides = [1, 1, 1, 1]} : vector<4x2x16x64xf32> to vector<4x1x16x64xf32>
    %68 = vector.shape_cast %67 : vector<4x1x16x64xf32> to vector<4x16x64xf32>
    %69 = arith.maximumf %66, %68 : vector<4x16x64xf32>
    %70 = vector.shape_cast %69 : vector<4x16x64xf32> to vector<32x2x64xf32>
    %cst_47 = arith.constant dense<0xFF800000> : vector<32x64xf32>
    %71 = vector.multi_reduction <maximumf>, %70, %cst_47 [1] : vector<32x2x64xf32> to vector<32x64xf32>
    %72 = vector.shape_cast %71 : vector<32x64xf32> to vector<4x8x64xf32>
    %73 = arith.truncf %72 : vector<4x8x64xf32> to vector<4x8x64xbf16>
    %c0_48 = arith.constant 0 : index
    %c0_49 = arith.constant 0 : index
    %c0_50 = arith.constant 0 : index
    %c0_51 = arith.constant 0 : index
    %74 = vector.load %arg5[%c0_48, %c0_49, %c0_50, %c0_51] : memref<1x4x8x64xbf16, #tpu.memory_space<vmem>>, vector<1x4x8x64xbf16>
    %75 = vector.shape_cast %74 : vector<1x4x8x64xbf16> to vector<4x8x64xbf16>
    %76 = vector.shape_cast %73 : vector<4x8x64xbf16> to vector<1x4x8x64xbf16>
    tpu.vector_store %arg5[%c0_48, %c0_49, %c0_50, %c0_51], %76 {strides = array<i32>} : memref<1x4x8x64xbf16, #tpu.memory_space<vmem>>, vector<1x4x8x64xbf16>,
    return
  }
  func.func @transform_0(%arg0: i32, %arg1: i32) -> (i32, i32, i32, i32) {
    %c0_i32 = arith.constant 0 : i32
    %c0_i32_0 = arith.constant 0 : i32
    %c0_i32_1 = arith.constant 0 : i32
    %c0_i32_2 = arith.constant 0 : i32
    return %arg0, %c0_i32, %c0_i32_0, %c0_i32_1 : i32, i32, i32, i32
  }
  func.func @transform_1(%arg0: i32, %arg1: i32) -> (i32, i32) {
    %c0_i32 = arith.constant 0 : i32
    %c0_i32_0 = arith.constant 0 : i32
    %c0_i32_1 = arith.constant 0 : i32
    return %c0_i32, %c0_i32_0 : i32, i32
  }
  func.func @transform_2(%arg0: i32, %arg1: i32) -> (i32, i32) {
    %c0_i32 = arith.constant 0 : i32
    %c0_i32_0 = arith.constant 0 : i32
    %c0_i32_1 = arith.constant 0 : i32
    return %c0_i32, %c0_i32_0 : i32, i32
  }
  func.func @transform_3(%arg0: i32, %arg1: i32) -> (i32, i32, i32, i32) {
    %c0_i32 = arith.constant 0 : i32
    %c0_i32_0 = arith.constant 0 : i32
    %c0_i32_1 = arith.constant 0 : i32
    return %arg0, %arg1, %c0_i32, %c0_i32_0 : i32, i32, i32, i32
  }
}

module attributes {stable_mosaic.version = 11 : i64} {
  func.func @_conv3x3_kernel(%arg0: i32, %arg1: i32, %arg2: memref<1x10x10x64xbf16, #tpu.memory_space<vmem>>, %arg3: memref<576x128xbf16, #tpu.memory_space<vmem>>, %arg4: memref<1x128xf32, #tpu.memory_space<vmem>>, %arg5: memref<1x4x8x128xbf16, #tpu.memory_space<vmem>>, %arg6: memref<32x576xbf16, #tpu.memory_space<vmem>>) attributes {dimension_semantics = [#tpu.dimension_semantics<parallel>, #tpu.dimension_semantics<parallel>], iteration_bounds = array<i64: 2, 2>, scalar_prefetch = 0 : i64, scratch_operands = 1 : i64, tpu.core_type = #tpu.core_type<tc>, window_params = [{transform_indices = @transform_0, window_bounds = array<i64: 1, 10, 10, 64>}, {pipeline_mode = #tpu.pipeline_mode<synchronous>, transform_indices = @transform_1, window_bounds = array<i64: 576, 128>}, {pipeline_mode = #tpu.pipeline_mode<synchronous>, transform_indices = @transform_2, window_bounds = array<i64: 1, 128>}, {transform_indices = @transform_3, window_bounds = array<i64: 1, 4, 8, 128>}]} {
    %c4_i32 = arith.constant 4 : i32
    %0 = arith.muli %arg1, %c4_i32 : i32
    %1 = tpu.assume_multiple %0, 4 : i32
    %c0_i32 = arith.constant 0 : i32
    %2 = arith.addi %1, %c0_i32 : i32
    %c0 = arith.constant 0 : index
    %3 = arith.index_cast %2 : i32 to index
    %c0_0 = arith.constant 0 : index
    %c0_1 = arith.constant 0 : index
    %4 = vector.load %arg2[%c0, %3, %c0_0, %c0_1] : memref<1x10x10x64xbf16, #tpu.memory_space<vmem>>, vector<1x4x8x64xbf16>
    %5 = vector.shape_cast %4 : vector<1x4x8x64xbf16> to vector<4x8x64xbf16>
    %6 = vector.shape_cast %5 : vector<4x8x64xbf16> to vector<32x64xbf16>
    %c0_2 = arith.constant 0 : index
    %c0_3 = arith.constant 0 : index
    %7 = vector.load %arg6[%c0_2, %c0_3] : memref<32x576xbf16, #tpu.memory_space<vmem>>, vector<32x64xbf16>
    tpu.vector_store %arg6[%c0_2, %c0_3], %6 {strides = array<i32>} : memref<32x576xbf16, #tpu.memory_space<vmem>>, vector<32x64xbf16>,
    %c0_i32_4 = arith.constant 0 : i32
    %8 = arith.addi %1, %c0_i32_4 : i32
    %c0_5 = arith.constant 0 : index
    %9 = arith.index_cast %8 : i32 to index
    %c1 = arith.constant 1 : index
    %c0_6 = arith.constant 0 : index
    %10 = vector.load %arg2[%c0_5, %9, %c1, %c0_6] : memref<1x10x10x64xbf16, #tpu.memory_space<vmem>>, vector<1x4x8x64xbf16>
    %11 = vector.shape_cast %10 : vector<1x4x8x64xbf16> to vector<4x8x64xbf16>
    %12 = vector.shape_cast %11 : vector<4x8x64xbf16> to vector<32x64xbf16>
    %c0_7 = arith.constant 0 : index
    %c64 = arith.constant 64 : index
    %13 = vector.load %arg6[%c0_7, %c64] : memref<32x576xbf16, #tpu.memory_space<vmem>>, vector<32x64xbf16>
    tpu.vector_store %arg6[%c0_7, %c64], %12 {strides = array<i32>} : memref<32x576xbf16, #tpu.memory_space<vmem>>, vector<32x64xbf16>,
    %c0_i32_8 = arith.constant 0 : i32
    %14 = arith.addi %1, %c0_i32_8 : i32
    %c0_9 = arith.constant 0 : index
    %15 = arith.index_cast %14 : i32 to index
    %c2 = arith.constant 2 : index
    %c0_10 = arith.constant 0 : index
    %16 = vector.load %arg2[%c0_9, %15, %c2, %c0_10] : memref<1x10x10x64xbf16, #tpu.memory_space<vmem>>, vector<1x4x8x64xbf16>
    %17 = vector.shape_cast %16 : vector<1x4x8x64xbf16> to vector<4x8x64xbf16>
    %18 = vector.shape_cast %17 : vector<4x8x64xbf16> to vector<32x64xbf16>
    %c0_11 = arith.constant 0 : index
    %c128 = arith.constant 128 : index
    %19 = vector.load %arg6[%c0_11, %c128] : memref<32x576xbf16, #tpu.memory_space<vmem>>, vector<32x64xbf16>
    tpu.vector_store %arg6[%c0_11, %c128], %18 {strides = array<i32>} : memref<32x576xbf16, #tpu.memory_space<vmem>>, vector<32x64xbf16>,
    %c1_i32 = arith.constant 1 : i32
    %20 = arith.addi %1, %c1_i32 : i32
    %c0_12 = arith.constant 0 : index
    %21 = arith.index_cast %20 : i32 to index
    %c0_13 = arith.constant 0 : index
    %c0_14 = arith.constant 0 : index
    %22 = vector.load %arg2[%c0_12, %21, %c0_13, %c0_14] : memref<1x10x10x64xbf16, #tpu.memory_space<vmem>>, vector<1x4x8x64xbf16>
    %23 = vector.shape_cast %22 : vector<1x4x8x64xbf16> to vector<4x8x64xbf16>
    %24 = vector.shape_cast %23 : vector<4x8x64xbf16> to vector<32x64xbf16>
    %c0_15 = arith.constant 0 : index
    %c192 = arith.constant 192 : index
    %25 = vector.load %arg6[%c0_15, %c192] : memref<32x576xbf16, #tpu.memory_space<vmem>>, vector<32x64xbf16>
    tpu.vector_store %arg6[%c0_15, %c192], %24 {strides = array<i32>} : memref<32x576xbf16, #tpu.memory_space<vmem>>, vector<32x64xbf16>,
    %c1_i32_16 = arith.constant 1 : i32
    %26 = arith.addi %1, %c1_i32_16 : i32
    %c0_17 = arith.constant 0 : index
    %27 = arith.index_cast %26 : i32 to index
    %c1_18 = arith.constant 1 : index
    %c0_19 = arith.constant 0 : index
    %28 = vector.load %arg2[%c0_17, %27, %c1_18, %c0_19] : memref<1x10x10x64xbf16, #tpu.memory_space<vmem>>, vector<1x4x8x64xbf16>
    %29 = vector.shape_cast %28 : vector<1x4x8x64xbf16> to vector<4x8x64xbf16>
    %30 = vector.shape_cast %29 : vector<4x8x64xbf16> to vector<32x64xbf16>
    %c0_20 = arith.constant 0 : index
    %c256 = arith.constant 256 : index
    %31 = vector.load %arg6[%c0_20, %c256] : memref<32x576xbf16, #tpu.memory_space<vmem>>, vector<32x64xbf16>
    tpu.vector_store %arg6[%c0_20, %c256], %30 {strides = array<i32>} : memref<32x576xbf16, #tpu.memory_space<vmem>>, vector<32x64xbf16>,
    %c1_i32_21 = arith.constant 1 : i32
    %32 = arith.addi %1, %c1_i32_21 : i32
    %c0_22 = arith.constant 0 : index
    %33 = arith.index_cast %32 : i32 to index
    %c2_23 = arith.constant 2 : index
    %c0_24 = arith.constant 0 : index
    %34 = vector.load %arg2[%c0_22, %33, %c2_23, %c0_24] : memref<1x10x10x64xbf16, #tpu.memory_space<vmem>>, vector<1x4x8x64xbf16>
    %35 = vector.shape_cast %34 : vector<1x4x8x64xbf16> to vector<4x8x64xbf16>
    %36 = vector.shape_cast %35 : vector<4x8x64xbf16> to vector<32x64xbf16>
    %c0_25 = arith.constant 0 : index
    %c320 = arith.constant 320 : index
    %37 = vector.load %arg6[%c0_25, %c320] : memref<32x576xbf16, #tpu.memory_space<vmem>>, vector<32x64xbf16>
    tpu.vector_store %arg6[%c0_25, %c320], %36 {strides = array<i32>} : memref<32x576xbf16, #tpu.memory_space<vmem>>, vector<32x64xbf16>,
    %c2_i32 = arith.constant 2 : i32
    %38 = arith.addi %1, %c2_i32 : i32
    %c0_26 = arith.constant 0 : index
    %39 = arith.index_cast %38 : i32 to index
    %c0_27 = arith.constant 0 : index
    %c0_28 = arith.constant 0 : index
    %40 = vector.load %arg2[%c0_26, %39, %c0_27, %c0_28] : memref<1x10x10x64xbf16, #tpu.memory_space<vmem>>, vector<1x4x8x64xbf16>
    %41 = vector.shape_cast %40 : vector<1x4x8x64xbf16> to vector<4x8x64xbf16>
    %42 = vector.shape_cast %41 : vector<4x8x64xbf16> to vector<32x64xbf16>
    %c0_29 = arith.constant 0 : index
    %c384 = arith.constant 384 : index
    %43 = vector.load %arg6[%c0_29, %c384] : memref<32x576xbf16, #tpu.memory_space<vmem>>, vector<32x64xbf16>
    tpu.vector_store %arg6[%c0_29, %c384], %42 {strides = array<i32>} : memref<32x576xbf16, #tpu.memory_space<vmem>>, vector<32x64xbf16>,
    %c2_i32_30 = arith.constant 2 : i32
    %44 = arith.addi %1, %c2_i32_30 : i32
    %c0_31 = arith.constant 0 : index
    %45 = arith.index_cast %44 : i32 to index
    %c1_32 = arith.constant 1 : index
    %c0_33 = arith.constant 0 : index
    %46 = vector.load %arg2[%c0_31, %45, %c1_32, %c0_33] : memref<1x10x10x64xbf16, #tpu.memory_space<vmem>>, vector<1x4x8x64xbf16>
    %47 = vector.shape_cast %46 : vector<1x4x8x64xbf16> to vector<4x8x64xbf16>
    %48 = vector.shape_cast %47 : vector<4x8x64xbf16> to vector<32x64xbf16>
    %c0_34 = arith.constant 0 : index
    %c448 = arith.constant 448 : index
    %49 = vector.load %arg6[%c0_34, %c448] : memref<32x576xbf16, #tpu.memory_space<vmem>>, vector<32x64xbf16>
    tpu.vector_store %arg6[%c0_34, %c448], %48 {strides = array<i32>} : memref<32x576xbf16, #tpu.memory_space<vmem>>, vector<32x64xbf16>,
    %c2_i32_35 = arith.constant 2 : i32
    %50 = arith.addi %1, %c2_i32_35 : i32
    %c0_36 = arith.constant 0 : index
    %51 = arith.index_cast %50 : i32 to index
    %c2_37 = arith.constant 2 : index
    %c0_38 = arith.constant 0 : index
    %52 = vector.load %arg2[%c0_36, %51, %c2_37, %c0_38] : memref<1x10x10x64xbf16, #tpu.memory_space<vmem>>, vector<1x4x8x64xbf16>
    %53 = vector.shape_cast %52 : vector<1x4x8x64xbf16> to vector<4x8x64xbf16>
    %54 = vector.shape_cast %53 : vector<4x8x64xbf16> to vector<32x64xbf16>
    %c0_39 = arith.constant 0 : index
    %c512 = arith.constant 512 : index
    %55 = vector.load %arg6[%c0_39, %c512] : memref<32x576xbf16, #tpu.memory_space<vmem>>, vector<32x64xbf16>
    tpu.vector_store %arg6[%c0_39, %c512], %54 {strides = array<i32>} : memref<32x576xbf16, #tpu.memory_space<vmem>>, vector<32x64xbf16>,
    %c0_40 = arith.constant 0 : index
    %c0_41 = arith.constant 0 : index
    %56 = vector.load %arg6[%c0_40, %c0_41] : memref<32x576xbf16, #tpu.memory_space<vmem>>, vector<32x576xbf16>
    %c0_42 = arith.constant 0 : index
    %c0_43 = arith.constant 0 : index
    %57 = vector.load %arg3[%c0_42, %c0_43] : memref<576x128xbf16, #tpu.memory_space<vmem>>, vector<576x128xbf16>
    %cst = arith.constant dense<0.000000e+00> : vector<32x128xf32>
    %58 = tpu.matmul %56, %57, %cst {dimension_numbers = #tpu.dot_dimension_numbers<[1], [0], [0], [1], [0, 0, 1, 1], [], []>} : vector<32x576xbf16>, vector<576x128xbf16>, vector<32x128xf32> -> vector<32x128xf32>
    %c0_44 = arith.constant 0 : index
    %c0_45 = arith.constant 0 : index
    %59 = vector.load %arg4[%c0_44, %c0_45] : memref<1x128xf32, #tpu.memory_space<vmem>>, vector<1x128xf32>
    %60 = vector.broadcast %59 : vector<1x128xf32> to vector<32x128xf32>
    %61 = arith.addf %58, %60 : vector<32x128xf32>
    %cst_46 = arith.constant 0.000000e+00 : f32
    %62 = vector.broadcast %cst_46 : f32 to vector<32x128xf32>
    %63 = arith.maximumf %61, %62 : vector<32x128xf32>
    %64 = vector.shape_cast %63 : vector<32x128xf32> to vector<4x8x128xf32>
    %65 = arith.truncf %64 : vector<4x8x128xf32> to vector<4x8x128xbf16>
    %c0_47 = arith.constant 0 : index
    %c0_48 = arith.constant 0 : index
    %c0_49 = arith.constant 0 : index
    %c0_50 = arith.constant 0 : index
    %66 = vector.load %arg5[%c0_47, %c0_48, %c0_49, %c0_50] : memref<1x4x8x128xbf16, #tpu.memory_space<vmem>>, vector<1x4x8x128xbf16>
    %67 = vector.shape_cast %66 : vector<1x4x8x128xbf16> to vector<4x8x128xbf16>
    %68 = vector.shape_cast %65 : vector<4x8x128xbf16> to vector<1x4x8x128xbf16>
    tpu.vector_store %arg5[%c0_47, %c0_48, %c0_49, %c0_50], %68 {strides = array<i32>} : memref<1x4x8x128xbf16, #tpu.memory_space<vmem>>, vector<1x4x8x128xbf16>,
    return
  }
  func.func @transform_0(%arg0: i32, %arg1: i32) -> (i32, i32, i32, i32) {
    %c0_i32 = arith.constant 0 : i32
    %c0_i32_0 = arith.constant 0 : i32
    %c0_i32_1 = arith.constant 0 : i32
    %c0_i32_2 = arith.constant 0 : i32
    return %arg0, %c0_i32, %c0_i32_0, %c0_i32_1 : i32, i32, i32, i32
  }
  func.func @transform_1(%arg0: i32, %arg1: i32) -> (i32, i32) {
    %c0_i32 = arith.constant 0 : i32
    %c0_i32_0 = arith.constant 0 : i32
    %c0_i32_1 = arith.constant 0 : i32
    return %c0_i32, %c0_i32_0 : i32, i32
  }
  func.func @transform_2(%arg0: i32, %arg1: i32) -> (i32, i32) {
    %c0_i32 = arith.constant 0 : i32
    %c0_i32_0 = arith.constant 0 : i32
    %c0_i32_1 = arith.constant 0 : i32
    return %c0_i32, %c0_i32_0 : i32, i32
  }
  func.func @transform_3(%arg0: i32, %arg1: i32) -> (i32, i32, i32, i32) {
    %c0_i32 = arith.constant 0 : i32
    %c0_i32_0 = arith.constant 0 : i32
    %c0_i32_1 = arith.constant 0 : i32
    return %arg0, %arg1, %c0_i32, %c0_i32_0 : i32, i32, i32, i32
  }
}

module attributes {stable_mosaic.version = 11 : i64} {
  func.func @_conv3x3_kernel(%arg0: i32, %arg1: i32, %arg2: memref<1x10x10x128xbf16, #tpu.memory_space<vmem>>, %arg3: memref<1152x128xbf16, #tpu.memory_space<vmem>>, %arg4: memref<1x128xf32, #tpu.memory_space<vmem>>, %arg5: memref<1x4x8x128xf32, #tpu.memory_space<vmem>>, %arg6: memref<32x1152xbf16, #tpu.memory_space<vmem>>) attributes {dimension_semantics = [#tpu.dimension_semantics<parallel>, #tpu.dimension_semantics<parallel>], iteration_bounds = array<i64: 2, 2>, scalar_prefetch = 0 : i64, scratch_operands = 1 : i64, tpu.core_type = #tpu.core_type<tc>, window_params = [{transform_indices = @transform_0, window_bounds = array<i64: 1, 10, 10, 128>}, {pipeline_mode = #tpu.pipeline_mode<synchronous>, transform_indices = @transform_1, window_bounds = array<i64: 1152, 128>}, {pipeline_mode = #tpu.pipeline_mode<synchronous>, transform_indices = @transform_2, window_bounds = array<i64: 1, 128>}, {transform_indices = @transform_3, window_bounds = array<i64: 1, 4, 8, 128>}]} {
    %c4_i32 = arith.constant 4 : i32
    %0 = arith.muli %arg1, %c4_i32 : i32
    %1 = tpu.assume_multiple %0, 4 : i32
    %c0_i32 = arith.constant 0 : i32
    %2 = arith.addi %1, %c0_i32 : i32
    %c0 = arith.constant 0 : index
    %3 = arith.index_cast %2 : i32 to index
    %c0_0 = arith.constant 0 : index
    %c0_1 = arith.constant 0 : index
    %4 = vector.load %arg2[%c0, %3, %c0_0, %c0_1] : memref<1x10x10x128xbf16, #tpu.memory_space<vmem>>, vector<1x4x8x128xbf16>
    %5 = vector.shape_cast %4 : vector<1x4x8x128xbf16> to vector<4x8x128xbf16>
    %6 = vector.shape_cast %5 : vector<4x8x128xbf16> to vector<32x128xbf16>
    %c0_2 = arith.constant 0 : index
    %c0_3 = arith.constant 0 : index
    %7 = vector.load %arg6[%c0_2, %c0_3] : memref<32x1152xbf16, #tpu.memory_space<vmem>>, vector<32x128xbf16>
    tpu.vector_store %arg6[%c0_2, %c0_3], %6 {strides = array<i32>} : memref<32x1152xbf16, #tpu.memory_space<vmem>>, vector<32x128xbf16>,
    %c0_i32_4 = arith.constant 0 : i32
    %8 = arith.addi %1, %c0_i32_4 : i32
    %c0_5 = arith.constant 0 : index
    %9 = arith.index_cast %8 : i32 to index
    %c1 = arith.constant 1 : index
    %c0_6 = arith.constant 0 : index
    %10 = vector.load %arg2[%c0_5, %9, %c1, %c0_6] : memref<1x10x10x128xbf16, #tpu.memory_space<vmem>>, vector<1x4x8x128xbf16>
    %11 = vector.shape_cast %10 : vector<1x4x8x128xbf16> to vector<4x8x128xbf16>
    %12 = vector.shape_cast %11 : vector<4x8x128xbf16> to vector<32x128xbf16>
    %c0_7 = arith.constant 0 : index
    %c128 = arith.constant 128 : index
    %13 = vector.load %arg6[%c0_7, %c128] : memref<32x1152xbf16, #tpu.memory_space<vmem>>, vector<32x128xbf16>
    tpu.vector_store %arg6[%c0_7, %c128], %12 {strides = array<i32>} : memref<32x1152xbf16, #tpu.memory_space<vmem>>, vector<32x128xbf16>,
    %c0_i32_8 = arith.constant 0 : i32
    %14 = arith.addi %1, %c0_i32_8 : i32
    %c0_9 = arith.constant 0 : index
    %15 = arith.index_cast %14 : i32 to index
    %c2 = arith.constant 2 : index
    %c0_10 = arith.constant 0 : index
    %16 = vector.load %arg2[%c0_9, %15, %c2, %c0_10] : memref<1x10x10x128xbf16, #tpu.memory_space<vmem>>, vector<1x4x8x128xbf16>
    %17 = vector.shape_cast %16 : vector<1x4x8x128xbf16> to vector<4x8x128xbf16>
    %18 = vector.shape_cast %17 : vector<4x8x128xbf16> to vector<32x128xbf16>
    %c0_11 = arith.constant 0 : index
    %c256 = arith.constant 256 : index
    %19 = vector.load %arg6[%c0_11, %c256] : memref<32x1152xbf16, #tpu.memory_space<vmem>>, vector<32x128xbf16>
    tpu.vector_store %arg6[%c0_11, %c256], %18 {strides = array<i32>} : memref<32x1152xbf16, #tpu.memory_space<vmem>>, vector<32x128xbf16>,
    %c1_i32 = arith.constant 1 : i32
    %20 = arith.addi %1, %c1_i32 : i32
    %c0_12 = arith.constant 0 : index
    %21 = arith.index_cast %20 : i32 to index
    %c0_13 = arith.constant 0 : index
    %c0_14 = arith.constant 0 : index
    %22 = vector.load %arg2[%c0_12, %21, %c0_13, %c0_14] : memref<1x10x10x128xbf16, #tpu.memory_space<vmem>>, vector<1x4x8x128xbf16>
    %23 = vector.shape_cast %22 : vector<1x4x8x128xbf16> to vector<4x8x128xbf16>
    %24 = vector.shape_cast %23 : vector<4x8x128xbf16> to vector<32x128xbf16>
    %c0_15 = arith.constant 0 : index
    %c384 = arith.constant 384 : index
    %25 = vector.load %arg6[%c0_15, %c384] : memref<32x1152xbf16, #tpu.memory_space<vmem>>, vector<32x128xbf16>
    tpu.vector_store %arg6[%c0_15, %c384], %24 {strides = array<i32>} : memref<32x1152xbf16, #tpu.memory_space<vmem>>, vector<32x128xbf16>,
    %c1_i32_16 = arith.constant 1 : i32
    %26 = arith.addi %1, %c1_i32_16 : i32
    %c0_17 = arith.constant 0 : index
    %27 = arith.index_cast %26 : i32 to index
    %c1_18 = arith.constant 1 : index
    %c0_19 = arith.constant 0 : index
    %28 = vector.load %arg2[%c0_17, %27, %c1_18, %c0_19] : memref<1x10x10x128xbf16, #tpu.memory_space<vmem>>, vector<1x4x8x128xbf16>
    %29 = vector.shape_cast %28 : vector<1x4x8x128xbf16> to vector<4x8x128xbf16>
    %30 = vector.shape_cast %29 : vector<4x8x128xbf16> to vector<32x128xbf16>
    %c0_20 = arith.constant 0 : index
    %c512 = arith.constant 512 : index
    %31 = vector.load %arg6[%c0_20, %c512] : memref<32x1152xbf16, #tpu.memory_space<vmem>>, vector<32x128xbf16>
    tpu.vector_store %arg6[%c0_20, %c512], %30 {strides = array<i32>} : memref<32x1152xbf16, #tpu.memory_space<vmem>>, vector<32x128xbf16>,
    %c1_i32_21 = arith.constant 1 : i32
    %32 = arith.addi %1, %c1_i32_21 : i32
    %c0_22 = arith.constant 0 : index
    %33 = arith.index_cast %32 : i32 to index
    %c2_23 = arith.constant 2 : index
    %c0_24 = arith.constant 0 : index
    %34 = vector.load %arg2[%c0_22, %33, %c2_23, %c0_24] : memref<1x10x10x128xbf16, #tpu.memory_space<vmem>>, vector<1x4x8x128xbf16>
    %35 = vector.shape_cast %34 : vector<1x4x8x128xbf16> to vector<4x8x128xbf16>
    %36 = vector.shape_cast %35 : vector<4x8x128xbf16> to vector<32x128xbf16>
    %c0_25 = arith.constant 0 : index
    %c640 = arith.constant 640 : index
    %37 = vector.load %arg6[%c0_25, %c640] : memref<32x1152xbf16, #tpu.memory_space<vmem>>, vector<32x128xbf16>
    tpu.vector_store %arg6[%c0_25, %c640], %36 {strides = array<i32>} : memref<32x1152xbf16, #tpu.memory_space<vmem>>, vector<32x128xbf16>,
    %c2_i32 = arith.constant 2 : i32
    %38 = arith.addi %1, %c2_i32 : i32
    %c0_26 = arith.constant 0 : index
    %39 = arith.index_cast %38 : i32 to index
    %c0_27 = arith.constant 0 : index
    %c0_28 = arith.constant 0 : index
    %40 = vector.load %arg2[%c0_26, %39, %c0_27, %c0_28] : memref<1x10x10x128xbf16, #tpu.memory_space<vmem>>, vector<1x4x8x128xbf16>
    %41 = vector.shape_cast %40 : vector<1x4x8x128xbf16> to vector<4x8x128xbf16>
    %42 = vector.shape_cast %41 : vector<4x8x128xbf16> to vector<32x128xbf16>
    %c0_29 = arith.constant 0 : index
    %c768 = arith.constant 768 : index
    %43 = vector.load %arg6[%c0_29, %c768] : memref<32x1152xbf16, #tpu.memory_space<vmem>>, vector<32x128xbf16>
    tpu.vector_store %arg6[%c0_29, %c768], %42 {strides = array<i32>} : memref<32x1152xbf16, #tpu.memory_space<vmem>>, vector<32x128xbf16>,
    %c2_i32_30 = arith.constant 2 : i32
    %44 = arith.addi %1, %c2_i32_30 : i32
    %c0_31 = arith.constant 0 : index
    %45 = arith.index_cast %44 : i32 to index
    %c1_32 = arith.constant 1 : index
    %c0_33 = arith.constant 0 : index
    %46 = vector.load %arg2[%c0_31, %45, %c1_32, %c0_33] : memref<1x10x10x128xbf16, #tpu.memory_space<vmem>>, vector<1x4x8x128xbf16>
    %47 = vector.shape_cast %46 : vector<1x4x8x128xbf16> to vector<4x8x128xbf16>
    %48 = vector.shape_cast %47 : vector<4x8x128xbf16> to vector<32x128xbf16>
    %c0_34 = arith.constant 0 : index
    %c896 = arith.constant 896 : index
    %49 = vector.load %arg6[%c0_34, %c896] : memref<32x1152xbf16, #tpu.memory_space<vmem>>, vector<32x128xbf16>
    tpu.vector_store %arg6[%c0_34, %c896], %48 {strides = array<i32>} : memref<32x1152xbf16, #tpu.memory_space<vmem>>, vector<32x128xbf16>,
    %c2_i32_35 = arith.constant 2 : i32
    %50 = arith.addi %1, %c2_i32_35 : i32
    %c0_36 = arith.constant 0 : index
    %51 = arith.index_cast %50 : i32 to index
    %c2_37 = arith.constant 2 : index
    %c0_38 = arith.constant 0 : index
    %52 = vector.load %arg2[%c0_36, %51, %c2_37, %c0_38] : memref<1x10x10x128xbf16, #tpu.memory_space<vmem>>, vector<1x4x8x128xbf16>
    %53 = vector.shape_cast %52 : vector<1x4x8x128xbf16> to vector<4x8x128xbf16>
    %54 = vector.shape_cast %53 : vector<4x8x128xbf16> to vector<32x128xbf16>
    %c0_39 = arith.constant 0 : index
    %c1024 = arith.constant 1024 : index
    %55 = vector.load %arg6[%c0_39, %c1024] : memref<32x1152xbf16, #tpu.memory_space<vmem>>, vector<32x128xbf16>
    tpu.vector_store %arg6[%c0_39, %c1024], %54 {strides = array<i32>} : memref<32x1152xbf16, #tpu.memory_space<vmem>>, vector<32x128xbf16>,
    %c0_40 = arith.constant 0 : index
    %c0_41 = arith.constant 0 : index
    %56 = vector.load %arg6[%c0_40, %c0_41] : memref<32x1152xbf16, #tpu.memory_space<vmem>>, vector<32x1152xbf16>
    %c0_42 = arith.constant 0 : index
    %c0_43 = arith.constant 0 : index
    %57 = vector.load %arg3[%c0_42, %c0_43] : memref<1152x128xbf16, #tpu.memory_space<vmem>>, vector<1152x128xbf16>
    %cst = arith.constant dense<0.000000e+00> : vector<32x128xf32>
    %58 = tpu.matmul %56, %57, %cst {dimension_numbers = #tpu.dot_dimension_numbers<[1], [0], [0], [1], [0, 0, 1, 1], [], []>} : vector<32x1152xbf16>, vector<1152x128xbf16>, vector<32x128xf32> -> vector<32x128xf32>
    %c0_44 = arith.constant 0 : index
    %c0_45 = arith.constant 0 : index
    %59 = vector.load %arg4[%c0_44, %c0_45] : memref<1x128xf32, #tpu.memory_space<vmem>>, vector<1x128xf32>
    %60 = vector.broadcast %59 : vector<1x128xf32> to vector<32x128xf32>
    %61 = arith.addf %58, %60 : vector<32x128xf32>
    %62 = vector.shape_cast %61 : vector<32x128xf32> to vector<4x8x128xf32>
    %c0_46 = arith.constant 0 : index
    %c0_47 = arith.constant 0 : index
    %c0_48 = arith.constant 0 : index
    %c0_49 = arith.constant 0 : index
    %63 = vector.load %arg5[%c0_46, %c0_47, %c0_48, %c0_49] : memref<1x4x8x128xf32, #tpu.memory_space<vmem>>, vector<1x4x8x128xf32>
    %64 = vector.shape_cast %63 : vector<1x4x8x128xf32> to vector<4x8x128xf32>
    %65 = vector.shape_cast %62 : vector<4x8x128xf32> to vector<1x4x8x128xf32>
    tpu.vector_store %arg5[%c0_46, %c0_47, %c0_48, %c0_49], %65 {strides = array<i32>} : memref<1x4x8x128xf32, #tpu.memory_space<vmem>>, vector<1x4x8x128xf32>,
    return
  }
  func.func @transform_0(%arg0: i32, %arg1: i32) -> (i32, i32, i32, i32) {
    %c0_i32 = arith.constant 0 : i32
    %c0_i32_0 = arith.constant 0 : i32
    %c0_i32_1 = arith.constant 0 : i32
    %c0_i32_2 = arith.constant 0 : i32
    return %arg0, %c0_i32, %c0_i32_0, %c0_i32_1 : i32, i32, i32, i32
  }
  func.func @transform_1(%arg0: i32, %arg1: i32) -> (i32, i32) {
    %c0_i32 = arith.constant 0 : i32
    %c0_i32_0 = arith.constant 0 : i32
    %c0_i32_1 = arith.constant 0 : i32
    return %c0_i32, %c0_i32_0 : i32, i32
  }
  func.func @transform_2(%arg0: i32, %arg1: i32) -> (i32, i32) {
    %c0_i32 = arith.constant 0 : i32
    %c0_i32_0 = arith.constant 0 : i32
    %c0_i32_1 = arith.constant 0 : i32
    return %c0_i32, %c0_i32_0 : i32, i32
  }
  func.func @transform_3(%arg0: i32, %arg1: i32) -> (i32, i32, i32, i32) {
    %c0_i32 = arith.constant 0 : i32
    %c0_i32_0 = arith.constant 0 : i32
    %c0_i32_1 = arith.constant 0 : i32
    return %arg0, %arg1, %c0_i32, %c0_i32_0 : i32, i32, i32, i32
  }
}

</mosaic_0001>

<llo_original>
// kernel: vgg16_forward.4
$region0: #{vgg16_forward.4}
  #allocation0 [shape = 'u32[]', space=smem, size = 0x4, offset = 0x4, fixed_abs, tag = 'smem constant byte address 0x4 - core index']
  #allocation1 [shape = 'u32[144,128]{1,0:T(1,128)}', space=vmem, size = 0x12000, scoped, tag = 'internal scratch']
  %s0 = inlined_call_operand.vmem [shape: bf16[2,16,16,27], index: 0, kind: input, shape index: {}]
  %s1 = inlined_call_operand.vmem [shape: bf16[27,64], index: 1, kind: input, shape index: {}]
  %s2 = inlined_call_operand.vmem [shape: f32[1,64], index: 2, kind: input, shape index: {}]
  %s3 = inlined_call_operand.vmem [shape: bf16[2,16,16,64], index: 3, kind: output, shape index: {}]
  %s4 = sld [smem:[#allocation0]]
  $region45: #{vgg16_forward.4} parent=0
    _
  %s6 = ssub.s32 1, %s4
  %s7 = scalar_select 0, %s6, %s4
  loop: start=0, step=1, limit=6
  $region2: #{vgg16_forward.4} parent=0 // loop_pre_header
    _
  $region3: #{vgg16_forward.4} parent=0 // loop_header
    %s9 = sphi 0, %s13
    %p10 = scmp.ge.s32.totalorder %s9, 6
    %s16 = sphi 0, %s28
    %s17 = sphi 0, %s24
    %s18 = sphi 0, %s16
    %s19 = sphi 0, %s17
    %s20 = sphi 0, %s18
    %s21 = sphi 0, %s19
    %s33 = sphi 0, %s35
    %s36 = sphi 0, %s33
    %s37 = sphi 0, %s36
    %s53 = sphi 0, %s37
    %s57 = sphi 0, %s57
    %s59 = sphi 0, %s57
    %s60 = sphi 0, %s59
    %s74 = sphi 0, %s60
    %s78 = sphi 0, %s78
    %s80 = sphi 0, %s78
    %s81 = sphi 0, %s80
    %s95 = sphi 0, %s81
    %s103 = sphi 0, %s105
    %s106 = sphi 0, %s103
    %s107 = sphi 0, %s106
    %s123 = sphi 0, %s107
  $region4: #{vgg16_forward.4} parent=0 // loop_header_branch
    %12 = sbr.rel (%p10) target = $region8
  $region5: #{vgg16_forward.4} parent=0 // loop_body
    %s14 = ssub.s32 %s9, 1
    %s15 = ssub.s32 %s9, 2
    %s22 = sadd.s32 1, %s17
    %p23 = scmp.ge.s32.totalorder %s22, 2
    %s24 = scalar_select %p23, 0, %s22
    %s25 = sadd.s32 1, %s16
    %s26 = scalar_select %p23, %s25, %s16
    %p27 = scmp.ge.s32.totalorder %s26, 2
    %s28 = scalar_select %p27, 0, %s26
    %s29 = ssub.s32 %s16, %s28
    %s30 = ssub.s32 %s17, %s24
    %s31 = sor.u32 %s29, %s30
    %p32 = scmp.eq.s32.totalorder %s31, 0
    %s34 = sadd.s32 %s33, 1
    %s35 = scalar_select %p32, %s33, %s34
    %p38 = pneg %p32
    %p39 = scmp.eq.s32.totalorder %s9, 3
    %p40 = por %p38, %p39
    %p41 = scmp.ne.s32.totalorder %s33, %s36
    %p42 = scmp.eq.s32.totalorder %s9, 0
    %p43 = por %p41, %p42
    %p44 = scmp.ne.s32.totalorder %s33, %s36
    %p45 = scmp.eq.s32.totalorder %s14, 3
    %p46 = por %p44, %p45
    %p47 = scmp.ne.s32.totalorder %s36, %s37
    %p48 = scmp.eq.s32.totalorder %s14, 0
    %p49 = por %p47, %p48
    %p50 = scmp.ne.s32.totalorder %s36, %s37
    %p51 = scmp.eq.s32.totalorder %s15, 3
    %p52 = por %p50, %p51
    %p54 = scmp.ne.s32.totalorder %s37, %s53
    %p55 = scmp.eq.s32.totalorder %s15, 0
    %p56 = por %p54, %p55
    %s58 = sadd.s32 %s57, 1
    %p61 = scmp.eq.s32.totalorder %s9, 3
    %p62 = scmp.ne.s32.totalorder %s57, %s59
    %p63 = scmp.eq.s32.totalorder %s9, 0
    %p64 = por %p62, %p63
    %p65 = scmp.ne.s32.totalorder %s57, %s59
    %p66 = scmp.eq.s32.totalorder %s14, 3
    %p67 = por %p65, %p66
    %p68 = scmp.ne.s32.totalorder %s59, %s60
    %p69 = scmp.eq.s32.totalorder %s14, 0
    %p70 = por %p68, %p69
    %p71 = scmp.ne.s32.totalorder %s59, %s60
    %p72 = scmp.eq.s32.totalorder %s15, 3
    %p73 = por %p71, %p72
    %p75 = scmp.ne.s32.totalorder %s60, %s74
    %p76 = scmp.eq.s32.totalorder %s15, 0
    %p77 = por %p75, %p76
    %s79 = sadd.s32 %s78, 1
    %p82 = scmp.eq.s32.totalorder %s9, 3
    %p83 = scmp.ne.s32.totalorder %s78, %s80
    %p84 = scmp.eq.s32.totalorder %s9, 0
    %p85 = por %p83, %p84
    %p86 = scmp.ne.s32.totalorder %s78, %s80
    %p87 = scmp.eq.s32.totalorder %s14, 3
    %p88 = por %p86, %p87
    %p89 = scmp.ne.s32.totalorder %s80, %s81
    %p90 = scmp.eq.s32.totalorder %s14, 0
    %p91 = por %p89, %p90
    %p92 = scmp.ne.s32.totalorder %s80, %s81
    %p93 = scmp.eq.s32.totalorder %s15, 3
    %p94 = por %p92, %p93
    %p96 = scmp.ne.s32.totalorder %s81, %s95
    %p97 = scmp.eq.s32.totalorder %s15, 0
    %p98 = por %p96, %p97
    %s99 = ssub.s32 %s16, %s28
    %s100 = ssub.s32 %s17, %s24
    %s101 = sor.u32 %s99, %s100
    %p102 = scmp.eq.s32.totalorder %s101, 0
    %s104 = sadd.s32 %s103, 1
    %s105 = scalar_select %p102, %s103, %s104
    %p108 = pneg %p102
    %p109 = scmp.eq.s32.totalorder %s9, 3
    %p110 = por %p108, %p109
    %p111 = scmp.ne.s32.totalorder %s103, %s106
    %p112 = scmp.eq.s32.totalorder %s9, 0
    %p113 = por %p111, %p112
    %p114 = scmp.ne.s32.totalorder %s103, %s106
    %p115 = scmp.eq.s32.totalorder %s14, 3
    %p116 = por %p114, %p115
    %p117 = scmp.ne.s32.totalorder %s106, %s107
    %p118 = scmp.eq.s32.totalorder %s14, 0
    %p119 = por %p117, %p118
    %p120 = scmp.ne.s32.totalorder %s106, %s107
    %p121 = scmp.eq.s32.totalorder %s15, 3
    %p122 = por %p120, %p121
    %p124 = scmp.ne.s32.totalorder %s107, %s123
    %p125 = scmp.eq.s32.totalorder %s15, 0
    %p126 = por %p124, %p125
    %p127 = scmp.le.s32.totalorder 1, %s9
    %p128 = scmp.lt.s32.totalorder %s9, 5
    %p129 = pnand %p127, %p128
    %p130 = pneg %p129
    // Predicated region
    $region9: #{vgg16_forward.4} parent=5 // pred_check
      _
    $region10: #{vgg16_forward.4} parent=5 // pred_check_branch
      %132 = sbr.rel (%p129) target = $region12
    $region11: #{vgg16_forward.4} parent=5 // pred_region
      %s133 = ssub.s32 %s9, 1
      // Predicated region
      $region13: #{vgg16_forward.4} parent=11 // pred_check
        %p134 = pneg %p70
      $region14: #{vgg16_forward.4} parent=11 // pred_check_branch
        %136 = sbr.rel (%p134) target = $region16
      $region15: #{vgg16_forward.4} parent=11 // pred_region
        _
      $region16: #{vgg16_forward.4} parent=11 // pred_fallthru
        _
      // Predicated region
      $region17: #{vgg16_forward.4} parent=11 // pred_check
        %p137 = pneg %p91
      $region18: #{vgg16_forward.4} parent=11 // pred_check_branch
        %139 = sbr.rel (%p137) target = $region20
      $region19: #{vgg16_forward.4} parent=11 // pred_region
        _
      $region20: #{vgg16_forward.4} parent=11 // pred_fallthru
        _
    $region12: #{vgg16_forward.4} parent=5 // pred_fallthru
      _
    %p140 = scmp.lt.s32.totalorder %s9, 4
    // Predicated region
    $region21: #{vgg16_forward.4} parent=5 // pred_check
      %p141 = pneg %p140
    $region22: #{vgg16_forward.4} parent=5 // pred_check_branch
      %143 = sbr.rel (%p141) target = $region24
    $region23: #{vgg16_forward.4} parent=5 // pred_region
      // Predicated region
      $region25: #{vgg16_forward.4} parent=23 // pred_check
        %p144 = pneg %p43
      $region26: #{vgg16_forward.4} parent=23 // pred_check_branch
        %146 = sbr.rel (%p144) target = $region28
      $region27: #{vgg16_forward.4} parent=23 // pred_region
        %s147 = smul.u32 8, %s17
        %p148 = scmp.lt.s32.totalorder %s16, 1
        %s149 = scalar_select %p148, %s16, 1
        %p150 = scmp.lt.s32.totalorder %s147, 15
        %s151 = scalar_select %p150, %s147, 15
        %s152 = smul.addr %s151, 2
        %s153 = smul.addr %s149, 32
        %s154 = sadd.s32 %s152, %s153
        %s155 = smul.addr %s154, 4
        %s156 = scalar_lea.vmem %s0, %s155
        %s157 = smul.u32 8, %s17
      $region28: #{vgg16_forward.4} parent=23 // pred_fallthru
        _
    $region24: #{vgg16_forward.4} parent=5 // pred_fallthru
      _
    %p158 = scmp.le.s32.totalorder 1, %s9
    %p159 = scmp.lt.s32.totalorder %s9, 5
    %p160 = pnand %p158, %p159
    %p161 = pneg %p160
    // Predicated region
    $region29: #{vgg16_forward.4} parent=5 // pred_check
      _
    $region30: #{vgg16_forward.4} parent=5 // pred_check_branch
      %163 = sbr.rel (%p160) target = $region32
    $region31: #{vgg16_forward.4} parent=5 // pred_region
      %s164 = ssub.s32 %s9, 1
      %s165 = smul.u32 8, %s19
      %p166 = scmp.lt.s32.totalorder %s18, 1
      %s167 = scalar_select %p166, %s18, 1
      %p168 = scmp.lt.s32.totalorder %s165, 15
      %s169 = scalar_select %p168, %s165, 15
      %s170 = smul.addr %s169, 2
      %s171 = smul.addr %s167, 32
      %s172 = sadd.s32 %s170, %s171
      %s173 = smul.addr %s172, 4
      %s174 = scalar_lea.vmem %s0, %s173
      %p175 = pneg %p49
      %p176 = pneg %p46
      %p177 = pneg %p70
      %p178 = pneg %p67
      %p179 = pneg %p91
      %p180 = pneg %p88
      %p181 = pneg %p119
      %p182 = pneg %p116
      %s183 = smul.u32 8, %s19
      %p184 = scmp.lt.s32.totalorder %s18, 1
      %s185 = scalar_select %p184, %s18, 1
      %p186 = scmp.lt.s32.totalorder %s183, 15
      %s187 = scalar_select %p186, %s183, 15
      %s188 = smul.addr %s187, 2
      %s189 = smul.addr %s185, 32
      %s190 = sadd.s32 %s188, %s189
      %s191 = smul.addr %s190, 4
      %s192 = scalar_lea.vmem %s3, %s191
      %s193 = smul.u32 8, %s19
      %p194 = scmp.lt.s32.totalorder %s18, 1
      %s195 = scalar_select %p194, %s18, 1
      %p196 = scmp.lt.s32.totalorder %s193, 15
      %s197 = scalar_select %p196, %s193, 15
      %s198 = smul.addr %s197, 2
      %s199 = smul.addr %s195, 32
      %s200 = sadd.s32 %s198, %s199
      %s201 = smul.addr %s200, 4
      %s202 = scalar_lea.vmem %s0, %s201
      %s203 = smul.u32 8, %s19
      %s204 = smul.u32 8, %s19
      %p205 = scmp.lt.s32.totalorder %s18, 1
      %s206 = scalar_select %p205, %s18, 1
      %p207 = scmp.lt.s32.totalorder %s204, 15
      %s208 = scalar_select %p207, %s204, 15
      %s209 = smul.addr %s208, 2
      %s210 = smul.addr %s206, 32
      %s211 = sadd.s32 %s209, %s210
      %s212 = smul.addr %s211, 4
      %s213 = scalar_lea.vmem %s3, %s212
      %s214 = smul.u32 8, %s19
      %v216 = vld [vmem:[%s202] sm:$0xf]
      %v217 = vld [vmem:[%s202 + $0x4] sm:$0xf]
      %v218 = vld [vmem:[%s202 + $0x8] sm:$0xf]
      %v219 = vld [vmem:[%s202 + $0xc] sm:$0xf]
      %v220 = vld [vmem:[%s202 + $0x10] sm:$0xf]
      %v221 = vld [vmem:[%s202 + $0x14] sm:$0xf]
      %v222 = vld [vmem:[%s202 + $0x18] sm:$0xf]
      %v223 = vld [vmem:[%s202 + $0x1c] sm:$0xf]
      %v224 = vld [vmem:[%s202 + $0x20] sm:$0xf]
      %v225 = vld [vmem:[%s202 + $0x24] sm:$0xf]
      %v226 = vld [vmem:[%s202 + $0x28] sm:$0xf]
      %v227 = vld [vmem:[%s202 + $0x2c] sm:$0xf]
      %v228 = vld [vmem:[%s202 + $0x30] sm:$0xf]
      %v229 = vld [vmem:[%s202 + $0x34] sm:$0xf]
      %v230 = vld [vmem:[%s202 + $0x38] sm:$0xf]
      %v231 = vld [vmem:[%s202 + $0x3c] sm:$0xf]
      %v232 = vld [vmem:[%s1] sm:$0xf]
      %v233 = vld [vmem:[%s1 + $0x4] sm:$0xf]
      %v234 = vld [vmem:[%s1 + $0x8] sm:$0xf]
      %v235 = vld [vmem:[%s1 + $0xc] sm:$0x3]
      %v236 = vld [vmem:[%s2] sm:$0x1]
      %v238 = vlaneseq
      %v239 = vshrl.u32 %v238, 7
      %v240 = vsub.s32 0, %v239
      %v241 = vrot.slane %v236, %v240
      %v259 = vunpack.c.l.b16 %v216
      %v260 = vunpack.c.l.b16 %v217
      %v261 = vunpack.c.l.b16 %v218
      %v262 = vunpack.c.l.b16 %v219
      %v263 = vunpack.c.l.b16 %v220
      %v264 = vunpack.c.l.b16 %v221
      %v265 = vunpack.c.l.b16 %v222
      %v266 = vunpack.c.l.b16 %v223
      %v267 = vunpack.c.l.b16 %v224
      %v268 = vunpack.c.l.b16 %v225
      %v269 = vunpack.c.l.b16 %v226
      %v270 = vunpack.c.l.b16 %v227
      %v271 = vunpack.c.l.b16 %v228
      %v272 = vunpack.c.l.b16 %v229
      %v273 = vunpack.c.l.b16 %v230
      %v274 = vunpack.c.l.b16 %v231
      %v275 = vpack.c.b16 %v260, %v259
      %v276 = vpack.c.b16 %v262, %v261
      %v277 = vpack.c.b16 %v264, %v263
      %v278 = vpack.c.b16 %v266, %v265
      %v279 = vpack.c.b16 %v268, %v267
      %v280 = vpack.c.b16 %v270, %v269
      %v281 = vpack.c.b16 %v272, %v271
      %v282 = vpack.c.b16 %v274, %v273
      %v287 = vunpack.c.l.b16 %v232
      %v288 = vunpack.c.l.b16 %v233
      %v289 = vunpack.c.l.b16 %v234
      %v290 = vunpack.c.l.b16 %v235
      %v291 = vpack.c.b16 %v288, %v287
      %v292 = vpack.c.b16 %v290, %v289
      %vm294 = vcmask 220160
      %v296 = vsel %vm294, %v275, 0
      %v299 = vsel %vm294, %v276, 0
      %v302 = vsel %vm294, %v277, 0
      %v305 = vsel %vm294, %v278, 0
      %v308 = vsel %vm294, %v279, 0
      %v311 = vsel %vm294, %v280, 0
      %v314 = vsel %vm294, %v281, 0
      %v317 = vsel %vm294, %v282, 0
      %vm319 = vcmask 1044480
      %vm320 = vcmask 1045504
      %v321 = vsel %vm319, 4294967295, 65535
      %v322 = vsel %vm320, %v321, 0
      %v324 = vand.u32 %v292, %v322
      %326 = vmatprep.subr.bf16.mxu0 0
      %327 = vmatpush1.bf16.msra.mxu0 %v291
      %328 = vmatprep.subr.bf16.mxu0 0
      %329 = vmatpush1.bf16.msra.mxu0 %v324
      %330 = vmatprep.subr.bf16.mxu0 0
      %331 = vmatpush1.bf16.msra.mxu0 0
      %332 = vmatprep.subr.bf16.mxu0 0
      %333 = vmatpush1.bf16.msra.mxu0 0
      %334 = vmatprep.subr.bf16.mxu0 0
      %335 = vmatpush1.bf16.msra.mxu0 0
      %336 = vmatprep.subr.bf16.mxu0 0
      %337 = vmatpush1.bf16.msra.mxu0 0
      %338 = vmatprep.subr.bf16.mxu0 0
      %339 = vmatpush1.bf16.msra.mxu0 0
      %340 = vmatprep.subr.bf16.mxu0 0
      %341 = vmatpush1.bf16.msra.mxu0 0
      %342 = vmatprep.subr.bf16.mxu0 0
      %343 = vmatpush1.bf16.msra.mxu0 0
      %344 = vmatprep.subr.bf16.mxu0 0
      %345 = vmatpush1.bf16.msra.mxu0 0
      %346 = vmatprep.subr.bf16.mxu0 0
      %347 = vmatpush1.bf16.msra.mxu0 0
      %348 = vmatprep.subr.bf16.mxu0 0
      %349 = vmatpush1.bf16.msra.mxu0 0
      %350 = vmatprep.subr.bf16.mxu0 0
      %351 = vmatpush1.bf16.msra.mxu0 0
      %352 = vmatprep.subr.bf16.mxu0 0
      %353 = vmatpush1.bf16.msra.mxu0 0
      %354 = vmatprep.subr.bf16.mxu0 0
      %355 = vmatpush1.bf16.msra.mxu0 0
      %356 = vmatprep.subr.bf16.mxu0 0
      %357 = vmatpush1.bf16.msra.mxu0 0
      %358 = vmatprep.mubr.bf16.mxu0 0
      %359 = vmatmul.mubr.bf16.gmra.mrb[0].mxu0 %v296
      %v360 = vpop.f32.mrb[0].mxu0
      %v361 = vadd.f32 %v241, %v360
      %v362 = vpop.f32.mrb[0].mxu0
      %v363 = vpop.f32.mrb[0].mxu0
      %v364 = vadd.f32 %v241, %v363
      %v365 = vpop.f32.mrb[0].mxu0
      %366 = vmatprep.mubr.bf16.mxu0 0
      %367 = vmatmul.mubr.bf16.gmra.mrb[0].mxu0 %v299
      %v368 = vpop.f32.mrb[0].mxu0
      %v369 = vadd.f32 %v241, %v368
      %v370 = vpop.f32.mrb[0].mxu0
      %v371 = vpop.f32.mrb[0].mxu0
      %v372 = vadd.f32 %v241, %v371
      %v373 = vpop.f32.mrb[0].mxu0
      %374 = vmatprep.mubr.bf16.mxu0 0
      %375 = vmatmul.mubr.bf16.gmra.mrb[0].mxu0 %v302
      %v376 = vpop.f32.mrb[0].mxu0
      %v377 = vadd.f32 %v241, %v376
      %v378 = vpop.f32.mrb[0].mxu0
      %v379 = vpop.f32.mrb[0].mxu0
      %v380 = vadd.f32 %v241, %v379
      %v381 = vpop.f32.mrb[0].mxu0
      %382 = vmatprep.mubr.bf16.mxu0 0
      %383 = vmatmul.mubr.bf16.gmra.mrb[0].mxu0 %v305
      %v384 = vpop.f32.mrb[0].mxu0
      %v385 = vadd.f32 %v241, %v384
      %v386 = vpop.f32.mrb[0].mxu0
      %v387 = vpop.f32.mrb[0].mxu0
      %v388 = vadd.f32 %v241, %v387
      %v389 = vpop.f32.mrb[0].mxu0
      %390 = vmatprep.mubr.bf16.mxu0 0
      %391 = vmatmul.mubr.bf16.gmra.mrb[0].mxu0 %v308
      %v392 = vpop.f32.mrb[0].mxu0
      %v393 = vadd.f32 %v241, %v392
      %v394 = vpop.f32.mrb[0].mxu0
      %v395 = vpop.f32.mrb[0].mxu0
      %v396 = vadd.f32 %v241, %v395
      %v397 = vpop.f32.mrb[0].mxu0
      %398 = vmatprep.mubr.bf16.mxu0 0
      %399 = vmatmul.mubr.bf16.gmra.mrb[0].mxu0 %v311
      %v400 = vpop.f32.mrb[0].mxu0
      %v401 = vadd.f32 %v241, %v400
      %v402 = vpop.f32.mrb[0].mxu0
      %v403 = vpop.f32.mrb[0].mxu0
      %v404 = vadd.f32 %v241, %v403
      %v405 = vpop.f32.mrb[0].mxu0
      %406 = vmatprep.mubr.bf16.mxu0 0
      %407 = vmatmul.mubr.bf16.gmra.mrb[0].mxu0 %v314
      %v408 = vpop.f32.mrb[0].mxu0
      %v409 = vadd.f32 %v241, %v408
      %v410 = vpop.f32.mrb[0].mxu0
      %v411 = vpop.f32.mrb[0].mxu0
      %v412 = vadd.f32 %v241, %v411
      %v413 = vpop.f32.mrb[0].mxu0
      %414 = vmatprep.mubr.bf16.mxu0 0
      %415 = vmatmul.mubr.bf16.gmra.mrb[0].mxu0 %v317
      %v416 = vpop.f32.mrb[0].mxu0
      %v417 = vadd.f32 %v241, %v416
      %v418 = vpop.f32.mrb[0].mxu0
      %v419 = vpop.f32.mrb[0].mxu0
      %v420 = vadd.f32 %v241, %v419
      %v421 = vpop.f32.mrb[0].mxu0
      %422 = vdwg.mxu0
      %v423 = vmax.f32 %v361, 0.0
      %v424 = vmax.f32 %v364, 0.0
      %v425 = vmax.f32 %v369, 0.0
      %v426 = vmax.f32 %v372, 0.0
      %v427 = vmax.f32 %v377, 0.0
      %v428 = vmax.f32 %v380, 0.0
      %v429 = vmax.f32 %v385, 0.0
      %v430 = vmax.f32 %v388, 0.0
      %v431 = vmax.f32 %v393, 0.0
      %v432 = vmax.f32 %v396, 0.0
      %v433 = vmax.f32 %v401, 0.0
      %v434 = vmax.f32 %v404, 0.0
      %v435 = vmax.f32 %v409, 0.0
      %v436 = vmax.f32 %v412, 0.0
      %v437 = vmax.f32 %v417, 0.0
      %v438 = vmax.f32 %v420, 0.0
      %v439 = vpack.c.bf16 %v424, %v423
      %v440 = vpack.c.bf16 %v426, %v425
      %v441 = vpack.c.bf16 %v428, %v427
      %v442 = vpack.c.bf16 %v430, %v429
      %v443 = vpack.c.bf16 %v432, %v431
      %v444 = vpack.c.bf16 %v434, %v433
      %v445 = vpack.c.bf16 %v436, %v435
      %v446 = vpack.c.bf16 %v438, %v437
      %v455 = vunpack.c.l.b16 %v439
      %v456 = vunpack.c.h.b16 %v439
      %v457 = vunpack.c.l.b16 %v440
      %v458 = vunpack.c.h.b16 %v440
      %v459 = vunpack.c.l.b16 %v441
      %v460 = vunpack.c.h.b16 %v441
      %v461 = vunpack.c.l.b16 %v442
      %v462 = vunpack.c.h.b16 %v442
      %v463 = vunpack.c.l.b16 %v443
      %v464 = vunpack.c.h.b16 %v443
      %v465 = vunpack.c.l.b16 %v444
      %v466 = vunpack.c.h.b16 %v444
      %v467 = vunpack.c.l.b16 %v445
      %v468 = vunpack.c.h.b16 %v445
      %v469 = vunpack.c.l.b16 %v446
      %v470 = vunpack.c.h.b16 %v446
      %v471 = vpack.c.b16 %v455, %v455
      %v472 = vpack.c.b16 %v456, %v456
      %v473 = vpack.c.b16 %v457, %v457
      %v474 = vpack.c.b16 %v458, %v458
      %v475 = vpack.c.b16 %v459, %v459
      %v476 = vpack.c.b16 %v460, %v460
      %v477 = vpack.c.b16 %v461, %v461
      %v478 = vpack.c.b16 %v462, %v462
      %v479 = vpack.c.b16 %v463, %v463
      %v480 = vpack.c.b16 %v464, %v464
      %v481 = vpack.c.b16 %v465, %v465
      %v482 = vpack.c.b16 %v466, %v466
      %v483 = vpack.c.b16 %v467, %v467
      %v484 = vpack.c.b16 %v468, %v468
      %v485 = vpack.c.b16 %v469, %v469
      %v486 = vpack.c.b16 %v470, %v470
      %vm503 = vcmask 519168
      %504 = vst.msk [vmem:[%s213] sm:$0xf] %vm503, %v471
      %505 = vst.msk [vmem:[%s213 + $0x4] sm:$0xf] %vm503, %v472
      %506 = vst.msk [vmem:[%s213 + $0x8] sm:$0xf] %vm503, %v473
      %507 = vst.msk [vmem:[%s213 + $0xc] sm:$0xf] %vm503, %v474
      %508 = vst.msk [vmem:[%s213 + $0x10] sm:$0xf] %vm503, %v475
      %509 = vst.msk [vmem:[%s213 + $0x14] sm:$0xf] %vm503, %v476
      %510 = vst.msk [vmem:[%s213 + $0x18] sm:$0xf] %vm503, %v477
      %511 = vst.msk [vmem:[%s213 + $0x1c] sm:$0xf] %vm503, %v478
      %512 = vst.msk [vmem:[%s213 + $0x20] sm:$0xf] %vm503, %v479
      %513 = vst.msk [vmem:[%s213 + $0x24] sm:$0xf] %vm503, %v480
      %514 = vst.msk [vmem:[%s213 + $0x28] sm:$0xf] %vm503, %v481
      %515 = vst.msk [vmem:[%s213 + $0x2c] sm:$0xf] %vm503, %v482
      %516 = vst.msk [vmem:[%s213 + $0x30] sm:$0xf] %vm503, %v483
      %517 = vst.msk [vmem:[%s213 + $0x34] sm:$0xf] %vm503, %v484
      %518 = vst.msk [vmem:[%s213 + $0x38] sm:$0xf] %vm503, %v485
      %519 = vst.msk [vmem:[%s213 + $0x3c] sm:$0xf] %vm503, %v486
      %s520 = smul.u32 8, %s19
      %p521 = scmp.lt.s32.totalorder %s18, 1
      %s522 = scalar_select %p521, %s18, 1
      %p523 = scmp.lt.s32.totalorder %s520, 15
      %s524 = scalar_select %p523, %s520, 15
      %s525 = smul.addr %s524, 2
      %s526 = smul.addr %s522, 32
      %s527 = sadd.s32 %s525, %s526
      %s528 = smul.addr %s527, 4
      %s529 = scalar_lea.vmem %s3, %s528
      // Predicated region
      $region33: #{vgg16_forward.4} parent=31 // pred_check
        %p530 = pneg %p116
      $region34: #{vgg16_forward.4} parent=31 // pred_check_branch
        %532 = sbr.rel (%p530) target = $region36
      $region35: #{vgg16_forward.4} parent=31 // pred_region
        %s533 = smul.u32 8, %s19
      $region36: #{vgg16_forward.4} parent=31 // pred_fallthru
        _
    $region32: #{vgg16_forward.4} parent=5 // pred_fallthru
      _
    %p534 = scmp.le.s32.totalorder 2, %s9
    // Predicated region
    $region37: #{vgg16_forward.4} parent=5 // pred_check
      %p535 = pneg %p534
    $region38: #{vgg16_forward.4} parent=5 // pred_check_branch
      %537 = sbr.rel (%p535) target = $region40
    $region39: #{vgg16_forward.4} parent=5 // pred_region
      %s538 = ssub.s32 %s9, 2
      // Predicated region
      $region41: #{vgg16_forward.4} parent=39 // pred_check
        %p539 = pneg %p122
      $region42: #{vgg16_forward.4} parent=39 // pred_check_branch
        %541 = sbr.rel (%p539) target = $region44
      $region43: #{vgg16_forward.4} parent=39 // pred_region
        %s542 = smul.u32 8, %s21
        %p543 = scmp.lt.s32.totalorder %s20, 1
        %s544 = scalar_select %p543, %s20, 1
        %p545 = scmp.lt.s32.totalorder %s542, 15
        %s546 = scalar_select %p545, %s542, 15
        %s547 = smul.addr %s546, 2
        %s548 = smul.addr %s544, 32
        %s549 = sadd.s32 %s547, %s548
        %s550 = smul.addr %s549, 4
        %s551 = scalar_lea.vmem %s3, %s550
      $region44: #{vgg16_forward.4} parent=39 // pred_fallthru
        _
    $region40: #{vgg16_forward.4} parent=5 // pred_fallthru
      _
  $region6: #{vgg16_forward.4} parent=0 // loop_footer
    %s13 = sadd.s32 1, %s9
  $region7: #{vgg16_forward.4} parent=0 // loop_footer_branch
    %8 = sbr.rel target = $region3
  $region8: #{vgg16_forward.4} parent=0 // loop_exit
    _

// kernel: vgg16_forward.6
$region0: #{vgg16_forward.6}
  #allocation0 [shape = 'u32[]', space=smem, size = 0x4, offset = 0x4, fixed_abs, tag = 'smem constant byte address 0x4 - core index']
  #allocation1 [shape = 'u32[144,128]{1,0:T(1,128)}', space=vmem, size = 0x12000, scoped, tag = 'internal scratch']
  #allocation2 [shape = 'bf16[32,576]{1,0:T(16,128)(2,1)}', space=vmem, size = 0xa000, scoped, tag = 'scratch operand']
  %s0 = inlined_call_operand.vmem [shape: bf16[2,10,10,64], index: 0, kind: input, shape index: {}]
  %s1 = inlined_call_operand.vmem [shape: bf16[576,128], index: 1, kind: input, shape index: {}]
  %s2 = inlined_call_operand.vmem [shape: f32[1,128], index: 2, kind: input, shape index: {}]
  %s3 = inlined_call_operand.vmem [shape: bf16[2,8,8,128], index: 3, kind: output, shape index: {}]
  %s4 = sld [smem:[#allocation0]]
  $region45: #{vgg16_forward.6} parent=0
    _
  %s6 = ssub.s32 1, %s4
  %s7 = scalar_select 0, %s6, %s4
  loop: start=0, step=1, limit=6
  $region2: #{vgg16_forward.6} parent=0 // loop_pre_header
    _
  $region3: #{vgg16_forward.6} parent=0 // loop_header
    %s9 = sphi 0, %s13
    %p10 = scmp.ge.s32.totalorder %s9, 6
    %s16 = sphi 0, %s28
    %s17 = sphi 0, %s24
    %s18 = sphi 0, %s16
    %s19 = sphi 0, %s17
    %s20 = sphi 0, %s18
    %s21 = sphi 0, %s19
    %s31 = sphi 0, %s33
    %s34 = sphi 0, %s31
    %s35 = sphi 0, %s34
    %s51 = sphi 0, %s35
    %s55 = sphi 0, %s55
    %s57 = sphi 0, %s55
    %s58 = sphi 0, %s57
    %s72 = sphi 0, %s58
    %s76 = sphi 0, %s76
    %s78 = sphi 0, %s76
    %s79 = sphi 0, %s78
    %s93 = sphi 0, %s79
    %s101 = sphi 0, %s103
    %s104 = sphi 0, %s101
    %s105 = sphi 0, %s104
    %s121 = sphi 0, %s105
  $region4: #{vgg16_forward.6} parent=0 // loop_header_branch
    %12 = sbr.rel (%p10) target = $region8
  $region5: #{vgg16_forward.6} parent=0 // loop_body
    %s14 = ssub.s32 %s9, 1
    %s15 = ssub.s32 %s9, 2
    %s22 = sadd.s32 1, %s17
    %p23 = scmp.ge.s32.totalorder %s22, 2
    %s24 = scalar_select %p23, 0, %s22
    %s25 = sadd.s32 1, %s16
    %s26 = scalar_select %p23, %s25, %s16
    %p27 = scmp.ge.s32.totalorder %s26, 2
    %s28 = scalar_select %p27, 0, %s26
    %s29 = ssub.s32 %s16, %s28
    %p30 = scmp.eq.s32.totalorder %s29, 0
    %s32 = sadd.s32 %s31, 1
    %s33 = scalar_select %p30, %s31, %s32
    %p36 = pneg %p30
    %p37 = scmp.eq.s32.totalorder %s9, 3
    %p38 = por %p36, %p37
    %p39 = scmp.ne.s32.totalorder %s31, %s34
    %p40 = scmp.eq.s32.totalorder %s9, 0
    %p41 = por %p39, %p40
    %p42 = scmp.ne.s32.totalorder %s31, %s34
    %p43 = scmp.eq.s32.totalorder %s14, 3
    %p44 = por %p42, %p43
    %p45 = scmp.ne.s32.totalorder %s34, %s35
    %p46 = scmp.eq.s32.totalorder %s14, 0
    %p47 = por %p45, %p46
    %p48 = scmp.ne.s32.totalorder %s34, %s35
    %p49 = scmp.eq.s32.totalorder %s15, 3
    %p50 = por %p48, %p49
    %p52 = scmp.ne.s32.totalorder %s35, %s51
    %p53 = scmp.eq.s32.totalorder %s15, 0
    %p54 = por %p52, %p53
    %s56 = sadd.s32 %s55, 1
    %p59 = scmp.eq.s32.totalorder %s9, 3
    %p60 = scmp.ne.s32.totalorder %s55, %s57
    %p61 = scmp.eq.s32.totalorder %s9, 0
    %p62 = por %p60, %p61
    %p63 = scmp.ne.s32.totalorder %s55, %s57
    %p64 = scmp.eq.s32.totalorder %s14, 3
    %p65 = por %p63, %p64
    %p66 = scmp.ne.s32.totalorder %s57, %s58
    %p67 = scmp.eq.s32.totalorder %s14, 0
    %p68 = por %p66, %p67
    %p69 = scmp.ne.s32.totalorder %s57, %s58
    %p70 = scmp.eq.s32.totalorder %s15, 3
    %p71 = por %p69, %p70
    %p73 = scmp.ne.s32.totalorder %s58, %s72
    %p74 = scmp.eq.s32.totalorder %s15, 0
    %p75 = por %p73, %p74
    %s77 = sadd.s32 %s76, 1
    %p80 = scmp.eq.s32.totalorder %s9, 3
    %p81 = scmp.ne.s32.totalorder %s76, %s78
    %p82 = scmp.eq.s32.totalorder %s9, 0
    %p83 = por %p81, %p82
    %p84 = scmp.ne.s32.totalorder %s76, %s78
    %p85 = scmp.eq.s32.totalorder %s14, 3
    %p86 = por %p84, %p85
    %p87 = scmp.ne.s32.totalorder %s78, %s79
    %p88 = scmp.eq.s32.totalorder %s14, 0
    %p89 = por %p87, %p88
    %p90 = scmp.ne.s32.totalorder %s78, %s79
    %p91 = scmp.eq.s32.totalorder %s15, 3
    %p92 = por %p90, %p91
    %p94 = scmp.ne.s32.totalorder %s79, %s93
    %p95 = scmp.eq.s32.totalorder %s15, 0
    %p96 = por %p94, %p95
    %s97 = ssub.s32 %s16, %s28
    %s98 = ssub.s32 %s17, %s24
    %s99 = sor.u32 %s97, %s98
    %p100 = scmp.eq.s32.totalorder %s99, 0
    %s102 = sadd.s32 %s101, 1
    %s103 = scalar_select %p100, %s101, %s102
    %p106 = pneg %p100
    %p107 = scmp.eq.s32.totalorder %s9, 3
    %p108 = por %p106, %p107
    %p109 = scmp.ne.s32.totalorder %s101, %s104
    %p110 = scmp.eq.s32.totalorder %s9, 0
    %p111 = por %p109, %p110
    %p112 = scmp.ne.s32.totalorder %s101, %s104
    %p113 = scmp.eq.s32.totalorder %s14, 3
    %p114 = por %p112, %p113
    %p115 = scmp.ne.s32.totalorder %s104, %s105
    %p116 = scmp.eq.s32.totalorder %s14, 0
    %p117 = por %p115, %p116
    %p118 = scmp.ne.s32.totalorder %s104, %s105
    %p119 = scmp.eq.s32.totalorder %s15, 3
    %p120 = por %p118, %p119
    %p122 = scmp.ne.s32.totalorder %s105, %s121
    %p123 = scmp.eq.s32.totalorder %s15, 0
    %p124 = por %p122, %p123
    %p125 = scmp.le.s32.totalorder 1, %s9
    %p126 = scmp.lt.s32.totalorder %s9, 5
    %p127 = pnand %p125, %p126
    %p128 = pneg %p127
    // Predicated region
    $region9: #{vgg16_forward.6} parent=5 // pred_check
      _
    $region10: #{vgg16_forward.6} parent=5 // pred_check_branch
      %130 = sbr.rel (%p127) target = $region12
    $region11: #{vgg16_forward.6} parent=5 // pred_region
      %s131 = ssub.s32 %s9, 1
      // Predicated region
      $region13: #{vgg16_forward.6} parent=11 // pred_check
        %p132 = pneg %p68
      $region14: #{vgg16_forward.6} parent=11 // pred_check_branch
        %134 = sbr.rel (%p132) target = $region16
      $region15: #{vgg16_forward.6} parent=11 // pred_region
        _
      $region16: #{vgg16_forward.6} parent=11 // pred_fallthru
        _
      // Predicated region
      $region17: #{vgg16_forward.6} parent=11 // pred_check
        %p135 = pneg %p89
      $region18: #{vgg16_forward.6} parent=11 // pred_check_branch
        %137 = sbr.rel (%p135) target = $region20
      $region19: #{vgg16_forward.6} parent=11 // pred_region
        _
      $region20: #{vgg16_forward.6} parent=11 // pred_fallthru
        _
    $region12: #{vgg16_forward.6} parent=5 // pred_fallthru
      _
    %p138 = scmp.lt.s32.totalorder %s9, 4
    // Predicated region
    $region21: #{vgg16_forward.6} parent=5 // pred_check
      %p139 = pneg %p138
    $region22: #{vgg16_forward.6} parent=5 // pred_check_branch
      %141 = sbr.rel (%p139) target = $region24
    $region23: #{vgg16_forward.6} parent=5 // pred_region
      // Predicated region
      $region25: #{vgg16_forward.6} parent=23 // pred_check
        %p142 = pneg %p41
      $region26: #{vgg16_forward.6} parent=23 // pred_check_branch
        %144 = sbr.rel (%p142) target = $region28
      $region27: #{vgg16_forward.6} parent=23 // pred_region
        %p145 = scmp.lt.s32.totalorder %s16, 1
        %s146 = scalar_select %p145, %s16, 1
        %s147 = smul.addr %s146, 20
        %s148 = smul.addr %s147, 4
        %s149 = scalar_lea.vmem %s0, %s148
      $region28: #{vgg16_forward.6} parent=23 // pred_fallthru
        _
    $region24: #{vgg16_forward.6} parent=5 // pred_fallthru
      _
    %p150 = scmp.le.s32.totalorder 1, %s9
    %p151 = scmp.lt.s32.totalorder %s9, 5
    %p152 = pnand %p150, %p151
    %p153 = pneg %p152
    // Predicated region
    $region29: #{vgg16_forward.6} parent=5 // pred_check
      _
    $region30: #{vgg16_forward.6} parent=5 // pred_check_branch
      %155 = sbr.rel (%p152) target = $region32
    $region31: #{vgg16_forward.6} parent=5 // pred_region
      %s156 = ssub.s32 %s9, 1
      %p157 = scmp.lt.s32.totalorder %s18, 1
      %s158 = scalar_select %p157, %s18, 1
      %s159 = smul.addr %s158, 20
      %s160 = smul.addr %s159, 4
      %s161 = scalar_lea.vmem %s0, %s160
      %p162 = pneg %p47
      %p163 = pneg %p44
      %p164 = pneg %p68
      %p165 = pneg %p65
      %p166 = pneg %p89
      %p167 = pneg %p86
      %p168 = pneg %p117
      %p169 = pneg %p114
      %s170 = smul.u32 4, %s19
      %p171 = scmp.lt.s32.totalorder %s18, 1
      %s172 = scalar_select %p171, %s18, 1
      %p173 = scmp.lt.s32.totalorder %s170, 7
      %s174 = scalar_select %p173, %s170, 7
      %s175 = smul.addr %s172, 8
      %s176 = sadd.s32 %s174, %s175
      %s177 = smul.addr %s176, 4
      %s178 = scalar_lea.vmem %s3, %s177
      %p179 = scmp.lt.s32.totalorder %s18, 1
      %s180 = scalar_select %p179, %s18, 1
      %s181 = smul.addr %s180, 20
      %s182 = smul.addr %s181, 4
      %s183 = scalar_lea.vmem %s0, %s182
      %s184 = smul.u32 4, %s19
      %p185 = scmp.lt.s32.totalorder %s18, 1
      %s186 = scalar_select %p185, %s18, 1
      %p187 = scmp.lt.s32.totalorder %s184, 7
      %s188 = scalar_select %p187, %s184, 7
      %s189 = smul.addr %s186, 8
      %s190 = sadd.s32 %s188, %s189
      %s191 = smul.addr %s190, 4
      %s192 = scalar_lea.vmem %s3, %s191
      %s193 = smul.u32 4, %s19
      %s195 = smul.u32 %s19, 4
      %s196 = smul.u32 %s195, 2
      %s197 = smul.addr %s196, 4
      %s198 = scalar_lea.vmem %s183, %s197
      %v199 = vld [vmem:[%s198] sm:$0xf]
      %v200 = vld [vmem:[%s198 + $0x8] sm:$0xf]
      %v201 = vld [vmem:[%s198 + $0x10] sm:$0xf]
      %v202 = vld [vmem:[%s198 + $0x18] sm:$0xf]
      %v207 = vunpack.c.l.b16 %v199
      %v208 = vunpack.c.l.b16 %v200
      %v209 = vunpack.c.l.b16 %v201
      %v210 = vunpack.c.l.b16 %v202
      %v211 = vpack.c.b16 %v208, %v207
      %v212 = vpack.c.b16 %v210, %v209
      %vm215 = vcmask 523264
      %216 = vst.msk [vmem:[#allocation2] sm:$0xff] %vm215, %v211
      %217 = vst.msk [vmem:[#allocation2 + $0x28] sm:$0xff] %vm215, %v212
      %v218 = vld [vmem:[%s198] sm:$0xf]
      %v219 = vld [vmem:[%s198 + $0x4] sm:$0x1]
      %v220 = vld [vmem:[%s198 + $0x8] sm:$0xf]
      %v221 = vld [vmem:[%s198 + $0xc] sm:$0x1]
      %v222 = vld [vmem:[%s198 + $0x10] sm:$0xf]
      %v223 = vld [vmem:[%s198 + $0x14] sm:$0x1]
      %v224 = vld [vmem:[%s198 + $0x18] sm:$0xf]
      %v225 = vld [vmem:[%s198 + $0x1c] sm:$0x1]
      %vm226 = vsmask.f32 3328
      %vm227 = vsmask.f32 7440
      %vm228 = vmor %vm226, %vm227
      %v230 = vshrl.u32 %v218, 16
      %v232 = vrot.slane %v230, 4
      %v233 = vshll.u32 %v218, 16
      %v235 = vrot.slane %v233, 5
      %v236 = vor.u32 %v232, %v235
      %v237 = vrot.slane %v236, 4
      %v239 = vshll.u32 %v219, 16
      %v241 = vrot.slane %v239, 5
      %v242 = vsel %vm228, %v237, %v241
      %v244 = vshrl.u32 %v220, 16
      %v246 = vrot.slane %v244, 4
      %v247 = vshll.u32 %v220, 16
      %v249 = vrot.slane %v247, 5
      %v250 = vor.u32 %v246, %v249
      %v251 = vrot.slane %v250, 4
      %v253 = vshll.u32 %v221, 16
      %v255 = vrot.slane %v253, 5
      %v256 = vsel %vm228, %v251, %v255
      %v258 = vshrl.u32 %v222, 16
      %v260 = vrot.slane %v258, 4
      %v261 = vshll.u32 %v222, 16
      %v263 = vrot.slane %v261, 5
      %v264 = vor.u32 %v260, %v263
      %v265 = vrot.slane %v264, 4
      %v267 = vshll.u32 %v223, 16
      %v269 = vrot.slane %v267, 5
      %v270 = vsel %vm228, %v265, %v269
      %v272 = vshrl.u32 %v224, 16
      %v274 = vrot.slane %v272, 4
      %v275 = vshll.u32 %v224, 16
      %v277 = vrot.slane %v275, 5
      %v278 = vor.u32 %v274, %v277
      %v279 = vrot.slane %v278, 4
      %v281 = vshll.u32 %v225, 16
      %v283 = vrot.slane %v281, 5
      %v284 = vsel %vm228, %v279, %v283
      %v285 = vunpack.c.l.b16 %v242
      %v286 = vunpack.c.l.b16 %v256
      %v287 = vunpack.c.l.b16 %v270
      %v288 = vunpack.c.l.b16 %v284
      %v289 = vpack.c.b16 %v286, %v285
      %v290 = vpack.c.b16 %v288, %v287
      %291 = vrot.lane.b32.xlu0 %v289, 64
      %v292 = vpop.permute.xlu0 %291
      %293 = vrot.lane.b32.xlu0 %v290, 64
      %v294 = vpop.permute.xlu0 %293
      %vm297 = vcmask 1048064
      %298 = vst.msk [vmem:[#allocation2] sm:$0xff] %vm297, %v292
      %299 = vst.msk [vmem:[#allocation2 + $0x28] sm:$0xff] %vm297, %v294
      %v300 = vld [vmem:[%s198] sm:$0xe]
      %v301 = vld [vmem:[%s198 + $0x4] sm:$0x1]
      %v302 = vld [vmem:[%s198 + $0x8] sm:$0xe]
      %v303 = vld [vmem:[%s198 + $0xc] sm:$0x1]
      %v304 = vld [vmem:[%s198 + $0x10] sm:$0xe]
      %v305 = vld [vmem:[%s198 + $0x14] sm:$0x1]
      %v306 = vld [vmem:[%s198 + $0x18] sm:$0xe]
      %v307 = vld [vmem:[%s198 + $0x1c] sm:$0x1]
      %vm316 = vcmask 1042432
      %vm317 = vcmask 1046532
      %vm318 = vmor %vm316, %vm317
      %v319 = vrot.slane %v300, 5
      %v320 = vrot.slane %v319, 4
      %v321 = vrot.slane %v301, 5
      %v322 = vsel %vm318, %v320, %v321
      %v323 = vrot.slane %v302, 5
      %v324 = vrot.slane %v323, 4
      %v325 = vrot.slane %v303, 5
      %v326 = vsel %vm318, %v324, %v325
      %v327 = vrot.slane %v304, 5
      %v328 = vrot.slane %v327, 4
      %v329 = vrot.slane %v305, 5
      %v330 = vsel %vm318, %v328, %v329
      %v331 = vrot.slane %v306, 5
      %v332 = vrot.slane %v331, 4
      %v333 = vrot.slane %v307, 5
      %v334 = vsel %vm318, %v332, %v333
      %v335 = vunpack.c.l.b16 %v322
      %v336 = vunpack.c.l.b16 %v326
      %v337 = vunpack.c.l.b16 %v330
      %v338 = vunpack.c.l.b16 %v334
      %v339 = vpack.c.b16 %v336, %v335
      %v340 = vpack.c.b16 %v338, %v337
      %343 = vst.msk [vmem:[#allocation2 + $0x8] sm:$0xff] %vm215, %v339
      %344 = vst.msk [vmem:[#allocation2 + $0x30] sm:$0xff] %vm215, %v340
      %s345 = sadd.s32 %s195, 1
      %s346 = smul.u32 %s345, 2
      %s347 = smul.addr %s346, 4
      %s348 = scalar_lea.vmem %s183, %s347
      %v349 = vld [vmem:[%s348] sm:$0xf]
      %v350 = vld [vmem:[%s348 + $0x8] sm:$0xf]
      %v351 = vld [vmem:[%s348 + $0x10] sm:$0xf]
      %v352 = vld [vmem:[%s348 + $0x18] sm:$0xf]
      %v357 = vunpack.c.l.b16 %v349
      %v358 = vunpack.c.l.b16 %v350
      %v359 = vunpack.c.l.b16 %v351
      %v360 = vunpack.c.l.b16 %v352
      %v361 = vpack.c.b16 %v358, %v357
      %v362 = vpack.c.b16 %v360, %v359
      %363 = vrot.lane.b32.xlu0 %v361, 64
      %v364 = vpop.permute.xlu0 %363
      %365 = vrot.lane.b32.xlu0 %v362, 64
      %v366 = vpop.permute.xlu0 %365
      %369 = vst.msk [vmem:[#allocation2 + $0x8] sm:$0xff] %vm297, %v364
      %370 = vst.msk [vmem:[#allocation2 + $0x30] sm:$0xff] %vm297, %v366
      %v371 = vld [vmem:[%s348] sm:$0xf]
      %v372 = vld [vmem:[%s348 + $0x4] sm:$0x1]
      %v373 = vld [vmem:[%s348 + $0x8] sm:$0xf]
      %v374 = vld [vmem:[%s348 + $0xc] sm:$0x1]
      %v375 = vld [vmem:[%s348 + $0x10] sm:$0xf]
      %v376 = vld [vmem:[%s348 + $0x14] sm:$0x1]
      %v377 = vld [vmem:[%s348 + $0x18] sm:$0xf]
      %v378 = vld [vmem:[%s348 + $0x1c] sm:$0x1]
      %v380 = vshrl.u32 %v371, 16
      %v382 = vrot.slane %v380, 4
      %v383 = vshll.u32 %v371, 16
      %v385 = vrot.slane %v383, 5
      %v386 = vor.u32 %v382, %v385
      %v387 = vrot.slane %v386, 4
      %v389 = vshll.u32 %v372, 16
      %v391 = vrot.slane %v389, 5
      %v392 = vsel %vm228, %v387, %v391
      %v394 = vshrl.u32 %v373, 16
      %v396 = vrot.slane %v394, 4
      %v397 = vshll.u32 %v373, 16
      %v399 = vrot.slane %v397, 5
      %v400 = vor.u32 %v396, %v399
      %v401 = vrot.slane %v400, 4
      %v403 = vshll.u32 %v374, 16
      %v405 = vrot.slane %v403, 5
      %v406 = vsel %vm228, %v401, %v405
      %v408 = vshrl.u32 %v375, 16
      %v410 = vrot.slane %v408, 4
      %v411 = vshll.u32 %v375, 16
      %v413 = vrot.slane %v411, 5
      %v414 = vor.u32 %v410, %v413
      %v415 = vrot.slane %v414, 4
      %v417 = vshll.u32 %v376, 16
      %v419 = vrot.slane %v417, 5
      %v420 = vsel %vm228, %v415, %v419
      %v422 = vshrl.u32 %v377, 16
      %v424 = vrot.slane %v422, 4
      %v425 = vshll.u32 %v377, 16
      %v427 = vrot.slane %v425, 5
      %v428 = vor.u32 %v424, %v427
      %v429 = vrot.slane %v428, 4
      %v431 = vshll.u32 %v378, 16
      %v433 = vrot.slane %v431, 5
      %v434 = vsel %vm228, %v429, %v433
      %v435 = vunpack.c.l.b16 %v392
      %v436 = vunpack.c.l.b16 %v406
      %v437 = vunpack.c.l.b16 %v420
      %v438 = vunpack.c.l.b16 %v434
      %v439 = vpack.c.b16 %v436, %v435
      %v440 = vpack.c.b16 %v438, %v437
      %443 = vst.msk [vmem:[#allocation2 + $0x10] sm:$0xff] %vm215, %v439
      %444 = vst.msk [vmem:[#allocation2 + $0x38] sm:$0xff] %vm215, %v440
      %v445 = vld [vmem:[%s348] sm:$0xe]
      %v446 = vld [vmem:[%s348 + $0x4] sm:$0x1]
      %v447 = vld [vmem:[%s348 + $0x8] sm:$0xe]
      %v448 = vld [vmem:[%s348 + $0xc] sm:$0x1]
      %v449 = vld [vmem:[%s348 + $0x10] sm:$0xe]
      %v450 = vld [vmem:[%s348 + $0x14] sm:$0x1]
      %v451 = vld [vmem:[%s348 + $0x18] sm:$0xe]
      %v452 = vld [vmem:[%s348 + $0x1c] sm:$0x1]
      %v461 = vrot.slane %v445, 5
      %v462 = vrot.slane %v461, 4
      %v463 = vrot.slane %v446, 5
      %v464 = vsel %vm318, %v462, %v463
      %v465 = vrot.slane %v447, 5
      %v466 = vrot.slane %v465, 4
      %v467 = vrot.slane %v448, 5
      %v468 = vsel %vm318, %v466, %v467
      %v469 = vrot.slane %v449, 5
      %v470 = vrot.slane %v469, 4
      %v471 = vrot.slane %v450, 5
      %v472 = vsel %vm318, %v470, %v471
      %v473 = vrot.slane %v451, 5
      %v474 = vrot.slane %v473, 4
      %v475 = vrot.slane %v452, 5
      %v476 = vsel %vm318, %v474, %v475
      %v477 = vunpack.c.l.b16 %v464
      %v478 = vunpack.c.l.b16 %v468
      %v479 = vunpack.c.l.b16 %v472
      %v480 = vunpack.c.l.b16 %v476
      %v481 = vpack.c.b16 %v478, %v477
      %v482 = vpack.c.b16 %v480, %v479
      %483 = vrot.lane.b32.xlu0 %v481, 64
      %v484 = vpop.permute.xlu0 %483
      %485 = vrot.lane.b32.xlu0 %v482, 64
      %v486 = vpop.permute.xlu0 %485
      %489 = vst.msk [vmem:[#allocation2 + $0x10] sm:$0xff] %vm297, %v484
      %490 = vst.msk [vmem:[#allocation2 + $0x38] sm:$0xff] %vm297, %v486
      %s491 = sadd.s32 %s195, 2
      %s492 = smul.u32 %s491, 2
      %s493 = smul.addr %s492, 4
      %s494 = scalar_lea.vmem %s183, %s493
      %v495 = vld [vmem:[%s494] sm:$0xf]
      %v496 = vld [vmem:[%s494 + $0x8] sm:$0xf]
      %v497 = vld [vmem:[%s494 + $0x10] sm:$0xf]
      %v498 = vld [vmem:[%s494 + $0x18] sm:$0xf]
      %v503 = vunpack.c.l.b16 %v495
      %v504 = vunpack.c.l.b16 %v496
      %v505 = vunpack.c.l.b16 %v497
      %v506 = vunpack.c.l.b16 %v498
      %v507 = vpack.c.b16 %v504, %v503
      %v508 = vpack.c.b16 %v506, %v505
      %511 = vst.msk [vmem:[#allocation2 + $0x18] sm:$0xff] %vm215, %v507
      %512 = vst.msk [vmem:[#allocation2 + $0x40] sm:$0xff] %vm215, %v508
      %v513 = vld [vmem:[%s494] sm:$0xf]
      %v514 = vld [vmem:[%s494 + $0x4] sm:$0x1]
      %v515 = vld [vmem:[%s494 + $0x8] sm:$0xf]
      %v516 = vld [vmem:[%s494 + $0xc] sm:$0x1]
      %v517 = vld [vmem:[%s494 + $0x10] sm:$0xf]
      %v518 = vld [vmem:[%s494 + $0x14] sm:$0x1]
      %v519 = vld [vmem:[%s494 + $0x18] sm:$0xf]
      %v520 = vld [vmem:[%s494 + $0x1c] sm:$0x1]
      %v522 = vshrl.u32 %v513, 16
      %v524 = vrot.slane %v522, 4
      %v525 = vshll.u32 %v513, 16
      %v527 = vrot.slane %v525, 5
      %v528 = vor.u32 %v524, %v527
      %v529 = vrot.slane %v528, 4
      %v531 = vshll.u32 %v514, 16
      %v533 = vrot.slane %v531, 5
      %v534 = vsel %vm228, %v529, %v533
      %v536 = vshrl.u32 %v515, 16
      %v538 = vrot.slane %v536, 4
      %v539 = vshll.u32 %v515, 16
      %v541 = vrot.slane %v539, 5
      %v542 = vor.u32 %v538, %v541
      %v543 = vrot.slane %v542, 4
      %v545 = vshll.u32 %v516, 16
      %v547 = vrot.slane %v545, 5
      %v548 = vsel %vm228, %v543, %v547
      %v550 = vshrl.u32 %v517, 16
      %v552 = vrot.slane %v550, 4
      %v553 = vshll.u32 %v517, 16
      %v555 = vrot.slane %v553, 5
      %v556 = vor.u32 %v552, %v555
      %v557 = vrot.slane %v556, 4
      %v559 = vshll.u32 %v518, 16
      %v561 = vrot.slane %v559, 5
      %v562 = vsel %vm228, %v557, %v561
      %v564 = vshrl.u32 %v519, 16
      %v566 = vrot.slane %v564, 4
      %v567 = vshll.u32 %v519, 16
      %v569 = vrot.slane %v567, 5
      %v570 = vor.u32 %v566, %v569
      %v571 = vrot.slane %v570, 4
      %v573 = vshll.u32 %v520, 16
      %v575 = vrot.slane %v573, 5
      %v576 = vsel %vm228, %v571, %v575
      %v577 = vunpack.c.l.b16 %v534
      %v578 = vunpack.c.l.b16 %v548
      %v579 = vunpack.c.l.b16 %v562
      %v580 = vunpack.c.l.b16 %v576
      %v581 = vpack.c.b16 %v578, %v577
      %v582 = vpack.c.b16 %v580, %v579
      %583 = vrot.lane.b32.xlu0 %v581, 64
      %v584 = vpop.permute.xlu0 %583
      %585 = vrot.lane.b32.xlu0 %v582, 64
      %v586 = vpop.permute.xlu0 %585
      %589 = vst.msk [vmem:[#allocation2 + $0x18] sm:$0xff] %vm297, %v584
      %590 = vst.msk [vmem:[#allocation2 + $0x40] sm:$0xff] %vm297, %v586
      %v591 = vld [vmem:[%s494] sm:$0xe]
      %v592 = vld [vmem:[%s494 + $0x4] sm:$0x1]
      %v593 = vld [vmem:[%s494 + $0x8] sm:$0xe]
      %v594 = vld [vmem:[%s494 + $0xc] sm:$0x1]
      %v595 = vld [vmem:[%s494 + $0x10] sm:$0xe]
      %v596 = vld [vmem:[%s494 + $0x14] sm:$0x1]
      %v597 = vld [vmem:[%s494 + $0x18] sm:$0xe]
      %v598 = vld [vmem:[%s494 + $0x1c] sm:$0x1]
      %v607 = vrot.slane %v591, 5
      %v608 = vrot.slane %v607, 4
      %v609 = vrot.slane %v592, 5
      %v610 = vsel %vm318, %v608, %v609
      %v611 = vrot.slane %v593, 5
      %v612 = vrot.slane %v611, 4
      %v613 = vrot.slane %v594, 5
      %v614 = vsel %vm318, %v612, %v613
      %v615 = vrot.slane %v595, 5
      %v616 = vrot.slane %v615, 4
      %v617 = vrot.slane %v596, 5
      %v618 = vsel %vm318, %v616, %v617
      %v619 = vrot.slane %v597, 5
      %v620 = vrot.slane %v619, 4
      %v621 = vrot.slane %v598, 5
      %v622 = vsel %vm318, %v620, %v621
      %v623 = vunpack.c.l.b16 %v610
      %v624 = vunpack.c.l.b16 %v614
      %v625 = vunpack.c.l.b16 %v618
      %v626 = vunpack.c.l.b16 %v622
      %v627 = vpack.c.b16 %v624, %v623
      %v628 = vpack.c.b16 %v626, %v625
      %631 = vst.msk [vmem:[#allocation2 + $0x20] sm:$0xff] %vm215, %v627
      %632 = vst.msk [vmem:[#allocation2 + $0x48] sm:$0xff] %vm215, %v628
      %v633 = vld [vmem:[#allocation2] sm:$0xff]
      %v634 = vld [vmem:[#allocation2 + $0x8] sm:$0xff]
      %v635 = vld [vmem:[#allocation2 + $0x10] sm:$0xff]
      %v636 = vld [vmem:[#allocation2 + $0x18] sm:$0xff]
      %v637 = vld [vmem:[#allocation2 + $0x20] sm:$0xff]
      %v638 = vld [vmem:[#allocation2 + $0x28] sm:$0xff]
      %v639 = vld [vmem:[#allocation2 + $0x30] sm:$0xff]
      %v640 = vld [vmem:[#allocation2 + $0x38] sm:$0xff]
      %v641 = vld [vmem:[#allocation2 + $0x40] sm:$0xff]
      %v642 = vld [vmem:[#allocation2 + $0x48] sm:$0xff]
      %v643 = vld [vmem:[%s1] sm:$0xf]
      %v644 = vld [vmem:[%s1 + $0x4] sm:$0xf]
      %v645 = vld [vmem:[%s1 + $0x8] sm:$0xf]
      %v646 = vld [vmem:[%s1 + $0xc] sm:$0xf]
      %v647 = vld [vmem:[%s1 + $0x10] sm:$0xf]
      %v648 = vld [vmem:[%s1 + $0x14] sm:$0xf]
      %v649 = vld [vmem:[%s1 + $0x18] sm:$0xf]
      %v650 = vld [vmem:[%s1 + $0x1c] sm:$0xf]
      %v651 = vld [vmem:[%s1 + $0x20] sm:$0xf]
      %v652 = vld [vmem:[%s1 + $0x24] sm:$0xf]
      %v653 = vld [vmem:[%s1 + $0x28] sm:$0xf]
      %v654 = vld [vmem:[%s1 + $0x2c] sm:$0xf]
      %v655 = vld [vmem:[%s1 + $0x30] sm:$0xf]
      %v656 = vld [vmem:[%s1 + $0x34] sm:$0xf]
      %v657 = vld [vmem:[%s1 + $0x38] sm:$0xf]
      %v658 = vld [vmem:[%s1 + $0x3c] sm:$0xf]
      %v659 = vld [vmem:[%s1 + $0x40] sm:$0xf]
      %v660 = vld [vmem:[%s1 + $0x44] sm:$0xf]
      %v661 = vld [vmem:[%s1 + $0x48] sm:$0xf]
      %v662 = vld [vmem:[%s1 + $0x4c] sm:$0xf]
      %v663 = vld [vmem:[%s1 + $0x50] sm:$0xf]
      %v664 = vld [vmem:[%s1 + $0x54] sm:$0xf]
      %v665 = vld [vmem:[%s1 + $0x58] sm:$0xf]
      %v666 = vld [vmem:[%s1 + $0x5c] sm:$0xf]
      %v667 = vld [vmem:[%s1 + $0x60] sm:$0xf]
      %v668 = vld [vmem:[%s1 + $0x64] sm:$0xf]
      %v669 = vld [vmem:[%s1 + $0x68] sm:$0xf]
      %v670 = vld [vmem:[%s1 + $0x6c] sm:$0xf]
      %v671 = vld [vmem:[%s1 + $0x70] sm:$0xf]
      %v672 = vld [vmem:[%s1 + $0x74] sm:$0xf]
      %v673 = vld [vmem:[%s1 + $0x78] sm:$0xf]
      %v674 = vld [vmem:[%s1 + $0x7c] sm:$0xf]
      %v675 = vld [vmem:[%s1 + $0x80] sm:$0xf]
      %v676 = vld [vmem:[%s1 + $0x84] sm:$0xf]
      %v677 = vld [vmem:[%s1 + $0x88] sm:$0xf]
      %v678 = vld [vmem:[%s1 + $0x8c] sm:$0xf]
      %v679 = vld [vmem:[%s1 + $0x90] sm:$0xf]
      %v680 = vld [vmem:[%s1 + $0x94] sm:$0xf]
      %v681 = vld [vmem:[%s1 + $0x98] sm:$0xf]
      %v682 = vld [vmem:[%s1 + $0x9c] sm:$0xf]
      %v683 = vld [vmem:[%s1 + $0xa0] sm:$0xf]
      %v684 = vld [vmem:[%s1 + $0xa4] sm:$0xf]
      %v685 = vld [vmem:[%s1 + $0xa8] sm:$0xf]
      %v686 = vld [vmem:[%s1 + $0xac] sm:$0xf]
      %v687 = vld [vmem:[%s1 + $0xb0] sm:$0xf]
      %v688 = vld [vmem:[%s1 + $0xb4] sm:$0xf]
      %v689 = vld [vmem:[%s1 + $0xb8] sm:$0xf]
      %v690 = vld [vmem:[%s1 + $0xbc] sm:$0xf]
      %v691 = vld [vmem:[%s1 + $0xc0] sm:$0xf]
      %v692 = vld [vmem:[%s1 + $0xc4] sm:$0xf]
      %v693 = vld [vmem:[%s1 + $0xc8] sm:$0xf]
      %v694 = vld [vmem:[%s1 + $0xcc] sm:$0xf]
      %v695 = vld [vmem:[%s1 + $0xd0] sm:$0xf]
      %v696 = vld [vmem:[%s1 + $0xd4] sm:$0xf]
      %v697 = vld [vmem:[%s1 + $0xd8] sm:$0xf]
      %v698 = vld [vmem:[%s1 + $0xdc] sm:$0xf]
      %v699 = vld [vmem:[%s1 + $0xe0] sm:$0xf]
      %v700 = vld [vmem:[%s1 + $0xe4] sm:$0xf]
      %v701 = vld [vmem:[%s1 + $0xe8] sm:$0xf]
      %v702 = vld [vmem:[%s1 + $0xec] sm:$0xf]
      %v703 = vld [vmem:[%s1 + $0xf0] sm:$0xf]
      %v704 = vld [vmem:[%s1 + $0xf4] sm:$0xf]
      %v705 = vld [vmem:[%s1 + $0xf8] sm:$0xf]
      %v706 = vld [vmem:[%s1 + $0xfc] sm:$0xf]
      %v707 = vld [vmem:[%s1 + $0x100] sm:$0xf]
      %v708 = vld [vmem:[%s1 + $0x104] sm:$0xf]
      %v709 = vld [vmem:[%s1 + $0x108] sm:$0xf]
      %v710 = vld [vmem:[%s1 + $0x10c] sm:$0xf]
      %v711 = vld [vmem:[%s1 + $0x110] sm:$0xf]
      %v712 = vld [vmem:[%s1 + $0x114] sm:$0xf]
      %v713 = vld [vmem:[%s1 + $0x118] sm:$0xf]
      %v714 = vld [vmem:[%s1 + $0x11c] sm:$0xf]
      %v715 = vld [vmem:[%s2] sm:$0x1]
      %v717 = vlaneseq
      %v718 = vshrl.u32 %v717, 7
      %v719 = vsub.s32 0, %v718
      %v720 = vrot.slane %v715, %v719
      %v794 = vunpack.c.l.b16 %v643
      %v795 = vunpack.c.l.b16 %v644
      %v796 = vunpack.c.l.b16 %v645
      %v797 = vunpack.c.l.b16 %v646
      %v798 = vunpack.c.l.b16 %v647
      %v799 = vunpack.c.l.b16 %v648
      %v800 = vunpack.c.l.b16 %v649
      %v801 = vunpack.c.l.b16 %v650
      %v802 = vunpack.c.l.b16 %v651
      %v803 = vunpack.c.l.b16 %v652
      %v804 = vunpack.c.l.b16 %v653
      %v805 = vunpack.c.l.b16 %v654
      %v806 = vunpack.c.l.b16 %v655
      %v807 = vunpack.c.l.b16 %v656
      %v808 = vunpack.c.l.b16 %v657
      %v809 = vunpack.c.l.b16 %v658
      %v810 = vunpack.c.l.b16 %v659
      %v811 = vunpack.c.l.b16 %v660
      %v812 = vunpack.c.l.b16 %v661
      %v813 = vunpack.c.l.b16 %v662
      %v814 = vunpack.c.l.b16 %v663
      %v815 = vunpack.c.l.b16 %v664
      %v816 = vunpack.c.l.b16 %v665
      %v817 = vunpack.c.l.b16 %v666
      %v818 = vunpack.c.l.b16 %v667
      %v819 = vunpack.c.l.b16 %v668
      %v820 = vunpack.c.l.b16 %v669
      %v821 = vunpack.c.l.b16 %v670
      %v822 = vunpack.c.l.b16 %v671
      %v823 = vunpack.c.l.b16 %v672
      %v824 = vunpack.c.l.b16 %v673
      %v825 = vunpack.c.l.b16 %v674
      %v826 = vunpack.c.l.b16 %v675
      %v827 = vunpack.c.l.b16 %v676
      %v828 = vunpack.c.l.b16 %v677
      %v829 = vunpack.c.l.b16 %v678
      %v830 = vunpack.c.l.b16 %v679
      %v831 = vunpack.c.l.b16 %v680
      %v832 = vunpack.c.l.b16 %v681
      %v833 = vunpack.c.l.b16 %v682
      %v834 = vunpack.c.l.b16 %v683
      %v835 = vunpack.c.l.b16 %v684
      %v836 = vunpack.c.l.b16 %v685
      %v837 = vunpack.c.l.b16 %v686
      %v838 = vunpack.c.l.b16 %v687
      %v839 = vunpack.c.l.b16 %v688
      %v840 = vunpack.c.l.b16 %v689
      %v841 = vunpack.c.l.b16 %v690
      %v842 = vunpack.c.l.b16 %v691
      %v843 = vunpack.c.l.b16 %v692
      %v844 = vunpack.c.l.b16 %v693
      %v845 = vunpack.c.l.b16 %v694
      %v846 = vunpack.c.l.b16 %v695
      %v847 = vunpack.c.l.b16 %v696
      %v848 = vunpack.c.l.b16 %v697
      %v849 = vunpack.c.l.b16 %v698
      %v850 = vunpack.c.l.b16 %v699
      %v851 = vunpack.c.l.b16 %v700
      %v852 = vunpack.c.l.b16 %v701
      %v853 = vunpack.c.l.b16 %v702
      %v854 = vunpack.c.l.b16 %v703
      %v855 = vunpack.c.l.b16 %v704
      %v856 = vunpack.c.l.b16 %v705
      %v857 = vunpack.c.l.b16 %v706
      %v858 = vunpack.c.l.b16 %v707
      %v859 = vunpack.c.l.b16 %v708
      %v860 = vunpack.c.l.b16 %v709
      %v861 = vunpack.c.l.b16 %v710
      %v862 = vunpack.c.l.b16 %v711
      %v863 = vunpack.c.l.b16 %v712
      %v864 = vunpack.c.l.b16 %v713
      %v865 = vunpack.c.l.b16 %v714
      %v866 = vpack.c.b16 %v795, %v794
      %v867 = vpack.c.b16 %v797, %v796
      %v868 = vpack.c.b16 %v799, %v798
      %v869 = vpack.c.b16 %v801, %v800
      %v870 = vpack.c.b16 %v803, %v802
      %v871 = vpack.c.b16 %v805, %v804
      %v872 = vpack.c.b16 %v807, %v806
      %v873 = vpack.c.b16 %v809, %v808
      %v874 = vpack.c.b16 %v811, %v810
      %v875 = vpack.c.b16 %v813, %v812
      %v876 = vpack.c.b16 %v815, %v814
      %v877 = vpack.c.b16 %v817, %v816
      %v878 = vpack.c.b16 %v819, %v818
      %v879 = vpack.c.b16 %v821, %v820
      %v880 = vpack.c.b16 %v823, %v822
      %v881 = vpack.c.b16 %v825, %v824
      %v882 = vpack.c.b16 %v827, %v826
      %v883 = vpack.c.b16 %v829, %v828
      %v884 = vpack.c.b16 %v831, %v830
      %v885 = vpack.c.b16 %v833, %v832
      %v886 = vpack.c.b16 %v835, %v834
      %v887 = vpack.c.b16 %v837, %v836
      %v888 = vpack.c.b16 %v839, %v838
      %v889 = vpack.c.b16 %v841, %v840
      %v890 = vpack.c.b16 %v843, %v842
      %v891 = vpack.c.b16 %v845, %v844
      %v892 = vpack.c.b16 %v847, %v846
      %v893 = vpack.c.b16 %v849, %v848
      %v894 = vpack.c.b16 %v851, %v850
      %v895 = vpack.c.b16 %v853, %v852
      %v896 = vpack.c.b16 %v855, %v854
      %v897 = vpack.c.b16 %v857, %v856
      %v898 = vpack.c.b16 %v859, %v858
      %v899 = vpack.c.b16 %v861, %v860
      %v900 = vpack.c.b16 %v863, %v862
      %v901 = vpack.c.b16 %v865, %v864
      %v939 = vsel %vm215, %v637, 0
      %v942 = vsel %vm215, %v642, 0
      %944 = vmatprep.subr.bf16.mxu0 0
      %945 = vmatpush1.bf16.msra.mxu0 %v866
      %946 = vmatprep.subr.bf16.mxu0 0
      %947 = vmatpush1.bf16.msra.mxu0 %v867
      %948 = vmatprep.subr.bf16.mxu0 0
      %949 = vmatpush1.bf16.msra.mxu0 %v868
      %950 = vmatprep.subr.bf16.mxu0 0
      %951 = vmatpush1.bf16.msra.mxu0 %v869
      %952 = vmatprep.subr.bf16.mxu0 0
      %953 = vmatpush1.bf16.msra.mxu0 %v870
      %954 = vmatprep.subr.bf16.mxu0 0
      %955 = vmatpush1.bf16.msra.mxu0 %v871
      %956 = vmatprep.subr.bf16.mxu0 0
      %957 = vmatpush1.bf16.msra.mxu0 %v872
      %958 = vmatprep.subr.bf16.mxu0 0
      %959 = vmatpush1.bf16.msra.mxu0 %v873
      %960 = vmatprep.subr.bf16.mxu0 0
      %961 = vmatpush1.bf16.msra.mxu0 %v874
      %962 = vmatprep.subr.bf16.mxu0 0
      %963 = vmatpush1.bf16.msra.mxu0 %v875
      %964 = vmatprep.subr.bf16.mxu0 0
      %965 = vmatpush1.bf16.msra.mxu0 %v876
      %966 = vmatprep.subr.bf16.mxu0 0
      %967 = vmatpush1.bf16.msra.mxu0 %v877
      %968 = vmatprep.subr.bf16.mxu0 0
      %969 = vmatpush1.bf16.msra.mxu0 %v878
      %970 = vmatprep.subr.bf16.mxu0 0
      %971 = vmatpush1.bf16.msra.mxu0 %v879
      %972 = vmatprep.subr.bf16.mxu0 0
      %973 = vmatpush1.bf16.msra.mxu0 %v880
      %974 = vmatprep.subr.bf16.mxu0 0
      %975 = vmatpush1.bf16.msra.mxu0 %v881
      %976 = vmatprep.mubr.bf16.mxu0 %v634
      %977 = vmatmul.mubr.bf16.gmra.mrb[0].mxu0 %v633
      %v978 = vpop.f32.mrb[0].mxu0
      %v979 = vadd.f32 %v720, %v978
      %v980 = vpop.f32.mrb[0].mxu0
      %v981 = vpop.f32.mrb[0].mxu0
      %v982 = vadd.f32 %v720, %v981
      %v983 = vpop.f32.mrb[0].mxu0
      %984 = vmatprep.mubr.bf16.mxu0 %v639
      %985 = vmatmul.mubr.bf16.gmra.mrb[0].mxu0 %v638
      %v986 = vpop.f32.mrb[0].mxu0
      %v987 = vadd.f32 %v720, %v986
      %v988 = vpop.f32.mrb[0].mxu0
      %v989 = vpop.f32.mrb[0].mxu0
      %v990 = vadd.f32 %v720, %v989
      %v991 = vpop.f32.mrb[0].mxu0
      %992 = vdwg.mxu0
      %993 = vmatprep.subr.bf16.mxu0 0
      %994 = vmatpush1.bf16.msra.mxu0 %v882
      %995 = vmatprep.subr.bf16.mxu0 0
      %996 = vmatpush1.bf16.msra.mxu0 %v883
      %997 = vmatprep.subr.bf16.mxu0 0
      %998 = vmatpush1.bf16.msra.mxu0 %v884
      %999 = vmatprep.subr.bf16.mxu0 0
      %1000 = vmatpush1.bf16.msra.mxu0 %v885
      %1001 = vmatprep.subr.bf16.mxu0 0
      %1002 = vmatpush1.bf16.msra.mxu0 %v886
      %1003 = vmatprep.subr.bf16.mxu0 0
      %1004 = vmatpush1.bf16.msra.mxu0 %v887
      %1005 = vmatprep.subr.bf16.mxu0 0
      %1006 = vmatpush1.bf16.msra.mxu0 %v888
      %1007 = vmatprep.subr.bf16.mxu0 0
      %1008 = vmatpush1.bf16.msra.mxu0 %v889
      %1009 = vmatprep.subr.bf16.mxu0 0
      %1010 = vmatpush1.bf16.msra.mxu0 %v890
      %1011 = vmatprep.subr.bf16.mxu0 0
      %1012 = vmatpush1.bf16.msra.mxu0 %v891
      %1013 = vmatprep.subr.bf16.mxu0 0
      %1014 = vmatpush1.bf16.msra.mxu0 %v892
      %1015 = vmatprep.subr.bf16.mxu0 0
      %1016 = vmatpush1.bf16.msra.mxu0 %v893
      %1017 = vmatprep.subr.bf16.mxu0 0
      %1018 = vmatpush1.bf16.msra.mxu0 %v894
      %1019 = vmatprep.subr.bf16.mxu0 0
      %1020 = vmatpush1.bf16.msra.mxu0 %v895
      %1021 = vmatprep.subr.bf16.mxu0 0
      %1022 = vmatpush1.bf16.msra.mxu0 %v896
      %1023 = vmatprep.subr.bf16.mxu0 0
      %1024 = vmatpush1.bf16.msra.mxu0 %v897
      %1025 = vmatprep.mubr.bf16.mxu0 %v636
      %1026 = vmatmul.mubr.bf16.gmra.mrb[0].mxu0 %v635
      %v1027 = vpop.f32.mrb[0].mxu0
      %v1028 = vadd.f32 %v979, %v1027
      %v1029 = vpop.f32.mrb[0].mxu0
      %v1030 = vpop.f32.mrb[0].mxu0
      %v1031 = vadd.f32 %v982, %v1030
      %v1032 = vpop.f32.mrb[0].mxu0
      %1033 = vmatprep.mubr.bf16.mxu0 %v641
      %1034 = vmatmul.mubr.bf16.gmra.mrb[0].mxu0 %v640
      %v1035 = vpop.f32.mrb[0].mxu0
      %v1036 = vadd.f32 %v987, %v1035
      %v1037 = vpop.f32.mrb[0].mxu0
      %v1038 = vpop.f32.mrb[0].mxu0
      %v1039 = vadd.f32 %v990, %v1038
      %v1040 = vpop.f32.mrb[0].mxu0
      %1041 = vdwg.mxu0
      %1042 = vmatprep.subr.bf16.mxu0 0
      %1043 = vmatpush1.bf16.msra.mxu0 %v898
      %1044 = vmatprep.subr.bf16.mxu0 0
      %1045 = vmatpush1.bf16.msra.mxu0 %v899
      %1046 = vmatprep.subr.bf16.mxu0 0
      %1047 = vmatpush1.bf16.msra.mxu0 %v900
      %1048 = vmatprep.subr.bf16.mxu0 0
      %1049 = vmatpush1.bf16.msra.mxu0 %v901
      %1050 = vmatprep.subr.bf16.mxu0 0
      %1051 = vmatpush1.bf16.msra.mxu0 0
      %1052 = vmatprep.subr.bf16.mxu0 0
      %1053 = vmatpush1.bf16.msra.mxu0 0
      %1054 = vmatprep.subr.bf16.mxu0 0
      %1055 = vmatpush1.bf16.msra.mxu0 0
      %1056 = vmatprep.subr.bf16.mxu0 0
      %1057 = vmatpush1.bf16.msra.mxu0 0
      %1058 = vmatprep.subr.bf16.mxu0 0
      %1059 = vmatpush1.bf16.msra.mxu0 0
      %1060 = vmatprep.subr.bf16.mxu0 0
      %1061 = vmatpush1.bf16.msra.mxu0 0
      %1062 = vmatprep.subr.bf16.mxu0 0
      %1063 = vmatpush1.bf16.msra.mxu0 0
      %1064 = vmatprep.subr.bf16.mxu0 0
      %1065 = vmatpush1.bf16.msra.mxu0 0
      %1066 = vmatprep.subr.bf16.mxu0 0
      %1067 = vmatpush1.bf16.msra.mxu0 0
      %1068 = vmatprep.subr.bf16.mxu0 0
      %1069 = vmatpush1.bf16.msra.mxu0 0
      %1070 = vmatprep.subr.bf16.mxu0 0
      %1071 = vmatpush1.bf16.msra.mxu0 0
      %1072 = vmatprep.subr.bf16.mxu0 0
      %1073 = vmatpush1.bf16.msra.mxu0 0
      %1074 = vmatprep.mubr.bf16.mxu0 0
      %1075 = vmatmul.mubr.bf16.gmra.mrb[0].mxu0 %v939
      %v1076 = vpop.f32.mrb[0].mxu0
      %v1077 = vadd.f32 %v1028, %v1076
      %v1078 = vpop.f32.mrb[0].mxu0
      %v1079 = vpop.f32.mrb[0].mxu0
      %v1080 = vadd.f32 %v1031, %v1079
      %v1081 = vpop.f32.mrb[0].mxu0
      %1082 = vmatprep.mubr.bf16.mxu0 0
      %1083 = vmatmul.mubr.bf16.gmra.mrb[0].mxu0 %v942
      %v1084 = vpop.f32.mrb[0].mxu0
      %v1085 = vadd.f32 %v1036, %v1084
      %v1086 = vpop.f32.mrb[0].mxu0
      %v1087 = vpop.f32.mrb[0].mxu0
      %v1088 = vadd.f32 %v1039, %v1087
      %v1089 = vpop.f32.mrb[0].mxu0
      %1090 = vdwg.mxu0
      %v1091 = vmax.f32 %v1077, 0.0
      %v1092 = vmax.f32 %v1080, 0.0
      %v1093 = vmax.f32 %v1085, 0.0
      %v1094 = vmax.f32 %v1088, 0.0
      %v1095 = vpack.c.bf16 %v1091, %v1091
      %v1096 = vpack.c.bf16 %v1092, %v1092
      %v1097 = vpack.c.bf16 %v1093, %v1093
      %v1098 = vpack.c.bf16 %v1094, %v1094
      %1099 = vst [vmem:[%s192] sm:$0xf] %v1095
      %1100 = vst [vmem:[%s192 + $0x4] sm:$0xf] %v1096
      %1101 = vst [vmem:[%s192 + $0x8] sm:$0xf] %v1097
      %1102 = vst [vmem:[%s192 + $0xc] sm:$0xf] %v1098
      %s1103 = smul.u32 4, %s19
      %p1104 = scmp.lt.s32.totalorder %s18, 1
      %s1105 = scalar_select %p1104, %s18, 1
      %p1106 = scmp.lt.s32.totalorder %s1103, 7
      %s1107 = scalar_select %p1106, %s1103, 7
      %s1108 = smul.addr %s1105, 8
      %s1109 = sadd.s32 %s1107, %s1108
      %s1110 = smul.addr %s1109, 4
      %s1111 = scalar_lea.vmem %s3, %s1110
      // Predicated region
      $region33: #{vgg16_forward.6} parent=31 // pred_check
        %p1112 = pneg %p114
      $region34: #{vgg16_forward.6} parent=31 // pred_check_branch
        %1114 = sbr.rel (%p1112) target = $region36
      $region35: #{vgg16_forward.6} parent=31 // pred_region
        %s1115 = smul.u32 4, %s19
      $region36: #{vgg16_forward.6} parent=31 // pred_fallthru
        _
    $region32: #{vgg16_forward.6} parent=5 // pred_fallthru
      _
    %p1116 = scmp.le.s32.totalorder 2, %s9
    // Predicated region
    $region37: #{vgg16_forward.6} parent=5 // pred_check
      %p1117 = pneg %p1116
    $region38: #{vgg16_forward.6} parent=5 // pred_check_branch
      %1119 = sbr.rel (%p1117) target = $region40
    $region39: #{vgg16_forward.6} parent=5 // pred_region
      %s1120 = ssub.s32 %s9, 2
      // Predicated region
      $region41: #{vgg16_forward.6} parent=39 // pred_check
        %p1121 = pneg %p120
      $region42: #{vgg16_forward.6} parent=39 // pred_check_branch
        %1123 = sbr.rel (%p1121) target = $region44
      $region43: #{vgg16_forward.6} parent=39 // pred_region
        %s1124 = smul.u32 4, %s21
        %p1125 = scmp.lt.s32.totalorder %s20, 1
        %s1126 = scalar_select %p1125, %s20, 1
        %p1127 = scmp.lt.s32.totalorder %s1124, 7
        %s1128 = scalar_select %p1127, %s1124, 7
        %s1129 = smul.addr %s1126, 8
        %s1130 = sadd.s32 %s1128, %s1129
        %s1131 = smul.addr %s1130, 4
        %s1132 = scalar_lea.vmem %s3, %s1131
      $region44: #{vgg16_forward.6} parent=39 // pred_fallthru
        _
    $region40: #{vgg16_forward.6} parent=5 // pred_fallthru
      _
  $region6: #{vgg16_forward.6} parent=0 // loop_footer
    %s13 = sadd.s32 1, %s9
  $region7: #{vgg16_forward.6} parent=0 // loop_footer_branch
    %8 = sbr.rel target = $region3
  $region8: #{vgg16_forward.6} parent=0 // loop_exit
    _

// kernel: vgg16_forward.7
$region0: #{vgg16_forward.7}
  #allocation0 [shape = 'u32[]', space=smem, size = 0x4, offset = 0x4, fixed_abs, tag = 'smem constant byte address 0x4 - core index']
  #allocation1 [shape = 'u32[144,128]{1,0:T(1,128)}', space=vmem, size = 0x12000, scoped, tag = 'internal scratch']
  #allocation2 [shape = 'bf16[32,1152]{1,0:T(16,128)(2,1)}', space=vmem, size = 0x12000, scoped, tag = 'scratch operand']
  %s0 = inlined_call_operand.vmem [shape: bf16[2,10,10,128], index: 0, kind: input, shape index: {}]
  %s1 = inlined_call_operand.vmem [shape: bf16[1152,128], index: 1, kind: input, shape index: {}]
  %s2 = inlined_call_operand.vmem [shape: f32[1,128], index: 2, kind: input, shape index: {}]
  %s3 = inlined_call_operand.hbm [shape: f32[2,8,8,128], index: 3, kind: output, shape index: {}]
  %s4 = sld [smem:[#allocation0]]
  $region45: #{vgg16_forward.7} parent=0
    _
  %s6 = ssub.s32 1, %s4
  %s7 = scalar_select 0, %s6, %s4
  $region1: #{vgg16_forward.7} parent=0
    #allocation3 [shape = 'u8[32768]{0}', space=vmem, size = 0x8000, scoped, tag = 'output window, operand 0']
    #allocation4 [shape = 's32[2]{0}', space=sflag, size = 0x8, scoped, tag = 'scoped memory for vgg16_forward.7']
    %8 = vsyncpa [#allocation4], 0
    %s9 = scalar_lea.sflag [#allocation4], 1
    %10 = vsyncpa %s9, 0
    loop: start=0, step=1, limit=6
    $region2: #{vgg16_forward.7} parent=1 // loop_pre_header
      _
    $region3: #{vgg16_forward.7} parent=1 // loop_header
      %s12 = sphi 0, %s16
      %p13 = scmp.ge.s32.totalorder %s12, 6
      %s19 = sphi 0, %s31
      %s20 = sphi 0, %s27
      %s21 = sphi 0, %s19
      %s22 = sphi 0, %s20
      %s23 = sphi 0, %s21
      %s24 = sphi 0, %s22
      %s34 = sphi 0, %s36
      %s37 = sphi 0, %s34
      %s38 = sphi 0, %s37
      %s54 = sphi 0, %s38
      %s58 = sphi 0, %s58
      %s60 = sphi 0, %s58
      %s61 = sphi 0, %s60
      %s75 = sphi 0, %s61
      %s79 = sphi 0, %s79
      %s81 = sphi 0, %s79
      %s82 = sphi 0, %s81
      %s96 = sphi 0, %s82
      %s104 = sphi 0, %s106
      %s107 = sphi 0, %s104
      %s108 = sphi 0, %s107
      %s124 = sphi 0, %s108
    $region4: #{vgg16_forward.7} parent=1 // loop_header_branch
      %15 = sbr.rel (%p13) target = $region8
    $region5: #{vgg16_forward.7} parent=1 // loop_body
      %s17 = ssub.s32 %s12, 1
      %s18 = ssub.s32 %s12, 2
      %s25 = sadd.s32 1, %s20
      %p26 = scmp.ge.s32.totalorder %s25, 2
      %s27 = scalar_select %p26, 0, %s25
      %s28 = sadd.s32 1, %s19
      %s29 = scalar_select %p26, %s28, %s19
      %p30 = scmp.ge.s32.totalorder %s29, 2
      %s31 = scalar_select %p30, 0, %s29
      %s32 = ssub.s32 %s19, %s31
      %p33 = scmp.eq.s32.totalorder %s32, 0
      %s35 = sadd.s32 %s34, 1
      %s36 = scalar_select %p33, %s34, %s35
      %p39 = pneg %p33
      %p40 = scmp.eq.s32.totalorder %s12, 3
      %p41 = por %p39, %p40
      %p42 = scmp.ne.s32.totalorder %s34, %s37
      %p43 = scmp.eq.s32.totalorder %s12, 0
      %p44 = por %p42, %p43
      %p45 = scmp.ne.s32.totalorder %s34, %s37
      %p46 = scmp.eq.s32.totalorder %s17, 3
      %p47 = por %p45, %p46
      %p48 = scmp.ne.s32.totalorder %s37, %s38
      %p49 = scmp.eq.s32.totalorder %s17, 0
      %p50 = por %p48, %p49
      %p51 = scmp.ne.s32.totalorder %s37, %s38
      %p52 = scmp.eq.s32.totalorder %s18, 3
      %p53 = por %p51, %p52
      %p55 = scmp.ne.s32.totalorder %s38, %s54
      %p56 = scmp.eq.s32.totalorder %s18, 0
      %p57 = por %p55, %p56
      %s59 = sadd.s32 %s58, 1
      %p62 = scmp.eq.s32.totalorder %s12, 3
      %p63 = scmp.ne.s32.totalorder %s58, %s60
      %p64 = scmp.eq.s32.totalorder %s12, 0
      %p65 = por %p63, %p64
      %p66 = scmp.ne.s32.totalorder %s58, %s60
      %p67 = scmp.eq.s32.totalorder %s17, 3
      %p68 = por %p66, %p67
      %p69 = scmp.ne.s32.totalorder %s60, %s61
      %p70 = scmp.eq.s32.totalorder %s17, 0
      %p71 = por %p69, %p70
      %p72 = scmp.ne.s32.totalorder %s60, %s61
      %p73 = scmp.eq.s32.totalorder %s18, 3
      %p74 = por %p72, %p73
      %p76 = scmp.ne.s32.totalorder %s61, %s75
      %p77 = scmp.eq.s32.totalorder %s18, 0
      %p78 = por %p76, %p77
      %s80 = sadd.s32 %s79, 1
      %p83 = scmp.eq.s32.totalorder %s12, 3
      %p84 = scmp.ne.s32.totalorder %s79, %s81
      %p85 = scmp.eq.s32.totalorder %s12, 0
      %p86 = por %p84, %p85
      %p87 = scmp.ne.s32.totalorder %s79, %s81
      %p88 = scmp.eq.s32.totalorder %s17, 3
      %p89 = por %p87, %p88
      %p90 = scmp.ne.s32.totalorder %s81, %s82
      %p91 = scmp.eq.s32.totalorder %s17, 0
      %p92 = por %p90, %p91
      %p93 = scmp.ne.s32.totalorder %s81, %s82
      %p94 = scmp.eq.s32.totalorder %s18, 3
      %p95 = por %p93, %p94
      %p97 = scmp.ne.s32.totalorder %s82, %s96
      %p98 = scmp.eq.s32.totalorder %s18, 0
      %p99 = por %p97, %p98
      %s100 = ssub.s32 %s19, %s31
      %s101 = ssub.s32 %s20, %s27
      %s102 = sor.u32 %s100, %s101
      %p103 = scmp.eq.s32.totalorder %s102, 0
      %s105 = sadd.s32 %s104, 1
      %s106 = scalar_select %p103, %s104, %s105
      %p109 = pneg %p103
      %p110 = scmp.eq.s32.totalorder %s12, 3
      %p111 = por %p109, %p110
      %p112 = scmp.ne.s32.totalorder %s104, %s107
      %p113 = scmp.eq.s32.totalorder %s12, 0
      %p114 = por %p112, %p113
      %p115 = scmp.ne.s32.totalorder %s104, %s107
      %p116 = scmp.eq.s32.totalorder %s17, 3
      %p117 = por %p115, %p116
      %p118 = scmp.ne.s32.totalorder %s107, %s108
      %p119 = scmp.eq.s32.totalorder %s17, 0
      %p120 = por %p118, %p119
      %p121 = scmp.ne.s32.totalorder %s107, %s108
      %p122 = scmp.eq.s32.totalorder %s18, 3
      %p123 = por %p121, %p122
      %p125 = scmp.ne.s32.totalorder %s108, %s124
      %p126 = scmp.eq.s32.totalorder %s18, 0
      %p127 = por %p125, %p126
      %p128 = scmp.le.s32.totalorder 1, %s12
      %p129 = scmp.lt.s32.totalorder %s12, 5
      %p130 = pnand %p128, %p129
      %p131 = pneg %p130
      // Predicated region
      $region9: #{vgg16_forward.7} parent=5 // pred_check
        _
      $region10: #{vgg16_forward.7} parent=5 // pred_check_branch
        %133 = sbr.rel (%p130) target = $region12
      $region11: #{vgg16_forward.7} parent=5 // pred_region
        %s134 = ssub.s32 %s12, 1
        // Predicated region
        $region13: #{vgg16_forward.7} parent=11 // pred_check
          %p135 = pneg %p71
        $region14: #{vgg16_forward.7} parent=11 // pred_check_branch
          %137 = sbr.rel (%p135) target = $region16
        $region15: #{vgg16_forward.7} parent=11 // pred_region
          _
        $region16: #{vgg16_forward.7} parent=11 // pred_fallthru
          _
        // Predicated region
        $region17: #{vgg16_forward.7} parent=11 // pred_check
          %p138 = pneg %p92
        $region18: #{vgg16_forward.7} parent=11 // pred_check_branch
          %140 = sbr.rel (%p138) target = $region20
        $region19: #{vgg16_forward.7} parent=11 // pred_region
          _
        $region20: #{vgg16_forward.7} parent=11 // pred_fallthru
          _
      $region12: #{vgg16_forward.7} parent=5 // pred_fallthru
        _
      %p141 = scmp.lt.s32.totalorder %s12, 4
      // Predicated region
      $region21: #{vgg16_forward.7} parent=5 // pred_check
        %p142 = pneg %p141
      $region22: #{vgg16_forward.7} parent=5 // pred_check_branch
        %144 = sbr.rel (%p142) target = $region24
      $region23: #{vgg16_forward.7} parent=5 // pred_region
        // Predicated region
        $region25: #{vgg16_forward.7} parent=23 // pred_check
          %p145 = pneg %p44
        $region26: #{vgg16_forward.7} parent=23 // pred_check_branch
          %147 = sbr.rel (%p145) target = $region28
        $region27: #{vgg16_forward.7} parent=23 // pred_region
          %p148 = scmp.lt.s32.totalorder %s19, 1
          %s149 = scalar_select %p148, %s19, 1
          %s150 = smul.addr %s149, 20
          %s151 = smul.addr %s150, 4
          %s152 = scalar_lea.vmem %s0, %s151
        $region28: #{vgg16_forward.7} parent=23 // pred_fallthru
          _
      $region24: #{vgg16_forward.7} parent=5 // pred_fallthru
        _
      %p153 = scmp.le.s32.totalorder 1, %s12
      %p154 = scmp.lt.s32.totalorder %s12, 5
      %p155 = pnand %p153, %p154
      %p156 = pneg %p155
      // Predicated region
      $region29: #{vgg16_forward.7} parent=5 // pred_check
        _
      $region30: #{vgg16_forward.7} parent=5 // pred_check_branch
        %158 = sbr.rel (%p155) target = $region32
      $region31: #{vgg16_forward.7} parent=5 // pred_region
        %s159 = ssub.s32 %s12, 1
        %p160 = scmp.lt.s32.totalorder %s21, 1
        %s161 = scalar_select %p160, %s21, 1
        %s162 = smul.addr %s161, 20
        %s163 = smul.addr %s162, 4
        %s164 = scalar_lea.vmem %s0, %s163
        %p165 = pneg %p50
        %p166 = pneg %p47
        %p167 = pneg %p71
        %p168 = pneg %p68
        %p169 = pneg %p92
        %p170 = pneg %p89
        %p171 = pneg %p120
        %p172 = pneg %p117
        %s173 = sand.u32 %s107, 1
        %s174 = scalar_lea.sflag [#allocation4], %s173
        %s175 = sand.u32 %s107, 1
        %s176 = smul.addr %s175, 32
        %s177 = scalar_lea.vmem [#allocation3], %s176
        %p178 = scmp.lt.s32.totalorder %s21, 1
        %s179 = scalar_select %p178, %s21, 1
        %s180 = smul.addr %s179, 20
        %s181 = smul.addr %s180, 4
        %s182 = scalar_lea.vmem %s0, %s181
        %s183 = smul.u32 4, %s22
        %s185 = smul.u32 %s22, 4
        %s186 = smul.u32 %s185, 2
        %s187 = smul.addr %s186, 4
        %s188 = scalar_lea.vmem %s182, %s187
        %v189 = vld [vmem:[%s188] sm:$0xf]
        %v190 = vld [vmem:[%s188 + $0x8] sm:$0xf]
        %v191 = vld [vmem:[%s188 + $0x10] sm:$0xf]
        %v192 = vld [vmem:[%s188 + $0x18] sm:$0xf]
        %v197 = vunpack.c.l.b16 %v189
        %v198 = vunpack.c.l.b16 %v190
        %v199 = vunpack.c.l.b16 %v191
        %v200 = vunpack.c.l.b16 %v192
        %v201 = vpack.c.b16 %v198, %v197
        %v202 = vpack.c.b16 %v200, %v199
        %205 = vst [vmem:[#allocation2] sm:$0xff] %v201
        %206 = vst [vmem:[#allocation2 + $0x48] sm:$0xff] %v202
        %v207 = vld [vmem:[%s188] sm:$0xf]
        %v208 = vld [vmem:[%s188 + $0x4] sm:$0x1]
        %v209 = vld [vmem:[%s188 + $0x8] sm:$0xf]
        %v210 = vld [vmem:[%s188 + $0xc] sm:$0x1]
        %v211 = vld [vmem:[%s188 + $0x10] sm:$0xf]
        %v212 = vld [vmem:[%s188 + $0x14] sm:$0x1]
        %v213 = vld [vmem:[%s188 + $0x18] sm:$0xf]
        %v214 = vld [vmem:[%s188 + $0x1c] sm:$0x1]
        %vm215 = vsmask.f32 3328
        %vm216 = vsmask.f32 7440
        %vm217 = vmor %vm215, %vm216
        %v219 = vshrl.u32 %v207, 16
        %v221 = vrot.slane %v219, 4
        %v222 = vshll.u32 %v207, 16
        %v224 = vrot.slane %v222, 5
        %v225 = vor.u32 %v221, %v224
        %v226 = vrot.slane %v225, 4
        %v228 = vshll.u32 %v208, 16
        %v230 = vrot.slane %v228, 5
        %v231 = vsel %vm217, %v226, %v230
        %v233 = vshrl.u32 %v209, 16
        %v235 = vrot.slane %v233, 4
        %v236 = vshll.u32 %v209, 16
        %v238 = vrot.slane %v236, 5
        %v239 = vor.u32 %v235, %v238
        %v240 = vrot.slane %v239, 4
        %v242 = vshll.u32 %v210, 16
        %v244 = vrot.slane %v242, 5
        %v245 = vsel %vm217, %v240, %v244
        %v247 = vshrl.u32 %v211, 16
        %v249 = vrot.slane %v247, 4
        %v250 = vshll.u32 %v211, 16
        %v252 = vrot.slane %v250, 5
        %v253 = vor.u32 %v249, %v252
        %v254 = vrot.slane %v253, 4
        %v256 = vshll.u32 %v212, 16
        %v258 = vrot.slane %v256, 5
        %v259 = vsel %vm217, %v254, %v258
        %v261 = vshrl.u32 %v213, 16
        %v263 = vrot.slane %v261, 4
        %v264 = vshll.u32 %v213, 16
        %v266 = vrot.slane %v264, 5
        %v267 = vor.u32 %v263, %v266
        %v268 = vrot.slane %v267, 4
        %v270 = vshll.u32 %v214, 16
        %v272 = vrot.slane %v270, 5
        %v273 = vsel %vm217, %v268, %v272
        %v274 = vunpack.c.l.b16 %v231
        %v275 = vunpack.c.l.b16 %v245
        %v276 = vunpack.c.l.b16 %v259
        %v277 = vunpack.c.l.b16 %v273
        %v278 = vpack.c.b16 %v275, %v274
        %v279 = vpack.c.b16 %v277, %v276
        %282 = vst [vmem:[#allocation2 + $0x8] sm:$0xff] %v278
        %283 = vst [vmem:[#allocation2 + $0x50] sm:$0xff] %v279
        %v284 = vld [vmem:[%s188] sm:$0xe]
        %v285 = vld [vmem:[%s188 + $0x4] sm:$0x1]
        %v286 = vld [vmem:[%s188 + $0x8] sm:$0xe]
        %v287 = vld [vmem:[%s188 + $0xc] sm:$0x1]
        %v288 = vld [vmem:[%s188 + $0x10] sm:$0xe]
        %v289 = vld [vmem:[%s188 + $0x14] sm:$0x1]
        %v290 = vld [vmem:[%s188 + $0x18] sm:$0xe]
        %v291 = vld [vmem:[%s188 + $0x1c] sm:$0x1]
        %vm300 = vcmask 1042432
        %vm301 = vcmask 1046532
        %vm302 = vmor %vm300, %vm301
        %v303 = vrot.slane %v284, 5
        %v304 = vrot.slane %v303, 4
        %v305 = vrot.slane %v285, 5
        %v306 = vsel %vm302, %v304, %v305
        %v307 = vrot.slane %v286, 5
        %v308 = vrot.slane %v307, 4
        %v309 = vrot.slane %v287, 5
        %v310 = vsel %vm302, %v308, %v309
        %v311 = vrot.slane %v288, 5
        %v312 = vrot.slane %v311, 4
        %v313 = vrot.slane %v289, 5
        %v314 = vsel %vm302, %v312, %v313
        %v315 = vrot.slane %v290, 5
        %v316 = vrot.slane %v315, 4
        %v317 = vrot.slane %v291, 5
        %v318 = vsel %vm302, %v316, %v317
        %v319 = vunpack.c.l.b16 %v306
        %v320 = vunpack.c.l.b16 %v310
        %v321 = vunpack.c.l.b16 %v314
        %v322 = vunpack.c.l.b16 %v318
        %v323 = vpack.c.b16 %v320, %v319
        %v324 = vpack.c.b16 %v322, %v321
        %327 = vst [vmem:[#allocation2 + $0x10] sm:$0xff] %v323
        %328 = vst [vmem:[#allocation2 + $0x58] sm:$0xff] %v324
        %s329 = sadd.s32 %s185, 1
        %s330 = smul.u32 %s329, 2
        %s331 = smul.addr %s330, 4
        %s332 = scalar_lea.vmem %s182, %s331
        %v333 = vld [vmem:[%s332] sm:$0xf]
        %v334 = vld [vmem:[%s332 + $0x8] sm:$0xf]
        %v335 = vld [vmem:[%s332 + $0x10] sm:$0xf]
        %v336 = vld [vmem:[%s332 + $0x18] sm:$0xf]
        %v341 = vunpack.c.l.b16 %v333
        %v342 = vunpack.c.l.b16 %v334
        %v343 = vunpack.c.l.b16 %v335
        %v344 = vunpack.c.l.b16 %v336
        %v345 = vpack.c.b16 %v342, %v341
        %v346 = vpack.c.b16 %v344, %v343
        %349 = vst [vmem:[#allocation2 + $0x18] sm:$0xff] %v345
        %350 = vst [vmem:[#allocation2 + $0x60] sm:$0xff] %v346
        %v351 = vld [vmem:[%s332] sm:$0xf]
        %v352 = vld [vmem:[%s332 + $0x4] sm:$0x1]
        %v353 = vld [vmem:[%s332 + $0x8] sm:$0xf]
        %v354 = vld [vmem:[%s332 + $0xc] sm:$0x1]
        %v355 = vld [vmem:[%s332 + $0x10] sm:$0xf]
        %v356 = vld [vmem:[%s332 + $0x14] sm:$0x1]
        %v357 = vld [vmem:[%s332 + $0x18] sm:$0xf]
        %v358 = vld [vmem:[%s332 + $0x1c] sm:$0x1]
        %v360 = vshrl.u32 %v351, 16
        %v362 = vrot.slane %v360, 4
        %v363 = vshll.u32 %v351, 16
        %v365 = vrot.slane %v363, 5
        %v366 = vor.u32 %v362, %v365
        %v367 = vrot.slane %v366, 4
        %v369 = vshll.u32 %v352, 16
        %v371 = vrot.slane %v369, 5
        %v372 = vsel %vm217, %v367, %v371
        %v374 = vshrl.u32 %v353, 16
        %v376 = vrot.slane %v374, 4
        %v377 = vshll.u32 %v353, 16
        %v379 = vrot.slane %v377, 5
        %v380 = vor.u32 %v376, %v379
        %v381 = vrot.slane %v380, 4
        %v383 = vshll.u32 %v354, 16
        %v385 = vrot.slane %v383, 5
        %v386 = vsel %vm217, %v381, %v385
        %v388 = vshrl.u32 %v355, 16
        %v390 = vrot.slane %v388, 4
        %v391 = vshll.u32 %v355, 16
        %v393 = vrot.slane %v391, 5
        %v394 = vor.u32 %v390, %v393
        %v395 = vrot.slane %v394, 4
        %v397 = vshll.u32 %v356, 16
        %v399 = vrot.slane %v397, 5
        %v400 = vsel %vm217, %v395, %v399
        %v402 = vshrl.u32 %v357, 16
        %v404 = vrot.slane %v402, 4
        %v405 = vshll.u32 %v357, 16
        %v407 = vrot.slane %v405, 5
        %v408 = vor.u32 %v404, %v407
        %v409 = vrot.slane %v408, 4
        %v411 = vshll.u32 %v358, 16
        %v413 = vrot.slane %v411, 5
        %v414 = vsel %vm217, %v409, %v413
        %v415 = vunpack.c.l.b16 %v372
        %v416 = vunpack.c.l.b16 %v386
        %v417 = vunpack.c.l.b16 %v400
        %v418 = vunpack.c.l.b16 %v414
        %v419 = vpack.c.b16 %v416, %v415
        %v420 = vpack.c.b16 %v418, %v417
        %423 = vst [vmem:[#allocation2 + $0x20] sm:$0xff] %v419
        %424 = vst [vmem:[#allocation2 + $0x68] sm:$0xff] %v420
        %v425 = vld [vmem:[%s332] sm:$0xe]
        %v426 = vld [vmem:[%s332 + $0x4] sm:$0x1]
        %v427 = vld [vmem:[%s332 + $0x8] sm:$0xe]
        %v428 = vld [vmem:[%s332 + $0xc] sm:$0x1]
        %v429 = vld [vmem:[%s332 + $0x10] sm:$0xe]
        %v430 = vld [vmem:[%s332 + $0x14] sm:$0x1]
        %v431 = vld [vmem:[%s332 + $0x18] sm:$0xe]
        %v432 = vld [vmem:[%s332 + $0x1c] sm:$0x1]
        %v441 = vrot.slane %v425, 5
        %v442 = vrot.slane %v441, 4
        %v443 = vrot.slane %v426, 5
        %v444 = vsel %vm302, %v442, %v443
        %v445 = vrot.slane %v427, 5
        %v446 = vrot.slane %v445, 4
        %v447 = vrot.slane %v428, 5
        %v448 = vsel %vm302, %v446, %v447
        %v449 = vrot.slane %v429, 5
        %v450 = vrot.slane %v449, 4
        %v451 = vrot.slane %v430, 5
        %v452 = vsel %vm302, %v450, %v451
        %v453 = vrot.slane %v431, 5
        %v454 = vrot.slane %v453, 4
        %v455 = vrot.slane %v432, 5
        %v456 = vsel %vm302, %v454, %v455
        %v457 = vunpack.c.l.b16 %v444
        %v458 = vunpack.c.l.b16 %v448
        %v459 = vunpack.c.l.b16 %v452
        %v460 = vunpack.c.l.b16 %v456
        %v461 = vpack.c.b16 %v458, %v457
        %v462 = vpack.c.b16 %v460, %v459
        %465 = vst [vmem:[#allocation2 + $0x28] sm:$0xff] %v461
        %466 = vst [vmem:[#allocation2 + $0x70] sm:$0xff] %v462
        %s467 = sadd.s32 %s185, 2
        %s468 = smul.u32 %s467, 2
        %s469 = smul.addr %s468, 4
        %s470 = scalar_lea.vmem %s182, %s469
        %v471 = vld [vmem:[%s470] sm:$0xf]
        %v472 = vld [vmem:[%s470 + $0x8] sm:$0xf]
        %v473 = vld [vmem:[%s470 + $0x10] sm:$0xf]
        %v474 = vld [vmem:[%s470 + $0x18] sm:$0xf]
        %v479 = vunpack.c.l.b16 %v471
        %v480 = vunpack.c.l.b16 %v472
        %v481 = vunpack.c.l.b16 %v473
        %v482 = vunpack.c.l.b16 %v474
        %v483 = vpack.c.b16 %v480, %v479
        %v484 = vpack.c.b16 %v482, %v481
        %487 = vst [vmem:[#allocation2 + $0x30] sm:$0xff] %v483
        %488 = vst [vmem:[#allocation2 + $0x78] sm:$0xff] %v484
        %v489 = vld [vmem:[%s470] sm:$0xf]
        %v490 = vld [vmem:[%s470 + $0x4] sm:$0x1]
        %v491 = vld [vmem:[%s470 + $0x8] sm:$0xf]
        %v492 = vld [vmem:[%s470 + $0xc] sm:$0x1]
        %v493 = vld [vmem:[%s470 + $0x10] sm:$0xf]
        %v494 = vld [vmem:[%s470 + $0x14] sm:$0x1]
        %v495 = vld [vmem:[%s470 + $0x18] sm:$0xf]
        %v496 = vld [vmem:[%s470 + $0x1c] sm:$0x1]
        %v498 = vshrl.u32 %v489, 16
        %v500 = vrot.slane %v498, 4
        %v501 = vshll.u32 %v489, 16
        %v503 = vrot.slane %v501, 5
        %v504 = vor.u32 %v500, %v503
        %v505 = vrot.slane %v504, 4
        %v507 = vshll.u32 %v490, 16
        %v509 = vrot.slane %v507, 5
        %v510 = vsel %vm217, %v505, %v509
        %v512 = vshrl.u32 %v491, 16
        %v514 = vrot.slane %v512, 4
        %v515 = vshll.u32 %v491, 16
        %v517 = vrot.slane %v515, 5
        %v518 = vor.u32 %v514, %v517
        %v519 = vrot.slane %v518, 4
        %v521 = vshll.u32 %v492, 16
        %v523 = vrot.slane %v521, 5
        %v524 = vsel %vm217, %v519, %v523
        %v526 = vshrl.u32 %v493, 16
        %v528 = vrot.slane %v526, 4
        %v529 = vshll.u32 %v493, 16
        %v531 = vrot.slane %v529, 5
        %v532 = vor.u32 %v528, %v531
        %v533 = vrot.slane %v532, 4
        %v535 = vshll.u32 %v494, 16
        %v537 = vrot.slane %v535, 5
        %v538 = vsel %vm217, %v533, %v537
        %v540 = vshrl.u32 %v495, 16
        %v542 = vrot.slane %v540, 4
        %v543 = vshll.u32 %v495, 16
        %v545 = vrot.slane %v543, 5
        %v546 = vor.u32 %v542, %v545
        %v547 = vrot.slane %v546, 4
        %v549 = vshll.u32 %v496, 16
        %v551 = vrot.slane %v549, 5
        %v552 = vsel %vm217, %v547, %v551
        %v553 = vunpack.c.l.b16 %v510
        %v554 = vunpack.c.l.b16 %v524
        %v555 = vunpack.c.l.b16 %v538
        %v556 = vunpack.c.l.b16 %v552
        %v557 = vpack.c.b16 %v554, %v553
        %v558 = vpack.c.b16 %v556, %v555
        %561 = vst [vmem:[#allocation2 + $0x38] sm:$0xff] %v557
        %562 = vst [vmem:[#allocation2 + $0x80] sm:$0xff] %v558
        %v563 = vld [vmem:[%s470] sm:$0xe]
        %v564 = vld [vmem:[%s470 + $0x4] sm:$0x1]
        %v565 = vld [vmem:[%s470 + $0x8] sm:$0xe]
        %v566 = vld [vmem:[%s470 + $0xc] sm:$0x1]
        %v567 = vld [vmem:[%s470 + $0x10] sm:$0xe]
        %v568 = vld [vmem:[%s470 + $0x14] sm:$0x1]
        %v569 = vld [vmem:[%s470 + $0x18] sm:$0xe]
        %v570 = vld [vmem:[%s470 + $0x1c] sm:$0x1]
        %v579 = vrot.slane %v563, 5
        %v580 = vrot.slane %v579, 4
        %v581 = vrot.slane %v564, 5
        %v582 = vsel %vm302, %v580, %v581
        %v583 = vrot.slane %v565, 5
        %v584 = vrot.slane %v583, 4
        %v585 = vrot.slane %v566, 5
        %v586 = vsel %vm302, %v584, %v585
        %v587 = vrot.slane %v567, 5
        %v588 = vrot.slane %v587, 4
        %v589 = vrot.slane %v568, 5
        %v590 = vsel %vm302, %v588, %v589
        %v591 = vrot.slane %v569, 5
        %v592 = vrot.slane %v591, 4
        %v593 = vrot.slane %v570, 5
        %v594 = vsel %vm302, %v592, %v593
        %v595 = vunpack.c.l.b16 %v582
        %v596 = vunpack.c.l.b16 %v586
        %v597 = vunpack.c.l.b16 %v590
        %v598 = vunpack.c.l.b16 %v594
        %v599 = vpack.c.b16 %v596, %v595
        %v600 = vpack.c.b16 %v598, %v597
        %603 = vst [vmem:[#allocation2 + $0x40] sm:$0xff] %v599
        %604 = vst [vmem:[#allocation2 + $0x88] sm:$0xff] %v600
        %v605 = vld [vmem:[#allocation2] sm:$0xff]
        %v606 = vld [vmem:[#allocation2 + $0x8] sm:$0xff]
        %v607 = vld [vmem:[#allocation2 + $0x10] sm:$0xff]
        %v608 = vld [vmem:[#allocation2 + $0x18] sm:$0xff]
        %v609 = vld [vmem:[#allocation2 + $0x20] sm:$0xff]
        %v610 = vld [vmem:[#allocation2 + $0x28] sm:$0xff]
        %v611 = vld [vmem:[#allocation2 + $0x30] sm:$0xff]
        %v612 = vld [vmem:[#allocation2 + $0x38] sm:$0xff]
        %v613 = vld [vmem:[#allocation2 + $0x40] sm:$0xff]
        %v614 = vld [vmem:[#allocation2 + $0x48] sm:$0xff]
        %v615 = vld [vmem:[#allocation2 + $0x50] sm:$0xff]
        %v616 = vld [vmem:[#allocation2 + $0x58] sm:$0xff]
        %v617 = vld [vmem:[#allocation2 + $0x60] sm:$0xff]
        %v618 = vld [vmem:[#allocation2 + $0x68] sm:$0xff]
        %v619 = vld [vmem:[#allocation2 + $0x70] sm:$0xff]
        %v620 = vld [vmem:[#allocation2 + $0x78] sm:$0xff]
        %v621 = vld [vmem:[#allocation2 + $0x80] sm:$0xff]
        %v622 = vld [vmem:[#allocation2 + $0x88] sm:$0xff]
        %v623 = vld [vmem:[%s1] sm:$0xf]
        %v624 = vld [vmem:[%s1 + $0x4] sm:$0xf]
        %v625 = vld [vmem:[%s1 + $0x8] sm:$0xf]
        %v626 = vld [vmem:[%s1 + $0xc] sm:$0xf]
        %v627 = vld [vmem:[%s1 + $0x10] sm:$0xf]
        %v628 = vld [vmem:[%s1 + $0x14] sm:$0xf]
        %v629 = vld [vmem:[%s1 + $0x18] sm:$0xf]
        %v630 = vld [vmem:[%s1 + $0x1c] sm:$0xf]
        %v631 = vld [vmem:[%s1 + $0x20] sm:$0xf]
        %v632 = vld [vmem:[%s1 + $0x24] sm:$0xf]
        %v633 = vld [vmem:[%s1 + $0x28] sm:$0xf]
        %v634 = vld [vmem:[%s1 + $0x2c] sm:$0xf]
        %v635 = vld [vmem:[%s1 + $0x30] sm:$0xf]
        %v636 = vld [vmem:[%s1 + $0x34] sm:$0xf]
        %v637 = vld [vmem:[%s1 + $0x38] sm:$0xf]
        %v638 = vld [vmem:[%s1 + $0x3c] sm:$0xf]
        %v639 = vld [vmem:[%s1 + $0x40] sm:$0xf]
        %v640 = vld [vmem:[%s1 + $0x44] sm:$0xf]
        %v641 = vld [vmem:[%s1 + $0x48] sm:$0xf]
        %v642 = vld [vmem:[%s1 + $0x4c] sm:$0xf]
        %v643 = vld [vmem:[%s1 + $0x50] sm:$0xf]
        %v644 = vld [vmem:[%s1 + $0x54] sm:$0xf]
        %v645 = vld [vmem:[%s1 + $0x58] sm:$0xf]
        %v646 = vld [vmem:[%s1 + $0x5c] sm:$0xf]
        %v647 = vld [vmem:[%s1 + $0x60] sm:$0xf]
        %v648 = vld [vmem:[%s1 + $0x64] sm:$0xf]
        %v649 = vld [vmem:[%s1 + $0x68] sm:$0xf]
        %v650 = vld [vmem:[%s1 + $0x6c] sm:$0xf]
        %v651 = vld [vmem:[%s1 + $0x70] sm:$0xf]
        %v652 = vld [vmem:[%s1 + $0x74] sm:$0xf]
        %v653 = vld [vmem:[%s1 + $0x78] sm:$0xf]
        %v654 = vld [vmem:[%s1 + $0x7c] sm:$0xf]
        %v655 = vld [vmem:[%s1 + $0x80] sm:$0xf]
        %v656 = vld [vmem:[%s1 + $0x84] sm:$0xf]
        %v657 = vld [vmem:[%s1 + $0x88] sm:$0xf]
        %v658 = vld [vmem:[%s1 + $0x8c] sm:$0xf]
        %v659 = vld [vmem:[%s1 + $0x90] sm:$0xf]
        %v660 = vld [vmem:[%s1 + $0x94] sm:$0xf]
        %v661 = vld [vmem:[%s1 + $0x98] sm:$0xf]
        %v662 = vld [vmem:[%s1 + $0x9c] sm:$0xf]
        %v663 = vld [vmem:[%s1 + $0xa0] sm:$0xf]
        %v664 = vld [vmem:[%s1 + $0xa4] sm:$0xf]
        %v665 = vld [vmem:[%s1 + $0xa8] sm:$0xf]
        %v666 = vld [vmem:[%s1 + $0xac] sm:$0xf]
        %v667 = vld [vmem:[%s1 + $0xb0] sm:$0xf]
        %v668 = vld [vmem:[%s1 + $0xb4] sm:$0xf]
        %v669 = vld [vmem:[%s1 + $0xb8] sm:$0xf]
        %v670 = vld [vmem:[%s1 + $0xbc] sm:$0xf]
        %v671 = vld [vmem:[%s1 + $0xc0] sm:$0xf]
        %v672 = vld [vmem:[%s1 + $0xc4] sm:$0xf]
        %v673 = vld [vmem:[%s1 + $0xc8] sm:$0xf]
        %v674 = vld [vmem:[%s1 + $0xcc] sm:$0xf]
        %v675 = vld [vmem:[%s1 + $0xd0] sm:$0xf]
        %v676 = vld [vmem:[%s1 + $0xd4] sm:$0xf]
        %v677 = vld [vmem:[%s1 + $0xd8] sm:$0xf]
        %v678 = vld [vmem:[%s1 + $0xdc] sm:$0xf]
        %v679 = vld [vmem:[%s1 + $0xe0] sm:$0xf]
        %v680 = vld [vmem:[%s1 + $0xe4] sm:$0xf]
        %v681 = vld [vmem:[%s1 + $0xe8] sm:$0xf]
        %v682 = vld [vmem:[%s1 + $0xec] sm:$0xf]
        %v683 = vld [vmem:[%s1 + $0xf0] sm:$0xf]
        %v684 = vld [vmem:[%s1 + $0xf4] sm:$0xf]
        %v685 = vld [vmem:[%s1 + $0xf8] sm:$0xf]
        %v686 = vld [vmem:[%s1 + $0xfc] sm:$0xf]
        %v687 = vld [vmem:[%s1 + $0x100] sm:$0xf]
        %v688 = vld [vmem:[%s1 + $0x104] sm:$0xf]
        %v689 = vld [vmem:[%s1 + $0x108] sm:$0xf]
        %v690 = vld [vmem:[%s1 + $0x10c] sm:$0xf]
        %v691 = vld [vmem:[%s1 + $0x110] sm:$0xf]
        %v692 = vld [vmem:[%s1 + $0x114] sm:$0xf]
        %v693 = vld [vmem:[%s1 + $0x118] sm:$0xf]
        %v694 = vld [vmem:[%s1 + $0x11c] sm:$0xf]
        %v695 = vld [vmem:[%s1 + $0x120] sm:$0xf]
        %v696 = vld [vmem:[%s1 + $0x124] sm:$0xf]
        %v697 = vld [vmem:[%s1 + $0x128] sm:$0xf]
        %v698 = vld [vmem:[%s1 + $0x12c] sm:$0xf]
        %v699 = vld [vmem:[%s1 + $0x130] sm:$0xf]
        %v700 = vld [vmem:[%s1 + $0x134] sm:$0xf]
        %v701 = vld [vmem:[%s1 + $0x138] sm:$0xf]
        %v702 = vld [vmem:[%s1 + $0x13c] sm:$0xf]
        %v703 = vld [vmem:[%s1 + $0x140] sm:$0xf]
        %v704 = vld [vmem:[%s1 + $0x144] sm:$0xf]
        %v705 = vld [vmem:[%s1 + $0x148] sm:$0xf]
        %v706 = vld [vmem:[%s1 + $0x14c] sm:$0xf]
        %v707 = vld [vmem:[%s1 + $0x150] sm:$0xf]
        %v708 = vld [vmem:[%s1 + $0x154] sm:$0xf]
        %v709 = vld [vmem:[%s1 + $0x158] sm:$0xf]
        %v710 = vld [vmem:[%s1 + $0x15c] sm:$0xf]
        %v711 = vld [vmem:[%s1 + $0x160] sm:$0xf]
        %v712 = vld [vmem:[%s1 + $0x164] sm:$0xf]
        %v713 = vld [vmem:[%s1 + $0x168] sm:$0xf]
        %v714 = vld [vmem:[%s1 + $0x16c] sm:$0xf]
        %v715 = vld [vmem:[%s1 + $0x170] sm:$0xf]
        %v716 = vld [vmem:[%s1 + $0x174] sm:$0xf]
        %v717 = vld [vmem:[%s1 + $0x178] sm:$0xf]
        %v718 = vld [vmem:[%s1 + $0x17c] sm:$0xf]
        %v719 = vld [vmem:[%s1 + $0x180] sm:$0xf]
        %v720 = vld [vmem:[%s1 + $0x184] sm:$0xf]
        %v721 = vld [vmem:[%s1 + $0x188] sm:$0xf]
        %v722 = vld [vmem:[%s1 + $0x18c] sm:$0xf]
        %v723 = vld [vmem:[%s1 + $0x190] sm:$0xf]
        %v724 = vld [vmem:[%s1 + $0x194] sm:$0xf]
        %v725 = vld [vmem:[%s1 + $0x198] sm:$0xf]
        %v726 = vld [vmem:[%s1 + $0x19c] sm:$0xf]
        %v727 = vld [vmem:[%s1 + $0x1a0] sm:$0xf]
        %v728 = vld [vmem:[%s1 + $0x1a4] sm:$0xf]
        %v729 = vld [vmem:[%s1 + $0x1a8] sm:$0xf]
        %v730 = vld [vmem:[%s1 + $0x1ac] sm:$0xf]
        %v731 = vld [vmem:[%s1 + $0x1b0] sm:$0xf]
        %v732 = vld [vmem:[%s1 + $0x1b4] sm:$0xf]
        %v733 = vld [vmem:[%s1 + $0x1b8] sm:$0xf]
        %v734 = vld [vmem:[%s1 + $0x1bc] sm:$0xf]
        %v735 = vld [vmem:[%s1 + $0x1c0] sm:$0xf]
        %v736 = vld [vmem:[%s1 + $0x1c4] sm:$0xf]
        %v737 = vld [vmem:[%s1 + $0x1c8] sm:$0xf]
        %v738 = vld [vmem:[%s1 + $0x1cc] sm:$0xf]
        %v739 = vld [vmem:[%s1 + $0x1d0] sm:$0xf]
        %v740 = vld [vmem:[%s1 + $0x1d4] sm:$0xf]
        %v741 = vld [vmem:[%s1 + $0x1d8] sm:$0xf]
        %v742 = vld [vmem:[%s1 + $0x1dc] sm:$0xf]
        %v743 = vld [vmem:[%s1 + $0x1e0] sm:$0xf]
        %v744 = vld [vmem:[%s1 + $0x1e4] sm:$0xf]
        %v745 = vld [vmem:[%s1 + $0x1e8] sm:$0xf]
        %v746 = vld [vmem:[%s1 + $0x1ec] sm:$0xf]
        %v747 = vld [vmem:[%s1 + $0x1f0] sm:$0xf]
        %v748 = vld [vmem:[%s1 + $0x1f4] sm:$0xf]
        %v749 = vld [vmem:[%s1 + $0x1f8] sm:$0xf]
        %v750 = vld [vmem:[%s1 + $0x1fc] sm:$0xf]
        %v751 = vld [vmem:[%s1 + $0x200] sm:$0xf]
        %v752 = vld [vmem:[%s1 + $0x204] sm:$0xf]
        %v753 = vld [vmem:[%s1 + $0x208] sm:$0xf]
        %v754 = vld [vmem:[%s1 + $0x20c] sm:$0xf]
        %v755 = vld [vmem:[%s1 + $0x210] sm:$0xf]
        %v756 = vld [vmem:[%s1 + $0x214] sm:$0xf]
        %v757 = vld [vmem:[%s1 + $0x218] sm:$0xf]
        %v758 = vld [vmem:[%s1 + $0x21c] sm:$0xf]
        %v759 = vld [vmem:[%s1 + $0x220] sm:$0xf]
        %v760 = vld [vmem:[%s1 + $0x224] sm:$0xf]
        %v761 = vld [vmem:[%s1 + $0x228] sm:$0xf]
        %v762 = vld [vmem:[%s1 + $0x22c] sm:$0xf]
        %v763 = vld [vmem:[%s1 + $0x230] sm:$0xf]
        %v764 = vld [vmem:[%s1 + $0x234] sm:$0xf]
        %v765 = vld [vmem:[%s1 + $0x238] sm:$0xf]
        %v766 = vld [vmem:[%s1 + $0x23c] sm:$0xf]
        %v767 = vld [vmem:[%s2] sm:$0x1]
        %v769 = vlaneseq
        %v770 = vshrl.u32 %v769, 7
        %v771 = vsub.s32 0, %v770
        %v772 = vrot.slane %v767, %v771
        %v918 = vunpack.c.l.b16 %v623
        %v919 = vunpack.c.l.b16 %v624
        %v920 = vunpack.c.l.b16 %v625
        %v921 = vunpack.c.l.b16 %v626
        %v922 = vunpack.c.l.b16 %v627
        %v923 = vunpack.c.l.b16 %v628
        %v924 = vunpack.c.l.b16 %v629
        %v925 = vunpack.c.l.b16 %v630
        %v926 = vunpack.c.l.b16 %v631
        %v927 = vunpack.c.l.b16 %v632
        %v928 = vunpack.c.l.b16 %v633
        %v929 = vunpack.c.l.b16 %v634
        %v930 = vunpack.c.l.b16 %v635
        %v931 = vunpack.c.l.b16 %v636
        %v932 = vunpack.c.l.b16 %v637
        %v933 = vunpack.c.l.b16 %v638
        %v934 = vunpack.c.l.b16 %v639
        %v935 = vunpack.c.l.b16 %v640
        %v936 = vunpack.c.l.b16 %v641
        %v937 = vunpack.c.l.b16 %v642
        %v938 = vunpack.c.l.b16 %v643
        %v939 = vunpack.c.l.b16 %v644
        %v940 = vunpack.c.l.b16 %v645
        %v941 = vunpack.c.l.b16 %v646
        %v942 = vunpack.c.l.b16 %v647
        %v943 = vunpack.c.l.b16 %v648
        %v944 = vunpack.c.l.b16 %v649
        %v945 = vunpack.c.l.b16 %v650
        %v946 = vunpack.c.l.b16 %v651
        %v947 = vunpack.c.l.b16 %v652
        %v948 = vunpack.c.l.b16 %v653
        %v949 = vunpack.c.l.b16 %v654
        %v950 = vunpack.c.l.b16 %v655
        %v951 = vunpack.c.l.b16 %v656
        %v952 = vunpack.c.l.b16 %v657
        %v953 = vunpack.c.l.b16 %v658
        %v954 = vunpack.c.l.b16 %v659
        %v955 = vunpack.c.l.b16 %v660
        %v956 = vunpack.c.l.b16 %v661
        %v957 = vunpack.c.l.b16 %v662
        %v958 = vunpack.c.l.b16 %v663
        %v959 = vunpack.c.l.b16 %v664
        %v960 = vunpack.c.l.b16 %v665
        %v961 = vunpack.c.l.b16 %v666
        %v962 = vunpack.c.l.b16 %v667
        %v963 = vunpack.c.l.b16 %v668
        %v964 = vunpack.c.l.b16 %v669
        %v965 = vunpack.c.l.b16 %v670
        %v966 = vunpack.c.l.b16 %v671
        %v967 = vunpack.c.l.b16 %v672
        %v968 = vunpack.c.l.b16 %v673
        %v969 = vunpack.c.l.b16 %v674
        %v970 = vunpack.c.l.b16 %v675
        %v971 = vunpack.c.l.b16 %v676
        %v972 = vunpack.c.l.b16 %v677
        %v973 = vunpack.c.l.b16 %v678
        %v974 = vunpack.c.l.b16 %v679
        %v975 = vunpack.c.l.b16 %v680
        %v976 = vunpack.c.l.b16 %v681
        %v977 = vunpack.c.l.b16 %v682
        %v978 = vunpack.c.l.b16 %v683
        %v979 = vunpack.c.l.b16 %v684
        %v980 = vunpack.c.l.b16 %v685
        %v981 = vunpack.c.l.b16 %v686
        %v982 = vunpack.c.l.b16 %v687
        %v983 = vunpack.c.l.b16 %v688
        %v984 = vunpack.c.l.b16 %v689
        %v985 = vunpack.c.l.b16 %v690
        %v986 = vunpack.c.l.b16 %v691
        %v987 = vunpack.c.l.b16 %v692
        %v988 = vunpack.c.l.b16 %v693
        %v989 = vunpack.c.l.b16 %v694
        %v990 = vunpack.c.l.b16 %v695
        %v991 = vunpack.c.l.b16 %v696
        %v992 = vunpack.c.l.b16 %v697
        %v993 = vunpack.c.l.b16 %v698
        %v994 = vunpack.c.l.b16 %v699
        %v995 = vunpack.c.l.b16 %v700
        %v996 = vunpack.c.l.b16 %v701
        %v997 = vunpack.c.l.b16 %v702
        %v998 = vunpack.c.l.b16 %v703
        %v999 = vunpack.c.l.b16 %v704
        %v1000 = vunpack.c.l.b16 %v705
        %v1001 = vunpack.c.l.b16 %v706
        %v1002 = vunpack.c.l.b16 %v707
        %v1003 = vunpack.c.l.b16 %v708
        %v1004 = vunpack.c.l.b16 %v709
        %v1005 = vunpack.c.l.b16 %v710
        %v1006 = vunpack.c.l.b16 %v711
        %v1007 = vunpack.c.l.b16 %v712
        %v1008 = vunpack.c.l.b16 %v713
        %v1009 = vunpack.c.l.b16 %v714
        %v1010 = vunpack.c.l.b16 %v715
        %v1011 = vunpack.c.l.b16 %v716
        %v1012 = vunpack.c.l.b16 %v717
        %v1013 = vunpack.c.l.b16 %v718
        %v1014 = vunpack.c.l.b16 %v719
        %v1015 = vunpack.c.l.b16 %v720
        %v1016 = vunpack.c.l.b16 %v721
        %v1017 = vunpack.c.l.b16 %v722
        %v1018 = vunpack.c.l.b16 %v723
        %v1019 = vunpack.c.l.b16 %v724
        %v1020 = vunpack.c.l.b16 %v725
        %v1021 = vunpack.c.l.b16 %v726
        %v1022 = vunpack.c.l.b16 %v727
        %v1023 = vunpack.c.l.b16 %v728
        %v1024 = vunpack.c.l.b16 %v729
        %v1025 = vunpack.c.l.b16 %v730
        %v1026 = vunpack.c.l.b16 %v731
        %v1027 = vunpack.c.l.b16 %v732
        %v1028 = vunpack.c.l.b16 %v733
        %v1029 = vunpack.c.l.b16 %v734
        %v1030 = vunpack.c.l.b16 %v735
        %v1031 = vunpack.c.l.b16 %v736
        %v1032 = vunpack.c.l.b16 %v737
        %v1033 = vunpack.c.l.b16 %v738
        %v1034 = vunpack.c.l.b16 %v739
        %v1035 = vunpack.c.l.b16 %v740
        %v1036 = vunpack.c.l.b16 %v741
        %v1037 = vunpack.c.l.b16 %v742
        %v1038 = vunpack.c.l.b16 %v743
        %v1039 = vunpack.c.l.b16 %v744
        %v1040 = vunpack.c.l.b16 %v745
        %v1041 = vunpack.c.l.b16 %v746
        %v1042 = vunpack.c.l.b16 %v747
        %v1043 = vunpack.c.l.b16 %v748
        %v1044 = vunpack.c.l.b16 %v749
        %v1045 = vunpack.c.l.b16 %v750
        %v1046 = vunpack.c.l.b16 %v751
        %v1047 = vunpack.c.l.b16 %v752
        %v1048 = vunpack.c.l.b16 %v753
        %v1049 = vunpack.c.l.b16 %v754
        %v1050 = vunpack.c.l.b16 %v755
        %v1051 = vunpack.c.l.b16 %v756
        %v1052 = vunpack.c.l.b16 %v757
        %v1053 = vunpack.c.l.b16 %v758
        %v1054 = vunpack.c.l.b16 %v759
        %v1055 = vunpack.c.l.b16 %v760
        %v1056 = vunpack.c.l.b16 %v761
        %v1057 = vunpack.c.l.b16 %v762
        %v1058 = vunpack.c.l.b16 %v763
        %v1059 = vunpack.c.l.b16 %v764
        %v1060 = vunpack.c.l.b16 %v765
        %v1061 = vunpack.c.l.b16 %v766
        %v1062 = vpack.c.b16 %v919, %v918
        %v1063 = vpack.c.b16 %v921, %v920
        %v1064 = vpack.c.b16 %v923, %v922
        %v1065 = vpack.c.b16 %v925, %v924
        %v1066 = vpack.c.b16 %v927, %v926
        %v1067 = vpack.c.b16 %v929, %v928
        %v1068 = vpack.c.b16 %v931, %v930
        %v1069 = vpack.c.b16 %v933, %v932
        %v1070 = vpack.c.b16 %v935, %v934
        %v1071 = vpack.c.b16 %v937, %v936
        %v1072 = vpack.c.b16 %v939, %v938
        %v1073 = vpack.c.b16 %v941, %v940
        %v1074 = vpack.c.b16 %v943, %v942
        %v1075 = vpack.c.b16 %v945, %v944
        %v1076 = vpack.c.b16 %v947, %v946
        %v1077 = vpack.c.b16 %v949, %v948
        %v1078 = vpack.c.b16 %v951, %v950
        %v1079 = vpack.c.b16 %v953, %v952
        %v1080 = vpack.c.b16 %v955, %v954
        %v1081 = vpack.c.b16 %v957, %v956
        %v1082 = vpack.c.b16 %v959, %v958
        %v1083 = vpack.c.b16 %v961, %v960
        %v1084 = vpack.c.b16 %v963, %v962
        %v1085 = vpack.c.b16 %v965, %v964
        %v1086 = vpack.c.b16 %v967, %v966
        %v1087 = vpack.c.b16 %v969, %v968
        %v1088 = vpack.c.b16 %v971, %v970
        %v1089 = vpack.c.b16 %v973, %v972
        %v1090 = vpack.c.b16 %v975, %v974
        %v1091 = vpack.c.b16 %v977, %v976
        %v1092 = vpack.c.b16 %v979, %v978
        %v1093 = vpack.c.b16 %v981, %v980
        %v1094 = vpack.c.b16 %v983, %v982
        %v1095 = vpack.c.b16 %v985, %v984
        %v1096 = vpack.c.b16 %v987, %v986
        %v1097 = vpack.c.b16 %v989, %v988
        %v1098 = vpack.c.b16 %v991, %v990
        %v1099 = vpack.c.b16 %v993, %v992
        %v1100 = vpack.c.b16 %v995, %v994
        %v1101 = vpack.c.b16 %v997, %v996
        %v1102 = vpack.c.b16 %v999, %v998
        %v1103 = vpack.c.b16 %v1001, %v1000
        %v1104 = vpack.c.b16 %v1003, %v1002
        %v1105 = vpack.c.b16 %v1005, %v1004
        %v1106 = vpack.c.b16 %v1007, %v1006
        %v1107 = vpack.c.b16 %v1009, %v1008
        %v1108 = vpack.c.b16 %v1011, %v1010
        %v1109 = vpack.c.b16 %v1013, %v1012
        %v1110 = vpack.c.b16 %v1015, %v1014
        %v1111 = vpack.c.b16 %v1017, %v1016
        %v1112 = vpack.c.b16 %v1019, %v1018
        %v1113 = vpack.c.b16 %v1021, %v1020
        %v1114 = vpack.c.b16 %v1023, %v1022
        %v1115 = vpack.c.b16 %v1025, %v1024
        %v1116 = vpack.c.b16 %v1027, %v1026
        %v1117 = vpack.c.b16 %v1029, %v1028
        %v1118 = vpack.c.b16 %v1031, %v1030
        %v1119 = vpack.c.b16 %v1033, %v1032
        %v1120 = vpack.c.b16 %v1035, %v1034
        %v1121 = vpack.c.b16 %v1037, %v1036
        %v1122 = vpack.c.b16 %v1039, %v1038
        %v1123 = vpack.c.b16 %v1041, %v1040
        %v1124 = vpack.c.b16 %v1043, %v1042
        %v1125 = vpack.c.b16 %v1045, %v1044
        %v1126 = vpack.c.b16 %v1047, %v1046
        %v1127 = vpack.c.b16 %v1049, %v1048
        %v1128 = vpack.c.b16 %v1051, %v1050
        %v1129 = vpack.c.b16 %v1053, %v1052
        %v1130 = vpack.c.b16 %v1055, %v1054
        %v1131 = vpack.c.b16 %v1057, %v1056
        %v1132 = vpack.c.b16 %v1059, %v1058
        %v1133 = vpack.c.b16 %v1061, %v1060
        %1206 = vmatprep.subr.bf16.mxu0 0
        %1207 = vmatpush1.bf16.msra.mxu0 %v1062
        %1208 = vmatprep.subr.bf16.mxu0 0
        %1209 = vmatpush1.bf16.msra.mxu0 %v1063
        %1210 = vmatprep.subr.bf16.mxu0 0
        %1211 = vmatpush1.bf16.msra.mxu0 %v1064
        %1212 = vmatprep.subr.bf16.mxu0 0
        %1213 = vmatpush1.bf16.msra.mxu0 %v1065
        %1214 = vmatprep.subr.bf16.mxu0 0
        %1215 = vmatpush1.bf16.msra.mxu0 %v1066
        %1216 = vmatprep.subr.bf16.mxu0 0
        %1217 = vmatpush1.bf16.msra.mxu0 %v1067
        %1218 = vmatprep.subr.bf16.mxu0 0
        %1219 = vmatpush1.bf16.msra.mxu0 %v1068
        %1220 = vmatprep.subr.bf16.mxu0 0
        %1221 = vmatpush1.bf16.msra.mxu0 %v1069
        %1222 = vmatprep.subr.bf16.mxu0 0
        %1223 = vmatpush1.bf16.msra.mxu0 %v1070
        %1224 = vmatprep.subr.bf16.mxu0 0
        %1225 = vmatpush1.bf16.msra.mxu0 %v1071
        %1226 = vmatprep.subr.bf16.mxu0 0
        %1227 = vmatpush1.bf16.msra.mxu0 %v1072
        %1228 = vmatprep.subr.bf16.mxu0 0
        %1229 = vmatpush1.bf16.msra.mxu0 %v1073
        %1230 = vmatprep.subr.bf16.mxu0 0
        %1231 = vmatpush1.bf16.msra.mxu0 %v1074
        %1232 = vmatprep.subr.bf16.mxu0 0
        %1233 = vmatpush1.bf16.msra.mxu0 %v1075
        %1234 = vmatprep.subr.bf16.mxu0 0
        %1235 = vmatpush1.bf16.msra.mxu0 %v1076
        %1236 = vmatprep.subr.bf16.mxu0 0
        %1237 = vmatpush1.bf16.msra.mxu0 %v1077
        %1238 = vmatprep.mubr.bf16.mxu0 %v606
        %1239 = vmatmul.mubr.bf16.gmra.mrb[0].mxu0 %v605
        %v1240 = vpop.f32.mrb[0].mxu0
        %v1241 = vadd.f32 %v772, %v1240
        %v1242 = vpop.f32.mrb[0].mxu0
        %v1243 = vpop.f32.mrb[0].mxu0
        %v1244 = vadd.f32 %v772, %v1243
        %v1245 = vpop.f32.mrb[0].mxu0
        %1246 = vmatprep.mubr.bf16.mxu0 %v615
        %1247 = vmatmul.mubr.bf16.gmra.mrb[0].mxu0 %v614
        %v1248 = vpop.f32.mrb[0].mxu0
        %v1249 = vadd.f32 %v772, %v1248
        %v1250 = vpop.f32.mrb[0].mxu0
        %v1251 = vpop.f32.mrb[0].mxu0
        %v1252 = vadd.f32 %v772, %v1251
        %v1253 = vpop.f32.mrb[0].mxu0
        %1254 = vdwg.mxu0
        %1255 = vmatprep.subr.bf16.mxu0 0
        %1256 = vmatpush1.bf16.msra.mxu0 %v1078
        %1257 = vmatprep.subr.bf16.mxu0 0
        %1258 = vmatpush1.bf16.msra.mxu0 %v1079
        %1259 = vmatprep.subr.bf16.mxu0 0
        %1260 = vmatpush1.bf16.msra.mxu0 %v1080
        %1261 = vmatprep.subr.bf16.mxu0 0
        %1262 = vmatpush1.bf16.msra.mxu0 %v1081
        %1263 = vmatprep.subr.bf16.mxu0 0
        %1264 = vmatpush1.bf16.msra.mxu0 %v1082
        %1265 = vmatprep.subr.bf16.mxu0 0
        %1266 = vmatpush1.bf16.msra.mxu0 %v1083
        %1267 = vmatprep.subr.bf16.mxu0 0
        %1268 = vmatpush1.bf16.msra.mxu0 %v1084
        %1269 = vmatprep.subr.bf16.mxu0 0
        %1270 = vmatpush1.bf16.msra.mxu0 %v1085
        %1271 = vmatprep.subr.bf16.mxu0 0
        %1272 = vmatpush1.bf16.msra.mxu0 %v1086
        %1273 = vmatprep.subr.bf16.mxu0 0
        %1274 = vmatpush1.bf16.msra.mxu0 %v1087
        %1275 = vmatprep.subr.bf16.mxu0 0
        %1276 = vmatpush1.bf16.msra.mxu0 %v1088
        %1277 = vmatprep.subr.bf16.mxu0 0
        %1278 = vmatpush1.bf16.msra.mxu0 %v1089
        %1279 = vmatprep.subr.bf16.mxu0 0
        %1280 = vmatpush1.bf16.msra.mxu0 %v1090
        %1281 = vmatprep.subr.bf16.mxu0 0
        %1282 = vmatpush1.bf16.msra.mxu0 %v1091
        %1283 = vmatprep.subr.bf16.mxu0 0
        %1284 = vmatpush1.bf16.msra.mxu0 %v1092
        %1285 = vmatprep.subr.bf16.mxu0 0
        %1286 = vmatpush1.bf16.msra.mxu0 %v1093
        %1287 = vmatprep.mubr.bf16.mxu0 %v608
        %1288 = vmatmul.mubr.bf16.gmra.mrb[0].mxu0 %v607
        %v1289 = vpop.f32.mrb[0].mxu0
        %v1290 = vadd.f32 %v1241, %v1289
        %v1291 = vpop.f32.mrb[0].mxu0
        %v1292 = vpop.f32.mrb[0].mxu0
        %v1293 = vadd.f32 %v1244, %v1292
        %v1294 = vpop.f32.mrb[0].mxu0
        %1295 = vmatprep.mubr.bf16.mxu0 %v617
        %1296 = vmatmul.mubr.bf16.gmra.mrb[0].mxu0 %v616
        %v1297 = vpop.f32.mrb[0].mxu0
        %v1298 = vadd.f32 %v1249, %v1297
        %v1299 = vpop.f32.mrb[0].mxu0
        %v1300 = vpop.f32.mrb[0].mxu0
        %v1301 = vadd.f32 %v1252, %v1300
        %v1302 = vpop.f32.mrb[0].mxu0
        %1303 = vdwg.mxu0
        %1304 = vmatprep.subr.bf16.mxu0 0
        %1305 = vmatpush1.bf16.msra.mxu0 %v1094
        %1306 = vmatprep.subr.bf16.mxu0 0
        %1307 = vmatpush1.bf16.msra.mxu0 %v1095
        %1308 = vmatprep.subr.bf16.mxu0 0
        %1309 = vmatpush1.bf16.msra.mxu0 %v1096
        %1310 = vmatprep.subr.bf16.mxu0 0
        %1311 = vmatpush1.bf16.msra.mxu0 %v1097
        %1312 = vmatprep.subr.bf16.mxu0 0
        %1313 = vmatpush1.bf16.msra.mxu0 %v1098
        %1314 = vmatprep.subr.bf16.mxu0 0
        %1315 = vmatpush1.bf16.msra.mxu0 %v1099
        %1316 = vmatprep.subr.bf16.mxu0 0
        %1317 = vmatpush1.bf16.msra.mxu0 %v1100
        %1318 = vmatprep.subr.bf16.mxu0 0
        %1319 = vmatpush1.bf16.msra.mxu0 %v1101
        %1320 = vmatprep.subr.bf16.mxu0 0
        %1321 = vmatpush1.bf16.msra.mxu0 %v1102
        %1322 = vmatprep.subr.bf16.mxu0 0
        %1323 = vmatpush1.bf16.msra.mxu0 %v1103
        %1324 = vmatprep.subr.bf16.mxu0 0
        %1325 = vmatpush1.bf16.msra.mxu0 %v1104
        %1326 = vmatprep.subr.bf16.mxu0 0
        %1327 = vmatpush1.bf16.msra.mxu0 %v1105
        %1328 = vmatprep.subr.bf16.mxu0 0
        %1329 = vmatpush1.bf16.msra.mxu0 %v1106
        %1330 = vmatprep.subr.bf16.mxu0 0
        %1331 = vmatpush1.bf16.msra.mxu0 %v1107
        %1332 = vmatprep.subr.bf16.mxu0 0
        %1333 = vmatpush1.bf16.msra.mxu0 %v1108
        %1334 = vmatprep.subr.bf16.mxu0 0
        %1335 = vmatpush1.bf16.msra.mxu0 %v1109
        %1336 = vmatprep.mubr.bf16.mxu0 %v610
        %1337 = vmatmul.mubr.bf16.gmra.mrb[0].mxu0 %v609
        %v1338 = vpop.f32.mrb[0].mxu0
        %v1339 = vadd.f32 %v1290, %v1338
        %v1340 = vpop.f32.mrb[0].mxu0
        %v1341 = vpop.f32.mrb[0].mxu0
        %v1342 = vadd.f32 %v1293, %v1341
        %v1343 = vpop.f32.mrb[0].mxu0
        %1344 = vmatprep.mubr.bf16.mxu0 %v619
        %1345 = vmatmul.mubr.bf16.gmra.mrb[0].mxu0 %v618
        %v1346 = vpop.f32.mrb[0].mxu0
        %v1347 = vadd.f32 %v1298, %v1346
        %v1348 = vpop.f32.mrb[0].mxu0
        %v1349 = vpop.f32.mrb[0].mxu0
        %v1350 = vadd.f32 %v1301, %v1349
        %v1351 = vpop.f32.mrb[0].mxu0
        %1352 = vdwg.mxu0
        %1353 = vmatprep.subr.bf16.mxu0 0
        %1354 = vmatpush1.bf16.msra.mxu0 %v1110
        %1355 = vmatprep.subr.bf16.mxu0 0
        %1356 = vmatpush1.bf16.msra.mxu0 %v1111
        %1357 = vmatprep.subr.bf16.mxu0 0
        %1358 = vmatpush1.bf16.msra.mxu0 %v1112
        %1359 = vmatprep.subr.bf16.mxu0 0
        %1360 = vmatpush1.bf16.msra.mxu0 %v1113
        %1361 = vmatprep.subr.bf16.mxu0 0
        %1362 = vmatpush1.bf16.msra.mxu0 %v1114
        %1363 = vmatprep.subr.bf16.mxu0 0
        %1364 = vmatpush1.bf16.msra.mxu0 %v1115
        %1365 = vmatprep.subr.bf16.mxu0 0
        %1366 = vmatpush1.bf16.msra.mxu0 %v1116
        %1367 = vmatprep.subr.bf16.mxu0 0
        %1368 = vmatpush1.bf16.msra.mxu0 %v1117
        %1369 = vmatprep.subr.bf16.mxu0 0
        %1370 = vmatpush1.bf16.msra.mxu0 %v1118
        %1371 = vmatprep.subr.bf16.mxu0 0
        %1372 = vmatpush1.bf16.msra.mxu0 %v1119
        %1373 = vmatprep.subr.bf16.mxu0 0
        %1374 = vmatpush1.bf16.msra.mxu0 %v1120
        %1375 = vmatprep.subr.bf16.mxu0 0
        %1376 = vmatpush1.bf16.msra.mxu0 %v1121
        %1377 = vmatprep.subr.bf16.mxu0 0
        %1378 = vmatpush1.bf16.msra.mxu0 %v1122
        %1379 = vmatprep.subr.bf16.mxu0 0
        %1380 = vmatpush1.bf16.msra.mxu0 %v1123
        %1381 = vmatprep.subr.bf16.mxu0 0
        %1382 = vmatpush1.bf16.msra.mxu0 %v1124
        %1383 = vmatprep.subr.bf16.mxu0 0
        %1384 = vmatpush1.bf16.msra.mxu0 %v1125
        %1385 = vmatprep.mubr.bf16.mxu0 %v612
        %1386 = vmatmul.mubr.bf16.gmra.mrb[0].mxu0 %v611
        %v1387 = vpop.f32.mrb[0].mxu0
        %v1388 = vadd.f32 %v1339, %v1387
        %v1389 = vpop.f32.mrb[0].mxu0
        %v1390 = vpop.f32.mrb[0].mxu0
        %v1391 = vadd.f32 %v1342, %v1390
        %v1392 = vpop.f32.mrb[0].mxu0
        %1393 = vmatprep.mubr.bf16.mxu0 %v621
        %1394 = vmatmul.mubr.bf16.gmra.mrb[0].mxu0 %v620
        %v1395 = vpop.f32.mrb[0].mxu0
        %v1396 = vadd.f32 %v1347, %v1395
        %v1397 = vpop.f32.mrb[0].mxu0
        %v1398 = vpop.f32.mrb[0].mxu0
        %v1399 = vadd.f32 %v1350, %v1398
        %v1400 = vpop.f32.mrb[0].mxu0
        %1401 = vdwg.mxu0
        %1402 = vmatprep.subr.bf16.mxu0 0
        %1403 = vmatpush1.bf16.msra.mxu0 %v1126
        %1404 = vmatprep.subr.bf16.mxu0 0
        %1405 = vmatpush1.bf16.msra.mxu0 %v1127
        %1406 = vmatprep.subr.bf16.mxu0 0
        %1407 = vmatpush1.bf16.msra.mxu0 %v1128
        %1408 = vmatprep.subr.bf16.mxu0 0
        %1409 = vmatpush1.bf16.msra.mxu0 %v1129
        %1410 = vmatprep.subr.bf16.mxu0 0
        %1411 = vmatpush1.bf16.msra.mxu0 %v1130
        %1412 = vmatprep.subr.bf16.mxu0 0
        %1413 = vmatpush1.bf16.msra.mxu0 %v1131
        %1414 = vmatprep.subr.bf16.mxu0 0
        %1415 = vmatpush1.bf16.msra.mxu0 %v1132
        %1416 = vmatprep.subr.bf16.mxu0 0
        %1417 = vmatpush1.bf16.msra.mxu0 %v1133
        %1418 = vmatprep.subr.bf16.mxu0 0
        %1419 = vmatpush1.bf16.msra.mxu0 0
        %1420 = vmatprep.subr.bf16.mxu0 0
        %1421 = vmatpush1.bf16.msra.mxu0 0
        %1422 = vmatprep.subr.bf16.mxu0 0
        %1423 = vmatpush1.bf16.msra.mxu0 0
        %1424 = vmatprep.subr.bf16.mxu0 0
        %1425 = vmatpush1.bf16.msra.mxu0 0
        %1426 = vmatprep.subr.bf16.mxu0 0
        %1427 = vmatpush1.bf16.msra.mxu0 0
        %1428 = vmatprep.subr.bf16.mxu0 0
        %1429 = vmatpush1.bf16.msra.mxu0 0
        %1430 = vmatprep.subr.bf16.mxu0 0
        %1431 = vmatpush1.bf16.msra.mxu0 0
        %1432 = vmatprep.subr.bf16.mxu0 0
        %1433 = vmatpush1.bf16.msra.mxu0 0
        %1434 = vmatprep.mubr.bf16.mxu0 0
        %1435 = vmatmul.mubr.bf16.gmra.mrb[0].mxu0 %v613
        %v1436 = vpop.f32.mrb[0].mxu0
        %v1437 = vadd.f32 %v1388, %v1436
        %v1438 = vpop.f32.mrb[0].mxu0
        %v1439 = vpop.f32.mrb[0].mxu0
        %v1440 = vadd.f32 %v1391, %v1439
        %v1441 = vpop.f32.mrb[0].mxu0
        %1442 = vmatprep.mubr.bf16.mxu0 0
        %1443 = vmatmul.mubr.bf16.gmra.mrb[0].mxu0 %v622
        %v1444 = vpop.f32.mrb[0].mxu0
        %v1445 = vadd.f32 %v1396, %v1444
        %v1446 = vpop.f32.mrb[0].mxu0
        %v1447 = vpop.f32.mrb[0].mxu0
        %v1448 = vadd.f32 %v1399, %v1447
        %v1449 = vpop.f32.mrb[0].mxu0
        %1450 = vdwg.mxu0
        %1451 = vst [vmem:[%s177] sm:$0xff] %v1437
        %1452 = vst [vmem:[%s177 + $0x8] sm:$0xff] %v1440
        %1453 = vst [vmem:[%s177 + $0x10] sm:$0xff] %v1445
        %1454 = vst [vmem:[%s177 + $0x18] sm:$0xff] %v1448
        %s1455 = sand.u32 %s107, 1
        %s1456 = scalar_lea.sflag [#allocation4], %s1455
        %s1457 = sand.u32 %s107, 1
        %s1458 = smul.addr %s1457, 32
        %s1459 = scalar_lea.vmem [#allocation3], %s1458
        // Predicated region
        $region33: #{vgg16_forward.7} parent=31 // pred_check
          %p1460 = pneg %p117
        $region34: #{vgg16_forward.7} parent=31 // pred_check_branch
          %1462 = sbr.rel (%p1460) target = $region36
        $region35: #{vgg16_forward.7} parent=31 // pred_region
          %s1463 = smul.u32 4, %s22
          %s1465 = ssub.s32 512, 512
          %1466 = vsyncadd %s1456, %s1465
          %s1467 = smul.addr %s21, 8
          %s1468 = sadd.s32 %s1463, %s1467
          %s1469 = smul.addr %s1468, 128
          %s1470 = scalar_lea.hbm %s3, %s1469
          %s1471 = sshll.u32 %s1459, 4
          %s1472 = int_to_ptr.vmem [resolvable:$true] %s1471
          %1477 = dma.vmem_to_hbm [thread:$0]  %s1472, 512, %s1470, %s1456, 128, 128, 8
        $region36: #{vgg16_forward.7} parent=31 // pred_fallthru
          _
      $region32: #{vgg16_forward.7} parent=5 // pred_fallthru
        _
      %p1478 = scmp.le.s32.totalorder 2, %s12
      // Predicated region
      $region37: #{vgg16_forward.7} parent=5 // pred_check
        %p1479 = pneg %p1478
      $region38: #{vgg16_forward.7} parent=5 // pred_check_branch
        %1481 = sbr.rel (%p1479) target = $region40
      $region39: #{vgg16_forward.7} parent=5 // pred_region
        %s1482 = ssub.s32 %s12, 2
        // Predicated region
        $region41: #{vgg16_forward.7} parent=39 // pred_check
          %p1483 = pneg %p123
        $region42: #{vgg16_forward.7} parent=39 // pred_check_branch
          %1485 = sbr.rel (%p1483) target = $region44
        $region43: #{vgg16_forward.7} parent=39 // pred_region
          %s1486 = sand.u32 %s108, 1
          %s1487 = scalar_lea.sflag [#allocation4], %s1486
          %s1488 = sand.u32 %s108, 1
          %s1489 = smul.addr %s1488, 32
          %s1490 = scalar_lea.vmem [#allocation3], %s1489
          %1491 = dma.done %s1487, 512
        $region44: #{vgg16_forward.7} parent=39 // pred_fallthru
          _
      $region40: #{vgg16_forward.7} parent=5 // pred_fallthru
        _
    $region6: #{vgg16_forward.7} parent=1 // loop_footer
      %s16 = sadd.s32 1, %s12
    $region7: #{vgg16_forward.7} parent=1 // loop_footer_branch
      %11 = sbr.rel target = $region3
    $region8: #{vgg16_forward.7} parent=1 // loop_exit
      _
    %1492 = vsyncpa [#allocation4], 1
    %s1493 = scalar_lea.sflag [#allocation4], 1
    %1494 = vsyncpa %s1493, 1

// kernel: vgg16_forward.5
$region0: #{vgg16_forward.5}
  #allocation0 [shape = 'u32[]', space=smem, size = 0x4, offset = 0x4, fixed_abs, tag = 'smem constant byte address 0x4 - core index']
  #allocation1 [shape = 'u32[144,128]{1,0:T(1,128)}', space=vmem, size = 0x12000, scoped, tag = 'internal scratch']
  #allocation2 [shape = 'bf16[128,576]{1,0:T(16,128)(2,1)}', space=vmem, size = 0x28000, scoped, tag = 'scratch operand']
  %s0 = inlined_call_operand.vmem [shape: bf16[2,18,18,64], index: 0, kind: input, shape index: {}]
  %s1 = inlined_call_operand.vmem [shape: bf16[576,64], index: 1, kind: input, shape index: {}]
  %s2 = inlined_call_operand.vmem [shape: f32[1,64], index: 2, kind: input, shape index: {}]
  %s3 = inlined_call_operand.vmem [shape: bf16[2,8,8,64], index: 3, kind: output, shape index: {}]
  %s4 = sld [smem:[#allocation0]]
  $region45: #{vgg16_forward.5} parent=0
    _
  %s6 = ssub.s32 1, %s4
  %s7 = scalar_select 0, %s6, %s4
  loop: start=0, step=1, limit=6
  $region2: #{vgg16_forward.5} parent=0 // loop_pre_header
    _
  $region3: #{vgg16_forward.5} parent=0 // loop_header
    %s9 = sphi 0, %s13
    %p10 = scmp.ge.s32.totalorder %s9, 6
    %s16 = sphi 0, %s28
    %s17 = sphi 0, %s24
    %s18 = sphi 0, %s16
    %s19 = sphi 0, %s17
    %s20 = sphi 0, %s18
    %s21 = sphi 0, %s19
    %s31 = sphi 0, %s33
    %s34 = sphi 0, %s31
    %s35 = sphi 0, %s34
    %s51 = sphi 0, %s35
    %s55 = sphi 0, %s55
    %s57 = sphi 0, %s55
    %s58 = sphi 0, %s57
    %s72 = sphi 0, %s58
    %s76 = sphi 0, %s76
    %s78 = sphi 0, %s76
    %s79 = sphi 0, %s78
    %s93 = sphi 0, %s79
    %s101 = sphi 0, %s103
    %s104 = sphi 0, %s101
    %s105 = sphi 0, %s104
    %s121 = sphi 0, %s105
  $region4: #{vgg16_forward.5} parent=0 // loop_header_branch
    %12 = sbr.rel (%p10) target = $region8
  $region5: #{vgg16_forward.5} parent=0 // loop_body
    %s14 = ssub.s32 %s9, 1
    %s15 = ssub.s32 %s9, 2
    %s22 = sadd.s32 1, %s17
    %p23 = scmp.ge.s32.totalorder %s22, 2
    %s24 = scalar_select %p23, 0, %s22
    %s25 = sadd.s32 1, %s16
    %s26 = scalar_select %p23, %s25, %s16
    %p27 = scmp.ge.s32.totalorder %s26, 2
    %s28 = scalar_select %p27, 0, %s26
    %s29 = ssub.s32 %s16, %s28
    %p30 = scmp.eq.s32.totalorder %s29, 0
    %s32 = sadd.s32 %s31, 1
    %s33 = scalar_select %p30, %s31, %s32
    %p36 = pneg %p30
    %p37 = scmp.eq.s32.totalorder %s9, 3
    %p38 = por %p36, %p37
    %p39 = scmp.ne.s32.totalorder %s31, %s34
    %p40 = scmp.eq.s32.totalorder %s9, 0
    %p41 = por %p39, %p40
    %p42 = scmp.ne.s32.totalorder %s31, %s34
    %p43 = scmp.eq.s32.totalorder %s14, 3
    %p44 = por %p42, %p43
    %p45 = scmp.ne.s32.totalorder %s34, %s35
    %p46 = scmp.eq.s32.totalorder %s14, 0
    %p47 = por %p45, %p46
    %p48 = scmp.ne.s32.totalorder %s34, %s35
    %p49 = scmp.eq.s32.totalorder %s15, 3
    %p50 = por %p48, %p49
    %p52 = scmp.ne.s32.totalorder %s35, %s51
    %p53 = scmp.eq.s32.totalorder %s15, 0
    %p54 = por %p52, %p53
    %s56 = sadd.s32 %s55, 1
    %p59 = scmp.eq.s32.totalorder %s9, 3
    %p60 = scmp.ne.s32.totalorder %s55, %s57
    %p61 = scmp.eq.s32.totalorder %s9, 0
    %p62 = por %p60, %p61
    %p63 = scmp.ne.s32.totalorder %s55, %s57
    %p64 = scmp.eq.s32.totalorder %s14, 3
    %p65 = por %p63, %p64
    %p66 = scmp.ne.s32.totalorder %s57, %s58
    %p67 = scmp.eq.s32.totalorder %s14, 0
    %p68 = por %p66, %p67
    %p69 = scmp.ne.s32.totalorder %s57, %s58
    %p70 = scmp.eq.s32.totalorder %s15, 3
    %p71 = por %p69, %p70
    %p73 = scmp.ne.s32.totalorder %s58, %s72
    %p74 = scmp.eq.s32.totalorder %s15, 0
    %p75 = por %p73, %p74
    %s77 = sadd.s32 %s76, 1
    %p80 = scmp.eq.s32.totalorder %s9, 3
    %p81 = scmp.ne.s32.totalorder %s76, %s78
    %p82 = scmp.eq.s32.totalorder %s9, 0
    %p83 = por %p81, %p82
    %p84 = scmp.ne.s32.totalorder %s76, %s78
    %p85 = scmp.eq.s32.totalorder %s14, 3
    %p86 = por %p84, %p85
    %p87 = scmp.ne.s32.totalorder %s78, %s79
    %p88 = scmp.eq.s32.totalorder %s14, 0
    %p89 = por %p87, %p88
    %p90 = scmp.ne.s32.totalorder %s78, %s79
    %p91 = scmp.eq.s32.totalorder %s15, 3
    %p92 = por %p90, %p91
    %p94 = scmp.ne.s32.totalorder %s79, %s93
    %p95 = scmp.eq.s32.totalorder %s15, 0
    %p96 = por %p94, %p95
    %s97 = ssub.s32 %s16, %s28
    %s98 = ssub.s32 %s17, %s24
    %s99 = sor.u32 %s97, %s98
    %p100 = scmp.eq.s32.totalorder %s99, 0
    %s102 = sadd.s32 %s101, 1
    %s103 = scalar_select %p100, %s101, %s102
    %p106 = pneg %p100
    %p107 = scmp.eq.s32.totalorder %s9, 3
    %p108 = por %p106, %p107
    %p109 = scmp.ne.s32.totalorder %s101, %s104
    %p110 = scmp.eq.s32.totalorder %s9, 0
    %p111 = por %p109, %p110
    %p112 = scmp.ne.s32.totalorder %s101, %s104
    %p113 = scmp.eq.s32.totalorder %s14, 3
    %p114 = por %p112, %p113
    %p115 = scmp.ne.s32.totalorder %s104, %s105
    %p116 = scmp.eq.s32.totalorder %s14, 0
    %p117 = por %p115, %p116
    %p118 = scmp.ne.s32.totalorder %s104, %s105
    %p119 = scmp.eq.s32.totalorder %s15, 3
    %p120 = por %p118, %p119
    %p122 = scmp.ne.s32.totalorder %s105, %s121
    %p123 = scmp.eq.s32.totalorder %s15, 0
    %p124 = por %p122, %p123
    %p125 = scmp.le.s32.totalorder 1, %s9
    %p126 = scmp.lt.s32.totalorder %s9, 5
    %p127 = pnand %p125, %p126
    %p128 = pneg %p127
    // Predicated region
    $region9: #{vgg16_forward.5} parent=5 // pred_check
      _
    $region10: #{vgg16_forward.5} parent=5 // pred_check_branch
      %130 = sbr.rel (%p127) target = $region12
    $region11: #{vgg16_forward.5} parent=5 // pred_region
      %s131 = ssub.s32 %s9, 1
      // Predicated region
      $region13: #{vgg16_forward.5} parent=11 // pred_check
        %p132 = pneg %p68
      $region14: #{vgg16_forward.5} parent=11 // pred_check_branch
        %134 = sbr.rel (%p132) target = $region16
      $region15: #{vgg16_forward.5} parent=11 // pred_region
        _
      $region16: #{vgg16_forward.5} parent=11 // pred_fallthru
        _
      // Predicated region
      $region17: #{vgg16_forward.5} parent=11 // pred_check
        %p135 = pneg %p89
      $region18: #{vgg16_forward.5} parent=11 // pred_check_branch
        %137 = sbr.rel (%p135) target = $region20
      $region19: #{vgg16_forward.5} parent=11 // pred_region
        _
      $region20: #{vgg16_forward.5} parent=11 // pred_fallthru
        _
    $region12: #{vgg16_forward.5} parent=5 // pred_fallthru
      _
    %p138 = scmp.lt.s32.totalorder %s9, 4
    // Predicated region
    $region21: #{vgg16_forward.5} parent=5 // pred_check
      %p139 = pneg %p138
    $region22: #{vgg16_forward.5} parent=5 // pred_check_branch
      %141 = sbr.rel (%p139) target = $region24
    $region23: #{vgg16_forward.5} parent=5 // pred_region
      // Predicated region
      $region25: #{vgg16_forward.5} parent=23 // pred_check
        %p142 = pneg %p41
      $region26: #{vgg16_forward.5} parent=23 // pred_check_branch
        %144 = sbr.rel (%p142) target = $region28
      $region27: #{vgg16_forward.5} parent=23 // pred_region
        %p145 = scmp.lt.s32.totalorder %s16, 1
        %s146 = scalar_select %p145, %s16, 1
        %s147 = smul.addr %s146, 54
        %s148 = smul.addr %s147, 4
        %s149 = scalar_lea.vmem %s0, %s148
      $region28: #{vgg16_forward.5} parent=23 // pred_fallthru
        _
    $region24: #{vgg16_forward.5} parent=5 // pred_fallthru
      _
    %p150 = scmp.le.s32.totalorder 1, %s9
    %p151 = scmp.lt.s32.totalorder %s9, 5
    %p152 = pnand %p150, %p151
    %p153 = pneg %p152
    // Predicated region
    $region29: #{vgg16_forward.5} parent=5 // pred_check
      _
    $region30: #{vgg16_forward.5} parent=5 // pred_check_branch
      %155 = sbr.rel (%p152) target = $region32
    $region31: #{vgg16_forward.5} parent=5 // pred_region
      %s156 = ssub.s32 %s9, 1
      %p157 = scmp.lt.s32.totalorder %s18, 1
      %s158 = scalar_select %p157, %s18, 1
      %s159 = smul.addr %s158, 54
      %s160 = smul.addr %s159, 4
      %s161 = scalar_lea.vmem %s0, %s160
      %p162 = pneg %p47
      %p163 = pneg %p44
      %p164 = pneg %p68
      %p165 = pneg %p65
      %p166 = pneg %p89
      %p167 = pneg %p86
      %p168 = pneg %p117
      %p169 = pneg %p114
      %s170 = smul.u32 4, %s19
      %p171 = scmp.lt.s32.totalorder %s18, 1
      %s172 = scalar_select %p171, %s18, 1
      %p173 = scmp.lt.s32.totalorder %s170, 7
      %s174 = scalar_select %p173, %s170, 7
      %s175 = smul.addr %s172, 8
      %s176 = sadd.s32 %s174, %s175
      %s177 = smul.addr %s176, 4
      %s178 = scalar_lea.vmem %s3, %s177
      %p179 = scmp.lt.s32.totalorder %s18, 1
      %s180 = scalar_select %p179, %s18, 1
      %s181 = smul.addr %s180, 54
      %s182 = smul.addr %s181, 4
      %s183 = scalar_lea.vmem %s0, %s182
      %s184 = smul.u32 4, %s19
      %p185 = scmp.lt.s32.totalorder %s18, 1
      %s186 = scalar_select %p185, %s18, 1
      %p187 = scmp.lt.s32.totalorder %s184, 7
      %s188 = scalar_select %p187, %s184, 7
      %s189 = smul.addr %s186, 8
      %s190 = sadd.s32 %s188, %s189
      %s191 = smul.addr %s190, 4
      %s192 = scalar_lea.vmem %s3, %s191
      %s193 = smul.u32 4, %s19
      %s195 = smul.u32 %s19, 8
      %s196 = smul.u32 %s195, 3
      %s197 = smul.addr %s196, 4
      %s198 = scalar_lea.vmem %s183, %s197
      %v199 = vld [vmem:[%s198] sm:$0xf]
      %v200 = vld [vmem:[%s198 + $0x4] sm:$0xf]
      %v201 = vld [vmem:[%s198 + $0xc] sm:$0xf]
      %v202 = vld [vmem:[%s198 + $0x10] sm:$0xf]
      %v203 = vld [vmem:[%s198 + $0x18] sm:$0xf]
      %v204 = vld [vmem:[%s198 + $0x1c] sm:$0xf]
      %v205 = vld [vmem:[%s198 + $0x24] sm:$0xf]
      %v206 = vld [vmem:[%s198 + $0x28] sm:$0xf]
      %v207 = vld [vmem:[%s198 + $0x30] sm:$0xf]
      %v208 = vld [vmem:[%s198 + $0x34] sm:$0xf]
      %v209 = vld [vmem:[%s198 + $0x3c] sm:$0xf]
      %v210 = vld [vmem:[%s198 + $0x40] sm:$0xf]
      %v211 = vld [vmem:[%s198 + $0x48] sm:$0xf]
      %v212 = vld [vmem:[%s198 + $0x4c] sm:$0xf]
      %v213 = vld [vmem:[%s198 + $0x54] sm:$0xf]
      %v214 = vld [vmem:[%s198 + $0x58] sm:$0xf]
      %v231 = vunpack.c.l.b16 %v199
      %v232 = vunpack.c.l.b16 %v200
      %v233 = vunpack.c.l.b16 %v201
      %v234 = vunpack.c.l.b16 %v202
      %v235 = vunpack.c.l.b16 %v203
      %v236 = vunpack.c.l.b16 %v204
      %v237 = vunpack.c.l.b16 %v205
      %v238 = vunpack.c.l.b16 %v206
      %v239 = vunpack.c.l.b16 %v207
      %v240 = vunpack.c.l.b16 %v208
      %v241 = vunpack.c.l.b16 %v209
      %v242 = vunpack.c.l.b16 %v210
      %v243 = vunpack.c.l.b16 %v211
      %v244 = vunpack.c.l.b16 %v212
      %v245 = vunpack.c.l.b16 %v213
      %v246 = vunpack.c.l.b16 %v214
      %v247 = vpack.c.b16 %v232, %v231
      %v248 = vpack.c.b16 %v234, %v233
      %v249 = vpack.c.b16 %v236, %v235
      %v250 = vpack.c.b16 %v238, %v237
      %v251 = vpack.c.b16 %v240, %v239
      %v252 = vpack.c.b16 %v242, %v241
      %v253 = vpack.c.b16 %v244, %v243
      %v254 = vpack.c.b16 %v246, %v245
      %vm263 = vcmask 523264
      %264 = vst.msk [vmem:[#allocation2] sm:$0xff] %vm263, %v247
      %265 = vst.msk [vmem:[#allocation2 + $0x28] sm:$0xff] %vm263, %v248
      %266 = vst.msk [vmem:[#allocation2 + $0x50] sm:$0xff] %vm263, %v249
      %267 = vst.msk [vmem:[#allocation2 + $0x78] sm:$0xff] %vm263, %v250
      %268 = vst.msk [vmem:[#allocation2 + $0xa0] sm:$0xff] %vm263, %v251
      %269 = vst.msk [vmem:[#allocation2 + $0xc8] sm:$0xff] %vm263, %v252
      %270 = vst.msk [vmem:[#allocation2 + $0xf0] sm:$0xff] %vm263, %v253
      %271 = vst.msk [vmem:[#allocation2 + $0x118] sm:$0xff] %vm263, %v254
      %v272 = vld [vmem:[%s198] sm:$0xf]
      %v273 = vld [vmem:[%s198 + $0x4] sm:$0xf]
      %v274 = vld [vmem:[%s198 + $0x8] sm:$0x1]
      %v275 = vld [vmem:[%s198 + $0xc] sm:$0xf]
      %v276 = vld [vmem:[%s198 + $0x10] sm:$0xf]
      %v277 = vld [vmem:[%s198 + $0x14] sm:$0x1]
      %v278 = vld [vmem:[%s198 + $0x18] sm:$0xf]
      %v279 = vld [vmem:[%s198 + $0x1c] sm:$0xf]
      %v280 = vld [vmem:[%s198 + $0x20] sm:$0x1]
      %v281 = vld [vmem:[%s198 + $0x24] sm:$0xf]
      %v282 = vld [vmem:[%s198 + $0x28] sm:$0xf]
      %v283 = vld [vmem:[%s198 + $0x2c] sm:$0x1]
      %v284 = vld [vmem:[%s198 + $0x30] sm:$0xf]
      %v285 = vld [vmem:[%s198 + $0x34] sm:$0xf]
      %v286 = vld [vmem:[%s198 + $0x38] sm:$0x1]
      %v287 = vld [vmem:[%s198 + $0x3c] sm:$0xf]
      %v288 = vld [vmem:[%s198 + $0x40] sm:$0xf]
      %v289 = vld [vmem:[%s198 + $0x44] sm:$0x1]
      %v290 = vld [vmem:[%s198 + $0x48] sm:$0xf]
      %v291 = vld [vmem:[%s198 + $0x4c] sm:$0xf]
      %v292 = vld [vmem:[%s198 + $0x50] sm:$0x1]
      %v293 = vld [vmem:[%s198 + $0x54] sm:$0xf]
      %v294 = vld [vmem:[%s198 + $0x58] sm:$0xf]
      %v295 = vld [vmem:[%s198 + $0x5c] sm:$0x1]
      %vm296 = vsmask.f32 3328
      %vm297 = vsmask.f32 7440
      %vm298 = vmor %vm296, %vm297
      %v300 = vshrl.u32 %v272, 16
      %v302 = vrot.slane %v300, 4
      %v303 = vshll.u32 %v272, 16
      %v305 = vrot.slane %v303, 5
      %v306 = vor.u32 %v302, %v305
      %v307 = vrot.slane %v306, 4
      %v309 = vshll.u32 %v273, 16
      %v311 = vrot.slane %v309, 5
      %v312 = vsel %vm298, %v307, %v311
      %v313 = vshrl.u32 %v273, 16
      %v315 = vrot.slane %v313, 4
      %v316 = vor.u32 %v315, %v311
      %v317 = vrot.slane %v316, 4
      %v319 = vshll.u32 %v274, 16
      %v321 = vrot.slane %v319, 5
      %v322 = vsel %vm298, %v317, %v321
      %v324 = vshrl.u32 %v275, 16
      %v326 = vrot.slane %v324, 4
      %v327 = vshll.u32 %v275, 16
      %v329 = vrot.slane %v327, 5
      %v330 = vor.u32 %v326, %v329
      %v331 = vrot.slane %v330, 4
      %v333 = vshll.u32 %v276, 16
      %v335 = vrot.slane %v333, 5
      %v336 = vsel %vm298, %v331, %v335
      %v337 = vshrl.u32 %v276, 16
      %v339 = vrot.slane %v337, 4
      %v340 = vor.u32 %v339, %v335
      %v341 = vrot.slane %v340, 4
      %v343 = vshll.u32 %v277, 16
      %v345 = vrot.slane %v343, 5
      %v346 = vsel %vm298, %v341, %v345
      %v348 = vshrl.u32 %v278, 16
      %v350 = vrot.slane %v348, 4
      %v351 = vshll.u32 %v278, 16
      %v353 = vrot.slane %v351, 5
      %v354 = vor.u32 %v350, %v353
      %v355 = vrot.slane %v354, 4
      %v357 = vshll.u32 %v279, 16
      %v359 = vrot.slane %v357, 5
      %v360 = vsel %vm298, %v355, %v359
      %v361 = vshrl.u32 %v279, 16
      %v363 = vrot.slane %v361, 4
      %v364 = vor.u32 %v363, %v359
      %v365 = vrot.slane %v364, 4
      %v367 = vshll.u32 %v280, 16
      %v369 = vrot.slane %v367, 5
      %v370 = vsel %vm298, %v365, %v369
      %v372 = vshrl.u32 %v281, 16
      %v374 = vrot.slane %v372, 4
      %v375 = vshll.u32 %v281, 16
      %v377 = vrot.slane %v375, 5
      %v378 = vor.u32 %v374, %v377
      %v379 = vrot.slane %v378, 4
      %v381 = vshll.u32 %v282, 16
      %v383 = vrot.slane %v381, 5
      %v384 = vsel %vm298, %v379, %v383
      %v385 = vshrl.u32 %v282, 16
      %v387 = vrot.slane %v385, 4
      %v388 = vor.u32 %v387, %v383
      %v389 = vrot.slane %v388, 4
      %v391 = vshll.u32 %v283, 16
      %v393 = vrot.slane %v391, 5
      %v394 = vsel %vm298, %v389, %v393
      %v396 = vshrl.u32 %v284, 16
      %v398 = vrot.slane %v396, 4
      %v399 = vshll.u32 %v284, 16
      %v401 = vrot.slane %v399, 5
      %v402 = vor.u32 %v398, %v401
      %v403 = vrot.slane %v402, 4
      %v405 = vshll.u32 %v285, 16
      %v407 = vrot.slane %v405, 5
      %v408 = vsel %vm298, %v403, %v407
      %v409 = vshrl.u32 %v285, 16
      %v411 = vrot.slane %v409, 4
      %v412 = vor.u32 %v411, %v407
      %v413 = vrot.slane %v412, 4
      %v415 = vshll.u32 %v286, 16
      %v417 = vrot.slane %v415, 5
      %v418 = vsel %vm298, %v413, %v417
      %v420 = vshrl.u32 %v287, 16
      %v422 = vrot.slane %v420, 4
      %v423 = vshll.u32 %v287, 16
      %v425 = vrot.slane %v423, 5
      %v426 = vor.u32 %v422, %v425
      %v427 = vrot.slane %v426, 4
      %v429 = vshll.u32 %v288, 16
      %v431 = vrot.slane %v429, 5
      %v432 = vsel %vm298, %v427, %v431
      %v433 = vshrl.u32 %v288, 16
      %v435 = vrot.slane %v433, 4
      %v436 = vor.u32 %v435, %v431
      %v437 = vrot.slane %v436, 4
      %v439 = vshll.u32 %v289, 16
      %v441 = vrot.slane %v439, 5
      %v442 = vsel %vm298, %v437, %v441
      %v444 = vshrl.u32 %v290, 16
      %v446 = vrot.slane %v444, 4
      %v447 = vshll.u32 %v290, 16
      %v449 = vrot.slane %v447, 5
      %v450 = vor.u32 %v446, %v449
      %v451 = vrot.slane %v450, 4
      %v453 = vshll.u32 %v291, 16
      %v455 = vrot.slane %v453, 5
      %v456 = vsel %vm298, %v451, %v455
      %v457 = vshrl.u32 %v291, 16
      %v459 = vrot.slane %v457, 4
      %v460 = vor.u32 %v459, %v455
      %v461 = vrot.slane %v460, 4
      %v463 = vshll.u32 %v292, 16
      %v465 = vrot.slane %v463, 5
      %v466 = vsel %vm298, %v461, %v465
      %v468 = vshrl.u32 %v293, 16
      %v470 = vrot.slane %v468, 4
      %v471 = vshll.u32 %v293, 16
      %v473 = vrot.slane %v471, 5
      %v474 = vor.u32 %v470, %v473
      %v475 = vrot.slane %v474, 4
      %v477 = vshll.u32 %v294, 16
      %v479 = vrot.slane %v477, 5
      %v480 = vsel %vm298, %v475, %v479
      %v481 = vshrl.u32 %v294, 16
      %v483 = vrot.slane %v481, 4
      %v484 = vor.u32 %v483, %v479
      %v485 = vrot.slane %v484, 4
      %v487 = vshll.u32 %v295, 16
      %v489 = vrot.slane %v487, 5
      %v490 = vsel %vm298, %v485, %v489
      %v491 = vunpack.c.l.b16 %v312
      %v492 = vunpack.c.l.b16 %v322
      %v493 = vunpack.c.l.b16 %v336
      %v494 = vunpack.c.l.b16 %v346
      %v495 = vunpack.c.l.b16 %v360
      %v496 = vunpack.c.l.b16 %v370
      %v497 = vunpack.c.l.b16 %v384
      %v498 = vunpack.c.l.b16 %v394
      %v499 = vunpack.c.l.b16 %v408
      %v500 = vunpack.c.l.b16 %v418
      %v501 = vunpack.c.l.b16 %v432
      %v502 = vunpack.c.l.b16 %v442
      %v503 = vunpack.c.l.b16 %v456
      %v504 = vunpack.c.l.b16 %v466
      %v505 = vunpack.c.l.b16 %v480
      %v506 = vunpack.c.l.b16 %v490
      %v507 = vpack.c.b16 %v492, %v491
      %v508 = vpack.c.b16 %v494, %v493
      %v509 = vpack.c.b16 %v496, %v495
      %v510 = vpack.c.b16 %v498, %v497
      %v511 = vpack.c.b16 %v500, %v499
      %v512 = vpack.c.b16 %v502, %v501
      %v513 = vpack.c.b16 %v504, %v503
      %v514 = vpack.c.b16 %v506, %v505
      %515 = vrot.lane.b32.xlu0 %v507, 64
      %v516 = vpop.permute.xlu0 %515
      %517 = vrot.lane.b32.xlu0 %v508, 64
      %v518 = vpop.permute.xlu0 %517
      %519 = vrot.lane.b32.xlu0 %v509, 64
      %v520 = vpop.permute.xlu0 %519
      %521 = vrot.lane.b32.xlu0 %v510, 64
      %v522 = vpop.permute.xlu0 %521
      %523 = vrot.lane.b32.xlu0 %v511, 64
      %v524 = vpop.permute.xlu0 %523
      %525 = vrot.lane.b32.xlu0 %v512, 64
      %v526 = vpop.permute.xlu0 %525
      %527 = vrot.lane.b32.xlu0 %v513, 64
      %v528 = vpop.permute.xlu0 %527
      %529 = vrot.lane.b32.xlu0 %v514, 64
      %v530 = vpop.permute.xlu0 %529
      %vm539 = vcmask 1048064
      %540 = vst.msk [vmem:[#allocation2] sm:$0xff] %vm539, %v516
      %541 = vst.msk [vmem:[#allocation2 + $0x28] sm:$0xff] %vm539, %v518
      %542 = vst.msk [vmem:[#allocation2 + $0x50] sm:$0xff] %vm539, %v520
      %543 = vst.msk [vmem:[#allocation2 + $0x78] sm:$0xff] %vm539, %v522
      %544 = vst.msk [vmem:[#allocation2 + $0xa0] sm:$0xff] %vm539, %v524
      %545 = vst.msk [vmem:[#allocation2 + $0xc8] sm:$0xff] %vm539, %v526
      %546 = vst.msk [vmem:[#allocation2 + $0xf0] sm:$0xff] %vm539, %v528
      %547 = vst.msk [vmem:[#allocation2 + $0x118] sm:$0xff] %vm539, %v530
      %v548 = vld [vmem:[%s198] sm:$0xe]
      %v549 = vld [vmem:[%s198 + $0x4] sm:$0xf]
      %v550 = vld [vmem:[%s198 + $0x8] sm:$0x1]
      %v551 = vld [vmem:[%s198 + $0xc] sm:$0xe]
      %v552 = vld [vmem:[%s198 + $0x10] sm:$0xf]
      %v553 = vld [vmem:[%s198 + $0x14] sm:$0x1]
      %v554 = vld [vmem:[%s198 + $0x18] sm:$0xe]
      %v555 = vld [vmem:[%s198 + $0x1c] sm:$0xf]
      %v556 = vld [vmem:[%s198 + $0x20] sm:$0x1]
      %v557 = vld [vmem:[%s198 + $0x24] sm:$0xe]
      %v558 = vld [vmem:[%s198 + $0x28] sm:$0xf]
      %v559 = vld [vmem:[%s198 + $0x2c] sm:$0x1]
      %v560 = vld [vmem:[%s198 + $0x30] sm:$0xe]
      %v561 = vld [vmem:[%s198 + $0x34] sm:$0xf]
      %v562 = vld [vmem:[%s198 + $0x38] sm:$0x1]
      %v563 = vld [vmem:[%s198 + $0x3c] sm:$0xe]
      %v564 = vld [vmem:[%s198 + $0x40] sm:$0xf]
      %v565 = vld [vmem:[%s198 + $0x44] sm:$0x1]
      %v566 = vld [vmem:[%s198 + $0x48] sm:$0xe]
      %v567 = vld [vmem:[%s198 + $0x4c] sm:$0xf]
      %v568 = vld [vmem:[%s198 + $0x50] sm:$0x1]
      %v569 = vld [vmem:[%s198 + $0x54] sm:$0xe]
      %v570 = vld [vmem:[%s198 + $0x58] sm:$0xf]
      %v571 = vld [vmem:[%s198 + $0x5c] sm:$0x1]
      %vm596 = vcmask 1042432
      %vm597 = vcmask 1046532
      %vm598 = vmor %vm596, %vm597
      %v599 = vrot.slane %v548, 5
      %v600 = vrot.slane %v599, 4
      %v601 = vrot.slane %v549, 5
      %v602 = vsel %vm598, %v600, %v601
      %v603 = vrot.slane %v601, 4
      %v604 = vrot.slane %v550, 5
      %v605 = vsel %vm598, %v603, %v604
      %v606 = vrot.slane %v551, 5
      %v607 = vrot.slane %v606, 4
      %v608 = vrot.slane %v552, 5
      %v609 = vsel %vm598, %v607, %v608
      %v610 = vrot.slane %v608, 4
      %v611 = vrot.slane %v553, 5
      %v612 = vsel %vm598, %v610, %v611
      %v613 = vrot.slane %v554, 5
      %v614 = vrot.slane %v613, 4
      %v615 = vrot.slane %v555, 5
      %v616 = vsel %vm598, %v614, %v615
      %v617 = vrot.slane %v615, 4
      %v618 = vrot.slane %v556, 5
      %v619 = vsel %vm598, %v617, %v618
      %v620 = vrot.slane %v557, 5
      %v621 = vrot.slane %v620, 4
      %v622 = vrot.slane %v558, 5
      %v623 = vsel %vm598, %v621, %v622
      %v624 = vrot.slane %v622, 4
      %v625 = vrot.slane %v559, 5
      %v626 = vsel %vm598, %v624, %v625
      %v627 = vrot.slane %v560, 5
      %v628 = vrot.slane %v627, 4
      %v629 = vrot.slane %v561, 5
      %v630 = vsel %vm598, %v628, %v629
      %v631 = vrot.slane %v629, 4
      %v632 = vrot.slane %v562, 5
      %v633 = vsel %vm598, %v631, %v632
      %v634 = vrot.slane %v563, 5
      %v635 = vrot.slane %v634, 4
      %v636 = vrot.slane %v564, 5
      %v637 = vsel %vm598, %v635, %v636
      %v638 = vrot.slane %v636, 4
      %v639 = vrot.slane %v565, 5
      %v640 = vsel %vm598, %v638, %v639
      %v641 = vrot.slane %v566, 5
      %v642 = vrot.slane %v641, 4
      %v643 = vrot.slane %v567, 5
      %v644 = vsel %vm598, %v642, %v643
      %v645 = vrot.slane %v643, 4
      %v646 = vrot.slane %v568, 5
      %v647 = vsel %vm598, %v645, %v646
      %v648 = vrot.slane %v569, 5
      %v649 = vrot.slane %v648, 4
      %v650 = vrot.slane %v570, 5
      %v651 = vsel %vm598, %v649, %v650
      %v652 = vrot.slane %v650, 4
      %v653 = vrot.slane %v571, 5
      %v654 = vsel %vm598, %v652, %v653
      %v655 = vunpack.c.l.b16 %v602
      %v656 = vunpack.c.l.b16 %v605
      %v657 = vunpack.c.l.b16 %v609
      %v658 = vunpack.c.l.b16 %v612
      %v659 = vunpack.c.l.b16 %v616
      %v660 = vunpack.c.l.b16 %v619
      %v661 = vunpack.c.l.b16 %v623
      %v662 = vunpack.c.l.b16 %v626
      %v663 = vunpack.c.l.b16 %v630
      %v664 = vunpack.c.l.b16 %v633
      %v665 = vunpack.c.l.b16 %v637
      %v666 = vunpack.c.l.b16 %v640
      %v667 = vunpack.c.l.b16 %v644
      %v668 = vunpack.c.l.b16 %v647
      %v669 = vunpack.c.l.b16 %v651
      %v670 = vunpack.c.l.b16 %v654
      %v671 = vpack.c.b16 %v656, %v655
      %v672 = vpack.c.b16 %v658, %v657
      %v673 = vpack.c.b16 %v660, %v659
      %v674 = vpack.c.b16 %v662, %v661
      %v675 = vpack.c.b16 %v664, %v663
      %v676 = vpack.c.b16 %v666, %v665
      %v677 = vpack.c.b16 %v668, %v667
      %v678 = vpack.c.b16 %v670, %v669
      %687 = vst.msk [vmem:[#allocation2 + $0x8] sm:$0xff] %vm263, %v671
      %688 = vst.msk [vmem:[#allocation2 + $0x30] sm:$0xff] %vm263, %v672
      %689 = vst.msk [vmem:[#allocation2 + $0x58] sm:$0xff] %vm263, %v673
      %690 = vst.msk [vmem:[#allocation2 + $0x80] sm:$0xff] %vm263, %v674
      %691 = vst.msk [vmem:[#allocation2 + $0xa8] sm:$0xff] %vm263, %v675
      %692 = vst.msk [vmem:[#allocation2 + $0xd0] sm:$0xff] %vm263, %v676
      %693 = vst.msk [vmem:[#allocation2 + $0xf8] sm:$0xff] %vm263, %v677
      %694 = vst.msk [vmem:[#allocation2 + $0x120] sm:$0xff] %vm263, %v678
      %s695 = sadd.s32 %s195, 1
      %s696 = smul.u32 %s695, 3
      %s697 = smul.addr %s696, 4
      %s698 = scalar_lea.vmem %s183, %s697
      %v699 = vld [vmem:[%s698] sm:$0xf]
      %v700 = vld [vmem:[%s698 + $0x4] sm:$0xf]
      %v701 = vld [vmem:[%s698 + $0xc] sm:$0xf]
      %v702 = vld [vmem:[%s698 + $0x10] sm:$0xf]
      %v703 = vld [vmem:[%s698 + $0x18] sm:$0xf]
      %v704 = vld [vmem:[%s698 + $0x1c] sm:$0xf]
      %v705 = vld [vmem:[%s698 + $0x24] sm:$0xf]
      %v706 = vld [vmem:[%s698 + $0x28] sm:$0xf]
      %v707 = vld [vmem:[%s698 + $0x30] sm:$0xf]
      %v708 = vld [vmem:[%s698 + $0x34] sm:$0xf]
      %v709 = vld [vmem:[%s698 + $0x3c] sm:$0xf]
      %v710 = vld [vmem:[%s698 + $0x40] sm:$0xf]
      %v711 = vld [vmem:[%s698 + $0x48] sm:$0xf]
      %v712 = vld [vmem:[%s698 + $0x4c] sm:$0xf]
      %v713 = vld [vmem:[%s698 + $0x54] sm:$0xf]
      %v714 = vld [vmem:[%s698 + $0x58] sm:$0xf]
      %v731 = vunpack.c.l.b16 %v699
      %v732 = vunpack.c.l.b16 %v700
      %v733 = vunpack.c.l.b16 %v701
      %v734 = vunpack.c.l.b16 %v702
      %v735 = vunpack.c.l.b16 %v703
      %v736 = vunpack.c.l.b16 %v704
      %v737 = vunpack.c.l.b16 %v705
      %v738 = vunpack.c.l.b16 %v706
      %v739 = vunpack.c.l.b16 %v707
      %v740 = vunpack.c.l.b16 %v708
      %v741 = vunpack.c.l.b16 %v709
      %v742 = vunpack.c.l.b16 %v710
      %v743 = vunpack.c.l.b16 %v711
      %v744 = vunpack.c.l.b16 %v712
      %v745 = vunpack.c.l.b16 %v713
      %v746 = vunpack.c.l.b16 %v714
      %v747 = vpack.c.b16 %v732, %v731
      %v748 = vpack.c.b16 %v734, %v733
      %v749 = vpack.c.b16 %v736, %v735
      %v750 = vpack.c.b16 %v738, %v737
      %v751 = vpack.c.b16 %v740, %v739
      %v752 = vpack.c.b16 %v742, %v741
      %v753 = vpack.c.b16 %v744, %v743
      %v754 = vpack.c.b16 %v746, %v745
      %755 = vrot.lane.b32.xlu0 %v747, 64
      %v756 = vpop.permute.xlu0 %755
      %757 = vrot.lane.b32.xlu0 %v748, 64
      %v758 = vpop.permute.xlu0 %757
      %759 = vrot.lane.b32.xlu0 %v749, 64
      %v760 = vpop.permute.xlu0 %759
      %761 = vrot.lane.b32.xlu0 %v750, 64
      %v762 = vpop.permute.xlu0 %761
      %763 = vrot.lane.b32.xlu0 %v751, 64
      %v764 = vpop.permute.xlu0 %763
      %765 = vrot.lane.b32.xlu0 %v752, 64
      %v766 = vpop.permute.xlu0 %765
      %767 = vrot.lane.b32.xlu0 %v753, 64
      %v768 = vpop.permute.xlu0 %767
      %769 = vrot.lane.b32.xlu0 %v754, 64
      %v770 = vpop.permute.xlu0 %769
      %779 = vst.msk [vmem:[#allocation2 + $0x8] sm:$0xff] %vm539, %v756
      %780 = vst.msk [vmem:[#allocation2 + $0x30] sm:$0xff] %vm539, %v758
      %781 = vst.msk [vmem:[#allocation2 + $0x58] sm:$0xff] %vm539, %v760
      %782 = vst.msk [vmem:[#allocation2 + $0x80] sm:$0xff] %vm539, %v762
      %783 = vst.msk [vmem:[#allocation2 + $0xa8] sm:$0xff] %vm539, %v764
      %784 = vst.msk [vmem:[#allocation2 + $0xd0] sm:$0xff] %vm539, %v766
      %785 = vst.msk [vmem:[#allocation2 + $0xf8] sm:$0xff] %vm539, %v768
      %786 = vst.msk [vmem:[#allocation2 + $0x120] sm:$0xff] %vm539, %v770
      %v787 = vld [vmem:[%s698] sm:$0xf]
      %v788 = vld [vmem:[%s698 + $0x4] sm:$0xf]
      %v789 = vld [vmem:[%s698 + $0x8] sm:$0x1]
      %v790 = vld [vmem:[%s698 + $0xc] sm:$0xf]
      %v791 = vld [vmem:[%s698 + $0x10] sm:$0xf]
      %v792 = vld [vmem:[%s698 + $0x14] sm:$0x1]
      %v793 = vld [vmem:[%s698 + $0x18] sm:$0xf]
      %v794 = vld [vmem:[%s698 + $0x1c] sm:$0xf]
      %v795 = vld [vmem:[%s698 + $0x20] sm:$0x1]
      %v796 = vld [vmem:[%s698 + $0x24] sm:$0xf]
      %v797 = vld [vmem:[%s698 + $0x28] sm:$0xf]
      %v798 = vld [vmem:[%s698 + $0x2c] sm:$0x1]
      %v799 = vld [vmem:[%s698 + $0x30] sm:$0xf]
      %v800 = vld [vmem:[%s698 + $0x34] sm:$0xf]
      %v801 = vld [vmem:[%s698 + $0x38] sm:$0x1]
      %v802 = vld [vmem:[%s698 + $0x3c] sm:$0xf]
      %v803 = vld [vmem:[%s698 + $0x40] sm:$0xf]
      %v804 = vld [vmem:[%s698 + $0x44] sm:$0x1]
      %v805 = vld [vmem:[%s698 + $0x48] sm:$0xf]
      %v806 = vld [vmem:[%s698 + $0x4c] sm:$0xf]
      %v807 = vld [vmem:[%s698 + $0x50] sm:$0x1]
      %v808 = vld [vmem:[%s698 + $0x54] sm:$0xf]
      %v809 = vld [vmem:[%s698 + $0x58] sm:$0xf]
      %v810 = vld [vmem:[%s698 + $0x5c] sm:$0x1]
      %v812 = vshrl.u32 %v787, 16
      %v814 = vrot.slane %v812, 4
      %v815 = vshll.u32 %v787, 16
      %v817 = vrot.slane %v815, 5
      %v818 = vor.u32 %v814, %v817
      %v819 = vrot.slane %v818, 4
      %v821 = vshll.u32 %v788, 16
      %v823 = vrot.slane %v821, 5
      %v824 = vsel %vm298, %v819, %v823
      %v825 = vshrl.u32 %v788, 16
      %v827 = vrot.slane %v825, 4
      %v828 = vor.u32 %v827, %v823
      %v829 = vrot.slane %v828, 4
      %v831 = vshll.u32 %v789, 16
      %v833 = vrot.slane %v831, 5
      %v834 = vsel %vm298, %v829, %v833
      %v836 = vshrl.u32 %v790, 16
      %v838 = vrot.slane %v836, 4
      %v839 = vshll.u32 %v790, 16
      %v841 = vrot.slane %v839, 5
      %v842 = vor.u32 %v838, %v841
      %v843 = vrot.slane %v842, 4
      %v845 = vshll.u32 %v791, 16
      %v847 = vrot.slane %v845, 5
      %v848 = vsel %vm298, %v843, %v847
      %v849 = vshrl.u32 %v791, 16
      %v851 = vrot.slane %v849, 4
      %v852 = vor.u32 %v851, %v847
      %v853 = vrot.slane %v852, 4
      %v855 = vshll.u32 %v792, 16
      %v857 = vrot.slane %v855, 5
      %v858 = vsel %vm298, %v853, %v857
      %v860 = vshrl.u32 %v793, 16
      %v862 = vrot.slane %v860, 4
      %v863 = vshll.u32 %v793, 16
      %v865 = vrot.slane %v863, 5
      %v866 = vor.u32 %v862, %v865
      %v867 = vrot.slane %v866, 4
      %v869 = vshll.u32 %v794, 16
      %v871 = vrot.slane %v869, 5
      %v872 = vsel %vm298, %v867, %v871
      %v873 = vshrl.u32 %v794, 16
      %v875 = vrot.slane %v873, 4
      %v876 = vor.u32 %v875, %v871
      %v877 = vrot.slane %v876, 4
      %v879 = vshll.u32 %v795, 16
      %v881 = vrot.slane %v879, 5
      %v882 = vsel %vm298, %v877, %v881
      %v884 = vshrl.u32 %v796, 16
      %v886 = vrot.slane %v884, 4
      %v887 = vshll.u32 %v796, 16
      %v889 = vrot.slane %v887, 5
      %v890 = vor.u32 %v886, %v889
      %v891 = vrot.slane %v890, 4
      %v893 = vshll.u32 %v797, 16
      %v895 = vrot.slane %v893, 5
      %v896 = vsel %vm298, %v891, %v895
      %v897 = vshrl.u32 %v797, 16
      %v899 = vrot.slane %v897, 4
      %v900 = vor.u32 %v899, %v895
      %v901 = vrot.slane %v900, 4
      %v903 = vshll.u32 %v798, 16
      %v905 = vrot.slane %v903, 5
      %v906 = vsel %vm298, %v901, %v905
      %v908 = vshrl.u32 %v799, 16
      %v910 = vrot.slane %v908, 4
      %v911 = vshll.u32 %v799, 16
      %v913 = vrot.slane %v911, 5
      %v914 = vor.u32 %v910, %v913
      %v915 = vrot.slane %v914, 4
      %v917 = vshll.u32 %v800, 16
      %v919 = vrot.slane %v917, 5
      %v920 = vsel %vm298, %v915, %v919
      %v921 = vshrl.u32 %v800, 16
      %v923 = vrot.slane %v921, 4
      %v924 = vor.u32 %v923, %v919
      %v925 = vrot.slane %v924, 4
      %v927 = vshll.u32 %v801, 16
      %v929 = vrot.slane %v927, 5
      %v930 = vsel %vm298, %v925, %v929
      %v932 = vshrl.u32 %v802, 16
      %v934 = vrot.slane %v932, 4
      %v935 = vshll.u32 %v802, 16
      %v937 = vrot.slane %v935, 5
      %v938 = vor.u32 %v934, %v937
      %v939 = vrot.slane %v938, 4
      %v941 = vshll.u32 %v803, 16
      %v943 = vrot.slane %v941, 5
      %v944 = vsel %vm298, %v939, %v943
      %v945 = vshrl.u32 %v803, 16
      %v947 = vrot.slane %v945, 4
      %v948 = vor.u32 %v947, %v943
      %v949 = vrot.slane %v948, 4
      %v951 = vshll.u32 %v804, 16
      %v953 = vrot.slane %v951, 5
      %v954 = vsel %vm298, %v949, %v953
      %v956 = vshrl.u32 %v805, 16
      %v958 = vrot.slane %v956, 4
      %v959 = vshll.u32 %v805, 16
      %v961 = vrot.slane %v959, 5
      %v962 = vor.u32 %v958, %v961
      %v963 = vrot.slane %v962, 4
      %v965 = vshll.u32 %v806, 16
      %v967 = vrot.slane %v965, 5
      %v968 = vsel %vm298, %v963, %v967
      %v969 = vshrl.u32 %v806, 16
      %v971 = vrot.slane %v969, 4
      %v972 = vor.u32 %v971, %v967
      %v973 = vrot.slane %v972, 4
      %v975 = vshll.u32 %v807, 16
      %v977 = vrot.slane %v975, 5
      %v978 = vsel %vm298, %v973, %v977
      %v980 = vshrl.u32 %v808, 16
      %v982 = vrot.slane %v980, 4
      %v983 = vshll.u32 %v808, 16
      %v985 = vrot.slane %v983, 5
      %v986 = vor.u32 %v982, %v985
      %v987 = vrot.slane %v986, 4
      %v989 = vshll.u32 %v809, 16
      %v991 = vrot.slane %v989, 5
      %v992 = vsel %vm298, %v987, %v991
      %v993 = vshrl.u32 %v809, 16
      %v995 = vrot.slane %v993, 4
      %v996 = vor.u32 %v995, %v991
      %v997 = vrot.slane %v996, 4
      %v999 = vshll.u32 %v810, 16
      %v1001 = vrot.slane %v999, 5
      %v1002 = vsel %vm298, %v997, %v1001
      %v1003 = vunpack.c.l.b16 %v824
      %v1004 = vunpack.c.l.b16 %v834
      %v1005 = vunpack.c.l.b16 %v848
      %v1006 = vunpack.c.l.b16 %v858
      %v1007 = vunpack.c.l.b16 %v872
      %v1008 = vunpack.c.l.b16 %v882
      %v1009 = vunpack.c.l.b16 %v896
      %v1010 = vunpack.c.l.b16 %v906
      %v1011 = vunpack.c.l.b16 %v920
      %v1012 = vunpack.c.l.b16 %v930
      %v1013 = vunpack.c.l.b16 %v944
      %v1014 = vunpack.c.l.b16 %v954
      %v1015 = vunpack.c.l.b16 %v968
      %v1016 = vunpack.c.l.b16 %v978
      %v1017 = vunpack.c.l.b16 %v992
      %v1018 = vunpack.c.l.b16 %v1002
      %v1019 = vpack.c.b16 %v1004, %v1003
      %v1020 = vpack.c.b16 %v1006, %v1005
      %v1021 = vpack.c.b16 %v1008, %v1007
      %v1022 = vpack.c.b16 %v1010, %v1009
      %v1023 = vpack.c.b16 %v1012, %v1011
      %v1024 = vpack.c.b16 %v1014, %v1013
      %v1025 = vpack.c.b16 %v1016, %v1015
      %v1026 = vpack.c.b16 %v1018, %v1017
      %1035 = vst.msk [vmem:[#allocation2 + $0x10] sm:$0xff] %vm263, %v1019
      %1036 = vst.msk [vmem:[#allocation2 + $0x38] sm:$0xff] %vm263, %v1020
      %1037 = vst.msk [vmem:[#allocation2 + $0x60] sm:$0xff] %vm263, %v1021
      %1038 = vst.msk [vmem:[#allocation2 + $0x88] sm:$0xff] %vm263, %v1022
      %1039 = vst.msk [vmem:[#allocation2 + $0xb0] sm:$0xff] %vm263, %v1023
      %1040 = vst.msk [vmem:[#allocation2 + $0xd8] sm:$0xff] %vm263, %v1024
      %1041 = vst.msk [vmem:[#allocation2 + $0x100] sm:$0xff] %vm263, %v1025
      %1042 = vst.msk [vmem:[#allocation2 + $0x128] sm:$0xff] %vm263, %v1026
      %v1043 = vld [vmem:[%s698] sm:$0xe]
      %v1044 = vld [vmem:[%s698 + $0x4] sm:$0xf]
      %v1045 = vld [vmem:[%s698 + $0x8] sm:$0x1]
      %v1046 = vld [vmem:[%s698 + $0xc] sm:$0xe]
      %v1047 = vld [vmem:[%s698 + $0x10] sm:$0xf]
      %v1048 = vld [vmem:[%s698 + $0x14] sm:$0x1]
      %v1049 = vld [vmem:[%s698 + $0x18] sm:$0xe]
      %v1050 = vld [vmem:[%s698 + $0x1c] sm:$0xf]
      %v1051 = vld [vmem:[%s698 + $0x20] sm:$0x1]
      %v1052 = vld [vmem:[%s698 + $0x24] sm:$0xe]
      %v1053 = vld [vmem:[%s698 + $0x28] sm:$0xf]
      %v1054 = vld [vmem:[%s698 + $0x2c] sm:$0x1]
      %v1055 = vld [vmem:[%s698 + $0x30] sm:$0xe]
      %v1056 = vld [vmem:[%s698 + $0x34] sm:$0xf]
      %v1057 = vld [vmem:[%s698 + $0x38] sm:$0x1]
      %v1058 = vld [vmem:[%s698 + $0x3c] sm:$0xe]
      %v1059 = vld [vmem:[%s698 + $0x40] sm:$0xf]
      %v1060 = vld [vmem:[%s698 + $0x44] sm:$0x1]
      %v1061 = vld [vmem:[%s698 + $0x48] sm:$0xe]
      %v1062 = vld [vmem:[%s698 + $0x4c] sm:$0xf]
      %v1063 = vld [vmem:[%s698 + $0x50] sm:$0x1]
      %v1064 = vld [vmem:[%s698 + $0x54] sm:$0xe]
      %v1065 = vld [vmem:[%s698 + $0x58] sm:$0xf]
      %v1066 = vld [vmem:[%s698 + $0x5c] sm:$0x1]
      %v1091 = vrot.slane %v1043, 5
      %v1092 = vrot.slane %v1091, 4
      %v1093 = vrot.slane %v1044, 5
      %v1094 = vsel %vm598, %v1092, %v1093
      %v1095 = vrot.slane %v1093, 4
      %v1096 = vrot.slane %v1045, 5
      %v1097 = vsel %vm598, %v1095, %v1096
      %v1098 = vrot.slane %v1046, 5
      %v1099 = vrot.slane %v1098, 4
      %v1100 = vrot.slane %v1047, 5
      %v1101 = vsel %vm598, %v1099, %v1100
      %v1102 = vrot.slane %v1100, 4
      %v1103 = vrot.slane %v1048, 5
      %v1104 = vsel %vm598, %v1102, %v1103
      %v1105 = vrot.slane %v1049, 5
      %v1106 = vrot.slane %v1105, 4
      %v1107 = vrot.slane %v1050, 5
      %v1108 = vsel %vm598, %v1106, %v1107
      %v1109 = vrot.slane %v1107, 4
      %v1110 = vrot.slane %v1051, 5
      %v1111 = vsel %vm598, %v1109, %v1110
      %v1112 = vrot.slane %v1052, 5
      %v1113 = vrot.slane %v1112, 4
      %v1114 = vrot.slane %v1053, 5
      %v1115 = vsel %vm598, %v1113, %v1114
      %v1116 = vrot.slane %v1114, 4
      %v1117 = vrot.slane %v1054, 5
      %v1118 = vsel %vm598, %v1116, %v1117
      %v1119 = vrot.slane %v1055, 5
      %v1120 = vrot.slane %v1119, 4
      %v1121 = vrot.slane %v1056, 5
      %v1122 = vsel %vm598, %v1120, %v1121
      %v1123 = vrot.slane %v1121, 4
      %v1124 = vrot.slane %v1057, 5
      %v1125 = vsel %vm598, %v1123, %v1124
      %v1126 = vrot.slane %v1058, 5
      %v1127 = vrot.slane %v1126, 4
      %v1128 = vrot.slane %v1059, 5
      %v1129 = vsel %vm598, %v1127, %v1128
      %v1130 = vrot.slane %v1128, 4
      %v1131 = vrot.slane %v1060, 5
      %v1132 = vsel %vm598, %v1130, %v1131
      %v1133 = vrot.slane %v1061, 5
      %v1134 = vrot.slane %v1133, 4
      %v1135 = vrot.slane %v1062, 5
      %v1136 = vsel %vm598, %v1134, %v1135
      %v1137 = vrot.slane %v1135, 4
      %v1138 = vrot.slane %v1063, 5
      %v1139 = vsel %vm598, %v1137, %v1138
      %v1140 = vrot.slane %v1064, 5
      %v1141 = vrot.slane %v1140, 4
      %v1142 = vrot.slane %v1065, 5
      %v1143 = vsel %vm598, %v1141, %v1142
      %v1144 = vrot.slane %v1142, 4
      %v1145 = vrot.slane %v1066, 5
      %v1146 = vsel %vm598, %v1144, %v1145
      %v1147 = vunpack.c.l.b16 %v1094
      %v1148 = vunpack.c.l.b16 %v1097
      %v1149 = vunpack.c.l.b16 %v1101
      %v1150 = vunpack.c.l.b16 %v1104
      %v1151 = vunpack.c.l.b16 %v1108
      %v1152 = vunpack.c.l.b16 %v1111
      %v1153 = vunpack.c.l.b16 %v1115
      %v1154 = vunpack.c.l.b16 %v1118
      %v1155 = vunpack.c.l.b16 %v1122
      %v1156 = vunpack.c.l.b16 %v1125
      %v1157 = vunpack.c.l.b16 %v1129
      %v1158 = vunpack.c.l.b16 %v1132
      %v1159 = vunpack.c.l.b16 %v1136
      %v1160 = vunpack.c.l.b16 %v1139
      %v1161 = vunpack.c.l.b16 %v1143
      %v1162 = vunpack.c.l.b16 %v1146
      %v1163 = vpack.c.b16 %v1148, %v1147
      %v1164 = vpack.c.b16 %v1150, %v1149
      %v1165 = vpack.c.b16 %v1152, %v1151
      %v1166 = vpack.c.b16 %v1154, %v1153
      %v1167 = vpack.c.b16 %v1156, %v1155
      %v1168 = vpack.c.b16 %v1158, %v1157
      %v1169 = vpack.c.b16 %v1160, %v1159
      %v1170 = vpack.c.b16 %v1162, %v1161
      %1171 = vrot.lane.b32.xlu0 %v1163, 64
      %v1172 = vpop.permute.xlu0 %1171
      %1173 = vrot.lane.b32.xlu0 %v1164, 64
      %v1174 = vpop.permute.xlu0 %1173
      %1175 = vrot.lane.b32.xlu0 %v1165, 64
      %v1176 = vpop.permute.xlu0 %1175
      %1177 = vrot.lane.b32.xlu0 %v1166, 64
      %v1178 = vpop.permute.xlu0 %1177
      %1179 = vrot.lane.b32.xlu0 %v1167, 64
      %v1180 = vpop.permute.xlu0 %1179
      %1181 = vrot.lane.b32.xlu0 %v1168, 64
      %v1182 = vpop.permute.xlu0 %1181
      %1183 = vrot.lane.b32.xlu0 %v1169, 64
      %v1184 = vpop.permute.xlu0 %1183
      %1185 = vrot.lane.b32.xlu0 %v1170, 64
      %v1186 = vpop.permute.xlu0 %1185
      %1195 = vst.msk [vmem:[#allocation2 + $0x10] sm:$0xff] %vm539, %v1172
      %1196 = vst.msk [vmem:[#allocation2 + $0x38] sm:$0xff] %vm539, %v1174
      %1197 = vst.msk [vmem:[#allocation2 + $0x60] sm:$0xff] %vm539, %v1176
      %1198 = vst.msk [vmem:[#allocation2 + $0x88] sm:$0xff] %vm539, %v1178
      %1199 = vst.msk [vmem:[#allocation2 + $0xb0] sm:$0xff] %vm539, %v1180
      %1200 = vst.msk [vmem:[#allocation2 + $0xd8] sm:$0xff] %vm539, %v1182
      %1201 = vst.msk [vmem:[#allocation2 + $0x100] sm:$0xff] %vm539, %v1184
      %1202 = vst.msk [vmem:[#allocation2 + $0x128] sm:$0xff] %vm539, %v1186
      %s1203 = sadd.s32 %s195, 2
      %s1204 = smul.u32 %s1203, 3
      %s1205 = smul.addr %s1204, 4
      %s1206 = scalar_lea.vmem %s183, %s1205
      %v1207 = vld [vmem:[%s1206] sm:$0xf]
      %v1208 = vld [vmem:[%s1206 + $0x4] sm:$0xf]
      %v1209 = vld [vmem:[%s1206 + $0xc] sm:$0xf]
      %v1210 = vld [vmem:[%s1206 + $0x10] sm:$0xf]
      %v1211 = vld [vmem:[%s1206 + $0x18] sm:$0xf]
      %v1212 = vld [vmem:[%s1206 + $0x1c] sm:$0xf]
      %v1213 = vld [vmem:[%s1206 + $0x24] sm:$0xf]
      %v1214 = vld [vmem:[%s1206 + $0x28] sm:$0xf]
      %v1215 = vld [vmem:[%s1206 + $0x30] sm:$0xf]
      %v1216 = vld [vmem:[%s1206 + $0x34] sm:$0xf]
      %v1217 = vld [vmem:[%s1206 + $0x3c] sm:$0xf]
      %v1218 = vld [vmem:[%s1206 + $0x40] sm:$0xf]
      %v1219 = vld [vmem:[%s1206 + $0x48] sm:$0xf]
      %v1220 = vld [vmem:[%s1206 + $0x4c] sm:$0xf]
      %v1221 = vld [vmem:[%s1206 + $0x54] sm:$0xf]
      %v1222 = vld [vmem:[%s1206 + $0x58] sm:$0xf]
      %v1239 = vunpack.c.l.b16 %v1207
      %v1240 = vunpack.c.l.b16 %v1208
      %v1241 = vunpack.c.l.b16 %v1209
      %v1242 = vunpack.c.l.b16 %v1210
      %v1243 = vunpack.c.l.b16 %v1211
      %v1244 = vunpack.c.l.b16 %v1212
      %v1245 = vunpack.c.l.b16 %v1213
      %v1246 = vunpack.c.l.b16 %v1214
      %v1247 = vunpack.c.l.b16 %v1215
      %v1248 = vunpack.c.l.b16 %v1216
      %v1249 = vunpack.c.l.b16 %v1217
      %v1250 = vunpack.c.l.b16 %v1218
      %v1251 = vunpack.c.l.b16 %v1219
      %v1252 = vunpack.c.l.b16 %v1220
      %v1253 = vunpack.c.l.b16 %v1221
      %v1254 = vunpack.c.l.b16 %v1222
      %v1255 = vpack.c.b16 %v1240, %v1239
      %v1256 = vpack.c.b16 %v1242, %v1241
      %v1257 = vpack.c.b16 %v1244, %v1243
      %v1258 = vpack.c.b16 %v1246, %v1245
      %v1259 = vpack.c.b16 %v1248, %v1247
      %v1260 = vpack.c.b16 %v1250, %v1249
      %v1261 = vpack.c.b16 %v1252, %v1251
      %v1262 = vpack.c.b16 %v1254, %v1253
      %1271 = vst.msk [vmem:[#allocation2 + $0x18] sm:$0xff] %vm263, %v1255
      %1272 = vst.msk [vmem:[#allocation2 + $0x40] sm:$0xff] %vm263, %v1256
      %1273 = vst.msk [vmem:[#allocation2 + $0x68] sm:$0xff] %vm263, %v1257
      %1274 = vst.msk [vmem:[#allocation2 + $0x90] sm:$0xff] %vm263, %v1258
      %1275 = vst.msk [vmem:[#allocation2 + $0xb8] sm:$0xff] %vm263, %v1259
      %1276 = vst.msk [vmem:[#allocation2 + $0xe0] sm:$0xff] %vm263, %v1260
      %1277 = vst.msk [vmem:[#allocation2 + $0x108] sm:$0xff] %vm263, %v1261
      %1278 = vst.msk [vmem:[#allocation2 + $0x130] sm:$0xff] %vm263, %v1262
      %v1279 = vld [vmem:[%s1206] sm:$0xf]
      %v1280 = vld [vmem:[%s1206 + $0x4] sm:$0xf]
      %v1281 = vld [vmem:[%s1206 + $0x8] sm:$0x1]
      %v1282 = vld [vmem:[%s1206 + $0xc] sm:$0xf]
      %v1283 = vld [vmem:[%s1206 + $0x10] sm:$0xf]
      %v1284 = vld [vmem:[%s1206 + $0x14] sm:$0x1]
      %v1285 = vld [vmem:[%s1206 + $0x18] sm:$0xf]
      %v1286 = vld [vmem:[%s1206 + $0x1c] sm:$0xf]
      %v1287 = vld [vmem:[%s1206 + $0x20] sm:$0x1]
      %v1288 = vld [vmem:[%s1206 + $0x24] sm:$0xf]
      %v1289 = vld [vmem:[%s1206 + $0x28] sm:$0xf]
      %v1290 = vld [vmem:[%s1206 + $0x2c] sm:$0x1]
      %v1291 = vld [vmem:[%s1206 + $0x30] sm:$0xf]
      %v1292 = vld [vmem:[%s1206 + $0x34] sm:$0xf]
      %v1293 = vld [vmem:[%s1206 + $0x38] sm:$0x1]
      %v1294 = vld [vmem:[%s1206 + $0x3c] sm:$0xf]
      %v1295 = vld [vmem:[%s1206 + $0x40] sm:$0xf]
      %v1296 = vld [vmem:[%s1206 + $0x44] sm:$0x1]
      %v1297 = vld [vmem:[%s1206 + $0x48] sm:$0xf]
      %v1298 = vld [vmem:[%s1206 + $0x4c] sm:$0xf]
      %v1299 = vld [vmem:[%s1206 + $0x50] sm:$0x1]
      %v1300 = vld [vmem:[%s1206 + $0x54] sm:$0xf]
      %v1301 = vld [vmem:[%s1206 + $0x58] sm:$0xf]
      %v1302 = vld [vmem:[%s1206 + $0x5c] sm:$0x1]
      %v1304 = vshrl.u32 %v1279, 16
      %v1306 = vrot.slane %v1304, 4
      %v1307 = vshll.u32 %v1279, 16
      %v1309 = vrot.slane %v1307, 5
      %v1310 = vor.u32 %v1306, %v1309
      %v1311 = vrot.slane %v1310, 4
      %v1313 = vshll.u32 %v1280, 16
      %v1315 = vrot.slane %v1313, 5
      %v1316 = vsel %vm298, %v1311, %v1315
      %v1317 = vshrl.u32 %v1280, 16
      %v1319 = vrot.slane %v1317, 4
      %v1320 = vor.u32 %v1319, %v1315
      %v1321 = vrot.slane %v1320, 4
      %v1323 = vshll.u32 %v1281, 16
      %v1325 = vrot.slane %v1323, 5
      %v1326 = vsel %vm298, %v1321, %v1325
      %v1328 = vshrl.u32 %v1282, 16
      %v1330 = vrot.slane %v1328, 4
      %v1331 = vshll.u32 %v1282, 16
      %v1333 = vrot.slane %v1331, 5
      %v1334 = vor.u32 %v1330, %v1333
      %v1335 = vrot.slane %v1334, 4
      %v1337 = vshll.u32 %v1283, 16
      %v1339 = vrot.slane %v1337, 5
      %v1340 = vsel %vm298, %v1335, %v1339
      %v1341 = vshrl.u32 %v1283, 16
      %v1343 = vrot.slane %v1341, 4
      %v1344 = vor.u32 %v1343, %v1339
      %v1345 = vrot.slane %v1344, 4
      %v1347 = vshll.u32 %v1284, 16
      %v1349 = vrot.slane %v1347, 5
      %v1350 = vsel %vm298, %v1345, %v1349
      %v1352 = vshrl.u32 %v1285, 16
      %v1354 = vrot.slane %v1352, 4
      %v1355 = vshll.u32 %v1285, 16
      %v1357 = vrot.slane %v1355, 5
      %v1358 = vor.u32 %v1354, %v1357
      %v1359 = vrot.slane %v1358, 4
      %v1361 = vshll.u32 %v1286, 16
      %v1363 = vrot.slane %v1361, 5
      %v1364 = vsel %vm298, %v1359, %v1363
      %v1365 = vshrl.u32 %v1286, 16
      %v1367 = vrot.slane %v1365, 4
      %v1368 = vor.u32 %v1367, %v1363
      %v1369 = vrot.slane %v1368, 4
      %v1371 = vshll.u32 %v1287, 16
      %v1373 = vrot.slane %v1371, 5
      %v1374 = vsel %vm298, %v1369, %v1373
      %v1376 = vshrl.u32 %v1288, 16
      %v1378 = vrot.slane %v1376, 4
      %v1379 = vshll.u32 %v1288, 16
      %v1381 = vrot.slane %v1379, 5
      %v1382 = vor.u32 %v1378, %v1381
      %v1383 = vrot.slane %v1382, 4
      %v1385 = vshll.u32 %v1289, 16
      %v1387 = vrot.slane %v1385, 5
      %v1388 = vsel %vm298, %v1383, %v1387
      %v1389 = vshrl.u32 %v1289, 16
      %v1391 = vrot.slane %v1389, 4
      %v1392 = vor.u32 %v1391, %v1387
      %v1393 = vrot.slane %v1392, 4
      %v1395 = vshll.u32 %v1290, 16
      %v1397 = vrot.slane %v1395, 5
      %v1398 = vsel %vm298, %v1393, %v1397
      %v1400 = vshrl.u32 %v1291, 16
      %v1402 = vrot.slane %v1400, 4
      %v1403 = vshll.u32 %v1291, 16
      %v1405 = vrot.slane %v1403, 5
      %v1406 = vor.u32 %v1402, %v1405
      %v1407 = vrot.slane %v1406, 4
      %v1409 = vshll.u32 %v1292, 16
      %v1411 = vrot.slane %v1409, 5
      %v1412 = vsel %vm298, %v1407, %v1411
      %v1413 = vshrl.u32 %v1292, 16
      %v1415 = vrot.slane %v1413, 4
      %v1416 = vor.u32 %v1415, %v1411
      %v1417 = vrot.slane %v1416, 4
      %v1419 = vshll.u32 %v1293, 16
      %v1421 = vrot.slane %v1419, 5
      %v1422 = vsel %vm298, %v1417, %v1421
      %v1424 = vshrl.u32 %v1294, 16
      %v1426 = vrot.slane %v1424, 4
      %v1427 = vshll.u32 %v1294, 16
      %v1429 = vrot.slane %v1427, 5
      %v1430 = vor.u32 %v1426, %v1429
      %v1431 = vrot.slane %v1430, 4
      %v1433 = vshll.u32 %v1295, 16
      %v1435 = vrot.slane %v1433, 5
      %v1436 = vsel %vm298, %v1431, %v1435
      %v1437 = vshrl.u32 %v1295, 16
      %v1439 = vrot.slane %v1437, 4
      %v1440 = vor.u32 %v1439, %v1435
      %v1441 = vrot.slane %v1440, 4
      %v1443 = vshll.u32 %v1296, 16
      %v1445 = vrot.slane %v1443, 5
      %v1446 = vsel %vm298, %v1441, %v1445
      %v1448 = vshrl.u32 %v1297, 16
      %v1450 = vrot.slane %v1448, 4
      %v1451 = vshll.u32 %v1297, 16
      %v1453 = vrot.slane %v1451, 5
      %v1454 = vor.u32 %v1450, %v1453
      %v1455 = vrot.slane %v1454, 4
      %v1457 = vshll.u32 %v1298, 16
      %v1459 = vrot.slane %v1457, 5
      %v1460 = vsel %vm298, %v1455, %v1459
      %v1461 = vshrl.u32 %v1298, 16
      %v1463 = vrot.slane %v1461, 4
      %v1464 = vor.u32 %v1463, %v1459
      %v1465 = vrot.slane %v1464, 4
      %v1467 = vshll.u32 %v1299, 16
      %v1469 = vrot.slane %v1467, 5
      %v1470 = vsel %vm298, %v1465, %v1469
      %v1472 = vshrl.u32 %v1300, 16
      %v1474 = vrot.slane %v1472, 4
      %v1475 = vshll.u32 %v1300, 16
      %v1477 = vrot.slane %v1475, 5
      %v1478 = vor.u32 %v1474, %v1477
      %v1479 = vrot.slane %v1478, 4
      %v1481 = vshll.u32 %v1301, 16
      %v1483 = vrot.slane %v1481, 5
      %v1484 = vsel %vm298, %v1479, %v1483
      %v1485 = vshrl.u32 %v1301, 16
      %v1487 = vrot.slane %v1485, 4
      %v1488 = vor.u32 %v1487, %v1483
      %v1489 = vrot.slane %v1488, 4
      %v1491 = vshll.u32 %v1302, 16
      %v1493 = vrot.slane %v1491, 5
      %v1494 = vsel %vm298, %v1489, %v1493
      %v1495 = vunpack.c.l.b16 %v1316
      %v1496 = vunpack.c.l.b16 %v1326
      %v1497 = vunpack.c.l.b16 %v1340
      %v1498 = vunpack.c.l.b16 %v1350
      %v1499 = vunpack.c.l.b16 %v1364
      %v1500 = vunpack.c.l.b16 %v1374
      %v1501 = vunpack.c.l.b16 %v1388
      %v1502 = vunpack.c.l.b16 %v1398
      %v1503 = vunpack.c.l.b16 %v1412
      %v1504 = vunpack.c.l.b16 %v1422
      %v1505 = vunpack.c.l.b16 %v1436
      %v1506 = vunpack.c.l.b16 %v1446
      %v1507 = vunpack.c.l.b16 %v1460
      %v1508 = vunpack.c.l.b16 %v1470
      %v1509 = vunpack.c.l.b16 %v1484
      %v1510 = vunpack.c.l.b16 %v1494
      %v1511 = vpack.c.b16 %v1496, %v1495
      %v1512 = vpack.c.b16 %v1498, %v1497
      %v1513 = vpack.c.b16 %v1500, %v1499
      %v1514 = vpack.c.b16 %v1502, %v1501
      %v1515 = vpack.c.b16 %v1504, %v1503
      %v1516 = vpack.c.b16 %v1506, %v1505
      %v1517 = vpack.c.b16 %v1508, %v1507
      %v1518 = vpack.c.b16 %v1510, %v1509
      %1519 = vrot.lane.b32.xlu0 %v1511, 64
      %v1520 = vpop.permute.xlu0 %1519
      %1521 = vrot.lane.b32.xlu0 %v1512, 64
      %v1522 = vpop.permute.xlu0 %1521
      %1523 = vrot.lane.b32.xlu0 %v1513, 64
      %v1524 = vpop.permute.xlu0 %1523
      %1525 = vrot.lane.b32.xlu0 %v1514, 64
      %v1526 = vpop.permute.xlu0 %1525
      %1527 = vrot.lane.b32.xlu0 %v1515, 64
      %v1528 = vpop.permute.xlu0 %1527
      %1529 = vrot.lane.b32.xlu0 %v1516, 64
      %v1530 = vpop.permute.xlu0 %1529
      %1531 = vrot.lane.b32.xlu0 %v1517, 64
      %v1532 = vpop.permute.xlu0 %1531
      %1533 = vrot.lane.b32.xlu0 %v1518, 64
      %v1534 = vpop.permute.xlu0 %1533
      %1543 = vst.msk [vmem:[#allocation2 + $0x18] sm:$0xff] %vm539, %v1520
      %1544 = vst.msk [vmem:[#allocation2 + $0x40] sm:$0xff] %vm539, %v1522
      %1545 = vst.msk [vmem:[#allocation2 + $0x68] sm:$0xff] %vm539, %v1524
      %1546 = vst.msk [vmem:[#allocation2 + $0x90] sm:$0xff] %vm539, %v1526
      %1547 = vst.msk [vmem:[#allocation2 + $0xb8] sm:$0xff] %vm539, %v1528
      %1548 = vst.msk [vmem:[#allocation2 + $0xe0] sm:$0xff] %vm539, %v1530
      %1549 = vst.msk [vmem:[#allocation2 + $0x108] sm:$0xff] %vm539, %v1532
      %1550 = vst.msk [vmem:[#allocation2 + $0x130] sm:$0xff] %vm539, %v1534
      %v1551 = vld [vmem:[%s1206] sm:$0xe]
      %v1552 = vld [vmem:[%s1206 + $0x4] sm:$0xf]
      %v1553 = vld [vmem:[%s1206 + $0x8] sm:$0x1]
      %v1554 = vld [vmem:[%s1206 + $0xc] sm:$0xe]
      %v1555 = vld [vmem:[%s1206 + $0x10] sm:$0xf]
      %v1556 = vld [vmem:[%s1206 + $0x14] sm:$0x1]
      %v1557 = vld [vmem:[%s1206 + $0x18] sm:$0xe]
      %v1558 = vld [vmem:[%s1206 + $0x1c] sm:$0xf]
      %v1559 = vld [vmem:[%s1206 + $0x20] sm:$0x1]
      %v1560 = vld [vmem:[%s1206 + $0x24] sm:$0xe]
      %v1561 = vld [vmem:[%s1206 + $0x28] sm:$0xf]
      %v1562 = vld [vmem:[%s1206 + $0x2c] sm:$0x1]
      %v1563 = vld [vmem:[%s1206 + $0x30] sm:$0xe]
      %v1564 = vld [vmem:[%s1206 + $0x34] sm:$0xf]
      %v1565 = vld [vmem:[%s1206 + $0x38] sm:$0x1]
      %v1566 = vld [vmem:[%s1206 + $0x3c] sm:$0xe]
      %v1567 = vld [vmem:[%s1206 + $0x40] sm:$0xf]
      %v1568 = vld [vmem:[%s1206 + $0x44] sm:$0x1]
      %v1569 = vld [vmem:[%s1206 + $0x48] sm:$0xe]
      %v1570 = vld [vmem:[%s1206 + $0x4c] sm:$0xf]
      %v1571 = vld [vmem:[%s1206 + $0x50] sm:$0x1]
      %v1572 = vld [vmem:[%s1206 + $0x54] sm:$0xe]
      %v1573 = vld [vmem:[%s1206 + $0x58] sm:$0xf]
      %v1574 = vld [vmem:[%s1206 + $0x5c] sm:$0x1]
      %v1599 = vrot.slane %v1551, 5
      %v1600 = vrot.slane %v1599, 4
      %v1601 = vrot.slane %v1552, 5
      %v1602 = vsel %vm598, %v1600, %v1601
      %v1603 = vrot.slane %v1601, 4
      %v1604 = vrot.slane %v1553, 5
      %v1605 = vsel %vm598, %v1603, %v1604
      %v1606 = vrot.slane %v1554, 5
      %v1607 = vrot.slane %v1606, 4
      %v1608 = vrot.slane %v1555, 5
      %v1609 = vsel %vm598, %v1607, %v1608
      %v1610 = vrot.slane %v1608, 4
      %v1611 = vrot.slane %v1556, 5
      %v1612 = vsel %vm598, %v1610, %v1611
      %v1613 = vrot.slane %v1557, 5
      %v1614 = vrot.slane %v1613, 4
      %v1615 = vrot.slane %v1558, 5
      %v1616 = vsel %vm598, %v1614, %v1615
      %v1617 = vrot.slane %v1615, 4
      %v1618 = vrot.slane %v1559, 5
      %v1619 = vsel %vm598, %v1617, %v1618
      %v1620 = vrot.slane %v1560, 5
      %v1621 = vrot.slane %v1620, 4
      %v1622 = vrot.slane %v1561, 5
      %v1623 = vsel %vm598, %v1621, %v1622
      %v1624 = vrot.slane %v1622, 4
      %v1625 = vrot.slane %v1562, 5
      %v1626 = vsel %vm598, %v1624, %v1625
      %v1627 = vrot.slane %v1563, 5
      %v1628 = vrot.slane %v1627, 4
      %v1629 = vrot.slane %v1564, 5
      %v1630 = vsel %vm598, %v1628, %v1629
      %v1631 = vrot.slane %v1629, 4
      %v1632 = vrot.slane %v1565, 5
      %v1633 = vsel %vm598, %v1631, %v1632
      %v1634 = vrot.slane %v1566, 5
      %v1635 = vrot.slane %v1634, 4
      %v1636 = vrot.slane %v1567, 5
      %v1637 = vsel %vm598, %v1635, %v1636
      %v1638 = vrot.slane %v1636, 4
      %v1639 = vrot.slane %v1568, 5
      %v1640 = vsel %vm598, %v1638, %v1639
      %v1641 = vrot.slane %v1569, 5
      %v1642 = vrot.slane %v1641, 4
      %v1643 = vrot.slane %v1570, 5
      %v1644 = vsel %vm598, %v1642, %v1643
      %v1645 = vrot.slane %v1643, 4
      %v1646 = vrot.slane %v1571, 5
      %v1647 = vsel %vm598, %v1645, %v1646
      %v1648 = vrot.slane %v1572, 5
      %v1649 = vrot.slane %v1648, 4
      %v1650 = vrot.slane %v1573, 5
      %v1651 = vsel %vm598, %v1649, %v1650
      %v1652 = vrot.slane %v1650, 4
      %v1653 = vrot.slane %v1574, 5
      %v1654 = vsel %vm598, %v1652, %v1653
      %v1655 = vunpack.c.l.b16 %v1602
      %v1656 = vunpack.c.l.b16 %v1605
      %v1657 = vunpack.c.l.b16 %v1609
      %v1658 = vunpack.c.l.b16 %v1612
      %v1659 = vunpack.c.l.b16 %v1616
      %v1660 = vunpack.c.l.b16 %v1619
      %v1661 = vunpack.c.l.b16 %v1623
      %v1662 = vunpack.c.l.b16 %v1626
      %v1663 = vunpack.c.l.b16 %v1630
      %v1664 = vunpack.c.l.b16 %v1633
      %v1665 = vunpack.c.l.b16 %v1637
      %v1666 = vunpack.c.l.b16 %v1640
      %v1667 = vunpack.c.l.b16 %v1644
      %v1668 = vunpack.c.l.b16 %v1647
      %v1669 = vunpack.c.l.b16 %v1651
      %v1670 = vunpack.c.l.b16 %v1654
      %v1671 = vpack.c.b16 %v1656, %v1655
      %v1672 = vpack.c.b16 %v1658, %v1657
      %v1673 = vpack.c.b16 %v1660, %v1659
      %v1674 = vpack.c.b16 %v1662, %v1661
      %v1675 = vpack.c.b16 %v1664, %v1663
      %v1676 = vpack.c.b16 %v1666, %v1665
      %v1677 = vpack.c.b16 %v1668, %v1667
      %v1678 = vpack.c.b16 %v1670, %v1669
      %1687 = vst.msk [vmem:[#allocation2 + $0x20] sm:$0xff] %vm263, %v1671
      %1688 = vst.msk [vmem:[#allocation2 + $0x48] sm:$0xff] %vm263, %v1672
      %1689 = vst.msk [vmem:[#allocation2 + $0x70] sm:$0xff] %vm263, %v1673
      %1690 = vst.msk [vmem:[#allocation2 + $0x98] sm:$0xff] %vm263, %v1674
      %1691 = vst.msk [vmem:[#allocation2 + $0xc0] sm:$0xff] %vm263, %v1675
      %1692 = vst.msk [vmem:[#allocation2 + $0xe8] sm:$0xff] %vm263, %v1676
      %1693 = vst.msk [vmem:[#allocation2 + $0x110] sm:$0xff] %vm263, %v1677
      %1694 = vst.msk [vmem:[#allocation2 + $0x138] sm:$0xff] %vm263, %v1678
      %v1695 = vld [vmem:[#allocation2] sm:$0xff]
      %v1696 = vld [vmem:[#allocation2 + $0x8] sm:$0xff]
      %v1697 = vld [vmem:[#allocation2 + $0x10] sm:$0xff]
      %v1698 = vld [vmem:[#allocation2 + $0x18] sm:$0xff]
      %v1699 = vld [vmem:[#allocation2 + $0x20] sm:$0xff]
      %v1700 = vld [vmem:[#allocation2 + $0x28] sm:$0xff]
      %v1701 = vld [vmem:[#allocation2 + $0x30] sm:$0xff]
      %v1702 = vld [vmem:[#allocation2 + $0x38] sm:$0xff]
      %v1703 = vld [vmem:[#allocation2 + $0x40] sm:$0xff]
      %v1704 = vld [vmem:[#allocation2 + $0x48] sm:$0xff]
      %v1705 = vld [vmem:[#allocation2 + $0x50] sm:$0xff]
      %v1706 = vld [vmem:[#allocation2 + $0x58] sm:$0xff]
      %v1707 = vld [vmem:[#allocation2 + $0x60] sm:$0xff]
      %v1708 = vld [vmem:[#allocation2 + $0x68] sm:$0xff]
      %v1709 = vld [vmem:[#allocation2 + $0x70] sm:$0xff]
      %v1710 = vld [vmem:[#allocation2 + $0x78] sm:$0xff]
      %v1711 = vld [vmem:[#allocation2 + $0x80] sm:$0xff]
      %v1712 = vld [vmem:[#allocation2 + $0x88] sm:$0xff]
      %v1713 = vld [vmem:[#allocation2 + $0x90] sm:$0xff]
      %v1714 = vld [vmem:[#allocation2 + $0x98] sm:$0xff]
      %v1715 = vld [vmem:[#allocation2 + $0xa0] sm:$0xff]
      %v1716 = vld [vmem:[#allocation2 + $0xa8] sm:$0xff]
      %v1717 = vld [vmem:[#allocation2 + $0xb0] sm:$0xff]
      %v1718 = vld [vmem:[#allocation2 + $0xb8] sm:$0xff]
      %v1719 = vld [vmem:[#allocation2 + $0xc0] sm:$0xff]
      %v1720 = vld [vmem:[#allocation2 + $0xc8] sm:$0xff]
      %v1721 = vld [vmem:[#allocation2 + $0xd0] sm:$0xff]
      %v1722 = vld [vmem:[#allocation2 + $0xd8] sm:$0xff]
      %v1723 = vld [vmem:[#allocation2 + $0xe0] sm:$0xff]
      %v1724 = vld [vmem:[#allocation2 + $0xe8] sm:$0xff]
      %v1725 = vld [vmem:[#allocation2 + $0xf0] sm:$0xff]
      %v1726 = vld [vmem:[#allocation2 + $0xf8] sm:$0xff]
      %v1727 = vld [vmem:[#allocation2 + $0x100] sm:$0xff]
      %v1728 = vld [vmem:[#allocation2 + $0x108] sm:$0xff]
      %v1729 = vld [vmem:[#allocation2 + $0x110] sm:$0xff]
      %v1730 = vld [vmem:[#allocation2 + $0x118] sm:$0xff]
      %v1731 = vld [vmem:[#allocation2 + $0x120] sm:$0xff]
      %v1732 = vld [vmem:[#allocation2 + $0x128] sm:$0xff]
      %v1733 = vld [vmem:[#allocation2 + $0x130] sm:$0xff]
      %v1734 = vld [vmem:[#allocation2 + $0x138] sm:$0xff]
      %v1735 = vld [vmem:[%s1] sm:$0xf]
      %v1736 = vld [vmem:[%s1 + $0x4] sm:$0xf]
      %v1737 = vld [vmem:[%s1 + $0x8] sm:$0xf]
      %v1738 = vld [vmem:[%s1 + $0xc] sm:$0xf]
      %v1739 = vld [vmem:[%s1 + $0x10] sm:$0xf]
      %v1740 = vld [vmem:[%s1 + $0x14] sm:$0xf]
      %v1741 = vld [vmem:[%s1 + $0x18] sm:$0xf]
      %v1742 = vld [vmem:[%s1 + $0x1c] sm:$0xf]
      %v1743 = vld [vmem:[%s1 + $0x20] sm:$0xf]
      %v1744 = vld [vmem:[%s1 + $0x24] sm:$0xf]
      %v1745 = vld [vmem:[%s1 + $0x28] sm:$0xf]
      %v1746 = vld [vmem:[%s1 + $0x2c] sm:$0xf]
      %v1747 = vld [vmem:[%s1 + $0x30] sm:$0xf]
      %v1748 = vld [vmem:[%s1 + $0x34] sm:$0xf]
      %v1749 = vld [vmem:[%s1 + $0x38] sm:$0xf]
      %v1750 = vld [vmem:[%s1 + $0x3c] sm:$0xf]
      %v1751 = vld [vmem:[%s1 + $0x40] sm:$0xf]
      %v1752 = vld [vmem:[%s1 + $0x44] sm:$0xf]
      %v1753 = vld [vmem:[%s1 + $0x48] sm:$0xf]
      %v1754 = vld [vmem:[%s1 + $0x4c] sm:$0xf]
      %v1755 = vld [vmem:[%s1 + $0x50] sm:$0xf]
      %v1756 = vld [vmem:[%s1 + $0x54] sm:$0xf]
      %v1757 = vld [vmem:[%s1 + $0x58] sm:$0xf]
      %v1758 = vld [vmem:[%s1 + $0x5c] sm:$0xf]
      %v1759 = vld [vmem:[%s1 + $0x60] sm:$0xf]
      %v1760 = vld [vmem:[%s1 + $0x64] sm:$0xf]
      %v1761 = vld [vmem:[%s1 + $0x68] sm:$0xf]
      %v1762 = vld [vmem:[%s1 + $0x6c] sm:$0xf]
      %v1763 = vld [vmem:[%s1 + $0x70] sm:$0xf]
      %v1764 = vld [vmem:[%s1 + $0x74] sm:$0xf]
      %v1765 = vld [vmem:[%s1 + $0x78] sm:$0xf]
      %v1766 = vld [vmem:[%s1 + $0x7c] sm:$0xf]
      %v1767 = vld [vmem:[%s1 + $0x80] sm:$0xf]
      %v1768 = vld [vmem:[%s1 + $0x84] sm:$0xf]
      %v1769 = vld [vmem:[%s1 + $0x88] sm:$0xf]
      %v1770 = vld [vmem:[%s1 + $0x8c] sm:$0xf]
      %v1771 = vld [vmem:[%s1 + $0x90] sm:$0xf]
      %v1772 = vld [vmem:[%s1 + $0x94] sm:$0xf]
      %v1773 = vld [vmem:[%s1 + $0x98] sm:$0xf]
      %v1774 = vld [vmem:[%s1 + $0x9c] sm:$0xf]
      %v1775 = vld [vmem:[%s1 + $0xa0] sm:$0xf]
      %v1776 = vld [vmem:[%s1 + $0xa4] sm:$0xf]
      %v1777 = vld [vmem:[%s1 + $0xa8] sm:$0xf]
      %v1778 = vld [vmem:[%s1 + $0xac] sm:$0xf]
      %v1779 = vld [vmem:[%s1 + $0xb0] sm:$0xf]
      %v1780 = vld [vmem:[%s1 + $0xb4] sm:$0xf]
      %v1781 = vld [vmem:[%s1 + $0xb8] sm:$0xf]
      %v1782 = vld [vmem:[%s1 + $0xbc] sm:$0xf]
      %v1783 = vld [vmem:[%s1 + $0xc0] sm:$0xf]
      %v1784 = vld [vmem:[%s1 + $0xc4] sm:$0xf]
      %v1785 = vld [vmem:[%s1 + $0xc8] sm:$0xf]
      %v1786 = vld [vmem:[%s1 + $0xcc] sm:$0xf]
      %v1787 = vld [vmem:[%s1 + $0xd0] sm:$0xf]
      %v1788 = vld [vmem:[%s1 + $0xd4] sm:$0xf]
      %v1789 = vld [vmem:[%s1 + $0xd8] sm:$0xf]
      %v1790 = vld [vmem:[%s1 + $0xdc] sm:$0xf]
      %v1791 = vld [vmem:[%s1 + $0xe0] sm:$0xf]
      %v1792 = vld [vmem:[%s1 + $0xe4] sm:$0xf]
      %v1793 = vld [vmem:[%s1 + $0xe8] sm:$0xf]
      %v1794 = vld [vmem:[%s1 + $0xec] sm:$0xf]
      %v1795 = vld [vmem:[%s1 + $0xf0] sm:$0xf]
      %v1796 = vld [vmem:[%s1 + $0xf4] sm:$0xf]
      %v1797 = vld [vmem:[%s1 + $0xf8] sm:$0xf]
      %v1798 = vld [vmem:[%s1 + $0xfc] sm:$0xf]
      %v1799 = vld [vmem:[%s1 + $0x100] sm:$0xf]
      %v1800 = vld [vmem:[%s1 + $0x104] sm:$0xf]
      %v1801 = vld [vmem:[%s1 + $0x108] sm:$0xf]
      %v1802 = vld [vmem:[%s1 + $0x10c] sm:$0xf]
      %v1803 = vld [vmem:[%s1 + $0x110] sm:$0xf]
      %v1804 = vld [vmem:[%s1 + $0x114] sm:$0xf]
      %v1805 = vld [vmem:[%s1 + $0x118] sm:$0xf]
      %v1806 = vld [vmem:[%s1 + $0x11c] sm:$0xf]
      %v1807 = vld [vmem:[%s2] sm:$0x1]
      %v1809 = vlaneseq
      %v1810 = vshrl.u32 %v1809, 7
      %v1811 = vsub.s32 0, %v1810
      %v1812 = vrot.slane %v1807, %v1811
      %v1886 = vunpack.c.l.b16 %v1735
      %v1887 = vunpack.c.l.b16 %v1736
      %v1888 = vunpack.c.l.b16 %v1737
      %v1889 = vunpack.c.l.b16 %v1738
      %v1890 = vunpack.c.l.b16 %v1739
      %v1891 = vunpack.c.l.b16 %v1740
      %v1892 = vunpack.c.l.b16 %v1741
      %v1893 = vunpack.c.l.b16 %v1742
      %v1894 = vunpack.c.l.b16 %v1743
      %v1895 = vunpack.c.l.b16 %v1744
      %v1896 = vunpack.c.l.b16 %v1745
      %v1897 = vunpack.c.l.b16 %v1746
      %v1898 = vunpack.c.l.b16 %v1747
      %v1899 = vunpack.c.l.b16 %v1748
      %v1900 = vunpack.c.l.b16 %v1749
      %v1901 = vunpack.c.l.b16 %v1750
      %v1902 = vunpack.c.l.b16 %v1751
      %v1903 = vunpack.c.l.b16 %v1752
      %v1904 = vunpack.c.l.b16 %v1753
      %v1905 = vunpack.c.l.b16 %v1754
      %v1906 = vunpack.c.l.b16 %v1755
      %v1907 = vunpack.c.l.b16 %v1756
      %v1908 = vunpack.c.l.b16 %v1757
      %v1909 = vunpack.c.l.b16 %v1758
      %v1910 = vunpack.c.l.b16 %v1759
      %v1911 = vunpack.c.l.b16 %v1760
      %v1912 = vunpack.c.l.b16 %v1761
      %v1913 = vunpack.c.l.b16 %v1762
      %v1914 = vunpack.c.l.b16 %v1763
      %v1915 = vunpack.c.l.b16 %v1764
      %v1916 = vunpack.c.l.b16 %v1765
      %v1917 = vunpack.c.l.b16 %v1766
      %v1918 = vunpack.c.l.b16 %v1767
      %v1919 = vunpack.c.l.b16 %v1768
      %v1920 = vunpack.c.l.b16 %v1769
      %v1921 = vunpack.c.l.b16 %v1770
      %v1922 = vunpack.c.l.b16 %v1771
      %v1923 = vunpack.c.l.b16 %v1772
      %v1924 = vunpack.c.l.b16 %v1773
      %v1925 = vunpack.c.l.b16 %v1774
      %v1926 = vunpack.c.l.b16 %v1775
      %v1927 = vunpack.c.l.b16 %v1776
      %v1928 = vunpack.c.l.b16 %v1777
      %v1929 = vunpack.c.l.b16 %v1778
      %v1930 = vunpack.c.l.b16 %v1779
      %v1931 = vunpack.c.l.b16 %v1780
      %v1932 = vunpack.c.l.b16 %v1781
      %v1933 = vunpack.c.l.b16 %v1782
      %v1934 = vunpack.c.l.b16 %v1783
      %v1935 = vunpack.c.l.b16 %v1784
      %v1936 = vunpack.c.l.b16 %v1785
      %v1937 = vunpack.c.l.b16 %v1786
      %v1938 = vunpack.c.l.b16 %v1787
      %v1939 = vunpack.c.l.b16 %v1788
      %v1940 = vunpack.c.l.b16 %v1789
      %v1941 = vunpack.c.l.b16 %v1790
      %v1942 = vunpack.c.l.b16 %v1791
      %v1943 = vunpack.c.l.b16 %v1792
      %v1944 = vunpack.c.l.b16 %v1793
      %v1945 = vunpack.c.l.b16 %v1794
      %v1946 = vunpack.c.l.b16 %v1795
      %v1947 = vunpack.c.l.b16 %v1796
      %v1948 = vunpack.c.l.b16 %v1797
      %v1949 = vunpack.c.l.b16 %v1798
      %v1950 = vunpack.c.l.b16 %v1799
      %v1951 = vunpack.c.l.b16 %v1800
      %v1952 = vunpack.c.l.b16 %v1801
      %v1953 = vunpack.c.l.b16 %v1802
      %v1954 = vunpack.c.l.b16 %v1803
      %v1955 = vunpack.c.l.b16 %v1804
      %v1956 = vunpack.c.l.b16 %v1805
      %v1957 = vunpack.c.l.b16 %v1806
      %v1958 = vpack.c.b16 %v1887, %v1886
      %v1959 = vpack.c.b16 %v1889, %v1888
      %v1960 = vpack.c.b16 %v1891, %v1890
      %v1961 = vpack.c.b16 %v1893, %v1892
      %v1962 = vpack.c.b16 %v1895, %v1894
      %v1963 = vpack.c.b16 %v1897, %v1896
      %v1964 = vpack.c.b16 %v1899, %v1898
      %v1965 = vpack.c.b16 %v1901, %v1900
      %v1966 = vpack.c.b16 %v1903, %v1902
      %v1967 = vpack.c.b16 %v1905, %v1904
      %v1968 = vpack.c.b16 %v1907, %v1906
      %v1969 = vpack.c.b16 %v1909, %v1908
      %v1970 = vpack.c.b16 %v1911, %v1910
      %v1971 = vpack.c.b16 %v1913, %v1912
      %v1972 = vpack.c.b16 %v1915, %v1914
      %v1973 = vpack.c.b16 %v1917, %v1916
      %v1974 = vpack.c.b16 %v1919, %v1918
      %v1975 = vpack.c.b16 %v1921, %v1920
      %v1976 = vpack.c.b16 %v1923, %v1922
      %v1977 = vpack.c.b16 %v1925, %v1924
      %v1978 = vpack.c.b16 %v1927, %v1926
      %v1979 = vpack.c.b16 %v1929, %v1928
      %v1980 = vpack.c.b16 %v1931, %v1930
      %v1981 = vpack.c.b16 %v1933, %v1932
      %v1982 = vpack.c.b16 %v1935, %v1934
      %v1983 = vpack.c.b16 %v1937, %v1936
      %v1984 = vpack.c.b16 %v1939, %v1938
      %v1985 = vpack.c.b16 %v1941, %v1940
      %v1986 = vpack.c.b16 %v1943, %v1942
      %v1987 = vpack.c.b16 %v1945, %v1944
      %v1988 = vpack.c.b16 %v1947, %v1946
      %v1989 = vpack.c.b16 %v1949, %v1948
      %v1990 = vpack.c.b16 %v1951, %v1950
      %v1991 = vpack.c.b16 %v1953, %v1952
      %v1992 = vpack.c.b16 %v1955, %v1954
      %v1993 = vpack.c.b16 %v1957, %v1956
      %v2031 = vsel %vm263, %v1699, 0
      %v2034 = vsel %vm263, %v1704, 0
      %v2037 = vsel %vm263, %v1709, 0
      %v2040 = vsel %vm263, %v1714, 0
      %v2043 = vsel %vm263, %v1719, 0
      %v2046 = vsel %vm263, %v1724, 0
      %v2049 = vsel %vm263, %v1729, 0
      %v2052 = vsel %vm263, %v1734, 0
      %2054 = vmatprep.subr.bf16.mxu0 0
      %2055 = vmatpush1.bf16.msra.mxu0 %v1958
      %2056 = vmatprep.subr.bf16.mxu0 0
      %2057 = vmatpush1.bf16.msra.mxu0 %v1959
      %2058 = vmatprep.subr.bf16.mxu0 0
      %2059 = vmatpush1.bf16.msra.mxu0 %v1960
      %2060 = vmatprep.subr.bf16.mxu0 0
      %2061 = vmatpush1.bf16.msra.mxu0 %v1961
      %2062 = vmatprep.subr.bf16.mxu0 0
      %2063 = vmatpush1.bf16.msra.mxu0 %v1962
      %2064 = vmatprep.subr.bf16.mxu0 0
      %2065 = vmatpush1.bf16.msra.mxu0 %v1963
      %2066 = vmatprep.subr.bf16.mxu0 0
      %2067 = vmatpush1.bf16.msra.mxu0 %v1964
      %2068 = vmatprep.subr.bf16.mxu0 0
      %2069 = vmatpush1.bf16.msra.mxu0 %v1965
      %2070 = vmatprep.subr.bf16.mxu0 0
      %2071 = vmatpush1.bf16.msra.mxu0 %v1966
      %2072 = vmatprep.subr.bf16.mxu0 0
      %2073 = vmatpush1.bf16.msra.mxu0 %v1967
      %2074 = vmatprep.subr.bf16.mxu0 0
      %2075 = vmatpush1.bf16.msra.mxu0 %v1968
      %2076 = vmatprep.subr.bf16.mxu0 0
      %2077 = vmatpush1.bf16.msra.mxu0 %v1969
      %2078 = vmatprep.subr.bf16.mxu0 0
      %2079 = vmatpush1.bf16.msra.mxu0 %v1970
      %2080 = vmatprep.subr.bf16.mxu0 0
      %2081 = vmatpush1.bf16.msra.mxu0 %v1971
      %2082 = vmatprep.subr.bf16.mxu0 0
      %2083 = vmatpush1.bf16.msra.mxu0 %v1972
      %2084 = vmatprep.subr.bf16.mxu0 0
      %2085 = vmatpush1.bf16.msra.mxu0 %v1973
      %2086 = vmatprep.mubr.bf16.mxu0 %v1696
      %2087 = vmatmul.mubr.bf16.gmra.mrb[0].mxu0 %v1695
      %v2088 = vpop.f32.mrb[0].mxu0
      %v2089 = vadd.f32 %v1812, %v2088
      %v2090 = vpop.f32.mrb[0].mxu0
      %v2091 = vpop.f32.mrb[0].mxu0
      %v2092 = vadd.f32 %v1812, %v2091
      %v2093 = vpop.f32.mrb[0].mxu0
      %2094 = vmatprep.mubr.bf16.mxu0 %v1701
      %2095 = vmatmul.mubr.bf16.gmra.mrb[0].mxu0 %v1700
      %v2096 = vpop.f32.mrb[0].mxu0
      %v2097 = vadd.f32 %v1812, %v2096
      %v2098 = vpop.f32.mrb[0].mxu0
      %v2099 = vpop.f32.mrb[0].mxu0
      %v2100 = vadd.f32 %v1812, %v2099
      %v2101 = vpop.f32.mrb[0].mxu0
      %2102 = vmatprep.mubr.bf16.mxu0 %v1706
      %2103 = vmatmul.mubr.bf16.gmra.mrb[0].mxu0 %v1705
      %v2104 = vpop.f32.mrb[0].mxu0
      %v2105 = vadd.f32 %v1812, %v2104
      %v2106 = vpop.f32.mrb[0].mxu0
      %v2107 = vpop.f32.mrb[0].mxu0
      %v2108 = vadd.f32 %v1812, %v2107
      %v2109 = vpop.f32.mrb[0].mxu0
      %2110 = vmatprep.mubr.bf16.mxu0 %v1711
      %2111 = vmatmul.mubr.bf16.gmra.mrb[0].mxu0 %v1710
      %v2112 = vpop.f32.mrb[0].mxu0
      %v2113 = vadd.f32 %v1812, %v2112
      %v2114 = vpop.f32.mrb[0].mxu0
      %v2115 = vpop.f32.mrb[0].mxu0
      %v2116 = vadd.f32 %v1812, %v2115
      %v2117 = vpop.f32.mrb[0].mxu0
      %2118 = vmatprep.mubr.bf16.mxu0 %v1716
      %2119 = vmatmul.mubr.bf16.gmra.mrb[0].mxu0 %v1715
      %v2120 = vpop.f32.mrb[0].mxu0
      %v2121 = vadd.f32 %v1812, %v2120
      %v2122 = vpop.f32.mrb[0].mxu0
      %v2123 = vpop.f32.mrb[0].mxu0
      %v2124 = vadd.f32 %v1812, %v2123
      %v2125 = vpop.f32.mrb[0].mxu0
      %2126 = vmatprep.mubr.bf16.mxu0 %v1721
      %2127 = vmatmul.mubr.bf16.gmra.mrb[0].mxu0 %v1720
      %v2128 = vpop.f32.mrb[0].mxu0
      %v2129 = vadd.f32 %v1812, %v2128
      %v2130 = vpop.f32.mrb[0].mxu0
      %v2131 = vpop.f32.mrb[0].mxu0
      %v2132 = vadd.f32 %v1812, %v2131
      %v2133 = vpop.f32.mrb[0].mxu0
      %2134 = vmatprep.mubr.bf16.mxu0 %v1726
      %2135 = vmatmul.mubr.bf16.gmra.mrb[0].mxu0 %v1725
      %v2136 = vpop.f32.mrb[0].mxu0
      %v2137 = vadd.f32 %v1812, %v2136
      %v2138 = vpop.f32.mrb[0].mxu0
      %v2139 = vpop.f32.mrb[0].mxu0
      %v2140 = vadd.f32 %v1812, %v2139
      %v2141 = vpop.f32.mrb[0].mxu0
      %2142 = vmatprep.mubr.bf16.mxu0 %v1731
      %2143 = vmatmul.mubr.bf16.gmra.mrb[0].mxu0 %v1730
      %v2144 = vpop.f32.mrb[0].mxu0
      %v2145 = vadd.f32 %v1812, %v2144
      %v2146 = vpop.f32.mrb[0].mxu0
      %v2147 = vpop.f32.mrb[0].mxu0
      %v2148 = vadd.f32 %v1812, %v2147
      %v2149 = vpop.f32.mrb[0].mxu0
      %2150 = vdwg.mxu0
      %2151 = vmatprep.subr.bf16.mxu0 0
      %2152 = vmatpush1.bf16.msra.mxu0 %v1974
      %2153 = vmatprep.subr.bf16.mxu0 0
      %2154 = vmatpush1.bf16.msra.mxu0 %v1975
      %2155 = vmatprep.subr.bf16.mxu0 0
      %2156 = vmatpush1.bf16.msra.mxu0 %v1976
      %2157 = vmatprep.subr.bf16.mxu0 0
      %2158 = vmatpush1.bf16.msra.mxu0 %v1977
      %2159 = vmatprep.subr.bf16.mxu0 0
      %2160 = vmatpush1.bf16.msra.mxu0 %v1978
      %2161 = vmatprep.subr.bf16.mxu0 0
      %2162 = vmatpush1.bf16.msra.mxu0 %v1979
      %2163 = vmatprep.subr.bf16.mxu0 0
      %2164 = vmatpush1.bf16.msra.mxu0 %v1980
      %2165 = vmatprep.subr.bf16.mxu0 0
      %2166 = vmatpush1.bf16.msra.mxu0 %v1981
      %2167 = vmatprep.subr.bf16.mxu0 0
      %2168 = vmatpush1.bf16.msra.mxu0 %v1982
      %2169 = vmatprep.subr.bf16.mxu0 0
      %2170 = vmatpush1.bf16.msra.mxu0 %v1983
      %2171 = vmatprep.subr.bf16.mxu0 0
      %2172 = vmatpush1.bf16.msra.mxu0 %v1984
      %2173 = vmatprep.subr.bf16.mxu0 0
      %2174 = vmatpush1.bf16.msra.mxu0 %v1985
      %2175 = vmatprep.subr.bf16.mxu0 0
      %2176 = vmatpush1.bf16.msra.mxu0 %v1986
      %2177 = vmatprep.subr.bf16.mxu0 0
      %2178 = vmatpush1.bf16.msra.mxu0 %v1987
      %2179 = vmatprep.subr.bf16.mxu0 0
      %2180 = vmatpush1.bf16.msra.mxu0 %v1988
      %2181 = vmatprep.subr.bf16.mxu0 0
      %2182 = vmatpush1.bf16.msra.mxu0 %v1989
      %2183 = vmatprep.mubr.bf16.mxu0 %v1698
      %2184 = vmatmul.mubr.bf16.gmra.mrb[0].mxu0 %v1697
      %v2185 = vpop.f32.mrb[0].mxu0
      %v2186 = vadd.f32 %v2089, %v2185
      %v2187 = vpop.f32.mrb[0].mxu0
      %v2188 = vpop.f32.mrb[0].mxu0
      %v2189 = vadd.f32 %v2092, %v2188
      %v2190 = vpop.f32.mrb[0].mxu0
      %2191 = vmatprep.mubr.bf16.mxu0 %v1703
      %2192 = vmatmul.mubr.bf16.gmra.mrb[0].mxu0 %v1702
      %v2193 = vpop.f32.mrb[0].mxu0
      %v2194 = vadd.f32 %v2097, %v2193
      %v2195 = vpop.f32.mrb[0].mxu0
      %v2196 = vpop.f32.mrb[0].mxu0
      %v2197 = vadd.f32 %v2100, %v2196
      %v2198 = vpop.f32.mrb[0].mxu0
      %2199 = vmatprep.mubr.bf16.mxu0 %v1708
      %2200 = vmatmul.mubr.bf16.gmra.mrb[0].mxu0 %v1707
      %v2201 = vpop.f32.mrb[0].mxu0
      %v2202 = vadd.f32 %v2105, %v2201
      %v2203 = vpop.f32.mrb[0].mxu0
      %v2204 = vpop.f32.mrb[0].mxu0
      %v2205 = vadd.f32 %v2108, %v2204
      %v2206 = vpop.f32.mrb[0].mxu0
      %2207 = vmatprep.mubr.bf16.mxu0 %v1713
      %2208 = vmatmul.mubr.bf16.gmra.mrb[0].mxu0 %v1712
      %v2209 = vpop.f32.mrb[0].mxu0
      %v2210 = vadd.f32 %v2113, %v2209
      %v2211 = vpop.f32.mrb[0].mxu0
      %v2212 = vpop.f32.mrb[0].mxu0
      %v2213 = vadd.f32 %v2116, %v2212
      %v2214 = vpop.f32.mrb[0].mxu0
      %2215 = vmatprep.mubr.bf16.mxu0 %v1718
      %2216 = vmatmul.mubr.bf16.gmra.mrb[0].mxu0 %v1717
      %v2217 = vpop.f32.mrb[0].mxu0
      %v2218 = vadd.f32 %v2121, %v2217
      %v2219 = vpop.f32.mrb[0].mxu0
      %v2220 = vpop.f32.mrb[0].mxu0
      %v2221 = vadd.f32 %v2124, %v2220
      %v2222 = vpop.f32.mrb[0].mxu0
      %2223 = vmatprep.mubr.bf16.mxu0 %v1723
      %2224 = vmatmul.mubr.bf16.gmra.mrb[0].mxu0 %v1722
      %v2225 = vpop.f32.mrb[0].mxu0
      %v2226 = vadd.f32 %v2129, %v2225
      %v2227 = vpop.f32.mrb[0].mxu0
      %v2228 = vpop.f32.mrb[0].mxu0
      %v2229 = vadd.f32 %v2132, %v2228
      %v2230 = vpop.f32.mrb[0].mxu0
      %2231 = vmatprep.mubr.bf16.mxu0 %v1728
      %2232 = vmatmul.mubr.bf16.gmra.mrb[0].mxu0 %v1727
      %v2233 = vpop.f32.mrb[0].mxu0
      %v2234 = vadd.f32 %v2137, %v2233
      %v2235 = vpop.f32.mrb[0].mxu0
      %v2236 = vpop.f32.mrb[0].mxu0
      %v2237 = vadd.f32 %v2140, %v2236
      %v2238 = vpop.f32.mrb[0].mxu0
      %2239 = vmatprep.mubr.bf16.mxu0 %v1733
      %2240 = vmatmul.mubr.bf16.gmra.mrb[0].mxu0 %v1732
      %v2241 = vpop.f32.mrb[0].mxu0
      %v2242 = vadd.f32 %v2145, %v2241
      %v2243 = vpop.f32.mrb[0].mxu0
      %v2244 = vpop.f32.mrb[0].mxu0
      %v2245 = vadd.f32 %v2148, %v2244
      %v2246 = vpop.f32.mrb[0].mxu0
      %2247 = vdwg.mxu0
      %2248 = vmatprep.subr.bf16.mxu0 0
      %2249 = vmatpush1.bf16.msra.mxu0 %v1990
      %2250 = vmatprep.subr.bf16.mxu0 0
      %2251 = vmatpush1.bf16.msra.mxu0 %v1991
      %2252 = vmatprep.subr.bf16.mxu0 0
      %2253 = vmatpush1.bf16.msra.mxu0 %v1992
      %2254 = vmatprep.subr.bf16.mxu0 0
      %2255 = vmatpush1.bf16.msra.mxu0 %v1993
      %2256 = vmatprep.subr.bf16.mxu0 0
      %2257 = vmatpush1.bf16.msra.mxu0 0
      %2258 = vmatprep.subr.bf16.mxu0 0
      %2259 = vmatpush1.bf16.msra.mxu0 0
      %2260 = vmatprep.subr.bf16.mxu0 0
      %2261 = vmatpush1.bf16.msra.mxu0 0
      %2262 = vmatprep.subr.bf16.mxu0 0
      %2263 = vmatpush1.bf16.msra.mxu0 0
      %2264 = vmatprep.subr.bf16.mxu0 0
      %2265 = vmatpush1.bf16.msra.mxu0 0
      %2266 = vmatprep.subr.bf16.mxu0 0
      %2267 = vmatpush1.bf16.msra.mxu0 0
      %2268 = vmatprep.subr.bf16.mxu0 0
      %2269 = vmatpush1.bf16.msra.mxu0 0
      %2270 = vmatprep.subr.bf16.mxu0 0
      %2271 = vmatpush1.bf16.msra.mxu0 0
      %2272 = vmatprep.subr.bf16.mxu0 0
      %2273 = vmatpush1.bf16.msra.mxu0 0
      %2274 = vmatprep.subr.bf16.mxu0 0
      %2275 = vmatpush1.bf16.msra.mxu0 0
      %2276 = vmatprep.subr.bf16.mxu0 0
      %2277 = vmatpush1.bf16.msra.mxu0 0
      %2278 = vmatprep.subr.bf16.mxu0 0
      %2279 = vmatpush1.bf16.msra.mxu0 0
      %2280 = vmatprep.mubr.bf16.mxu0 0
      %2281 = vmatmul.mubr.bf16.gmra.mrb[0].mxu0 %v2031
      %v2282 = vpop.f32.mrb[0].mxu0
      %v2283 = vadd.f32 %v2186, %v2282
      %v2284 = vpop.f32.mrb[0].mxu0
      %v2285 = vpop.f32.mrb[0].mxu0
      %v2286 = vadd.f32 %v2189, %v2285
      %v2287 = vpop.f32.mrb[0].mxu0
      %2288 = vmatprep.mubr.bf16.mxu0 0
      %2289 = vmatmul.mubr.bf16.gmra.mrb[0].mxu0 %v2034
      %v2290 = vpop.f32.mrb[0].mxu0
      %v2291 = vadd.f32 %v2194, %v2290
      %v2292 = vpop.f32.mrb[0].mxu0
      %v2293 = vpop.f32.mrb[0].mxu0
      %v2294 = vadd.f32 %v2197, %v2293
      %v2295 = vpop.f32.mrb[0].mxu0
      %2296 = vmatprep.mubr.bf16.mxu0 0
      %2297 = vmatmul.mubr.bf16.gmra.mrb[0].mxu0 %v2037
      %v2298 = vpop.f32.mrb[0].mxu0
      %v2299 = vadd.f32 %v2202, %v2298
      %v2300 = vpop.f32.mrb[0].mxu0
      %v2301 = vpop.f32.mrb[0].mxu0
      %v2302 = vadd.f32 %v2205, %v2301
      %v2303 = vpop.f32.mrb[0].mxu0
      %2304 = vmatprep.mubr.bf16.mxu0 0
      %2305 = vmatmul.mubr.bf16.gmra.mrb[0].mxu0 %v2040
      %v2306 = vpop.f32.mrb[0].mxu0
      %v2307 = vadd.f32 %v2210, %v2306
      %v2308 = vpop.f32.mrb[0].mxu0
      %v2309 = vpop.f32.mrb[0].mxu0
      %v2310 = vadd.f32 %v2213, %v2309
      %v2311 = vpop.f32.mrb[0].mxu0
      %2312 = vmatprep.mubr.bf16.mxu0 0
      %2313 = vmatmul.mubr.bf16.gmra.mrb[0].mxu0 %v2043
      %v2314 = vpop.f32.mrb[0].mxu0
      %v2315 = vadd.f32 %v2218, %v2314
      %v2316 = vpop.f32.mrb[0].mxu0
      %v2317 = vpop.f32.mrb[0].mxu0
      %v2318 = vadd.f32 %v2221, %v2317
      %v2319 = vpop.f32.mrb[0].mxu0
      %2320 = vmatprep.mubr.bf16.mxu0 0
      %2321 = vmatmul.mubr.bf16.gmra.mrb[0].mxu0 %v2046
      %v2322 = vpop.f32.mrb[0].mxu0
      %v2323 = vadd.f32 %v2226, %v2322
      %v2324 = vpop.f32.mrb[0].mxu0
      %v2325 = vpop.f32.mrb[0].mxu0
      %v2326 = vadd.f32 %v2229, %v2325
      %v2327 = vpop.f32.mrb[0].mxu0
      %2328 = vmatprep.mubr.bf16.mxu0 0
      %2329 = vmatmul.mubr.bf16.gmra.mrb[0].mxu0 %v2049
      %v2330 = vpop.f32.mrb[0].mxu0
      %v2331 = vadd.f32 %v2234, %v2330
      %v2332 = vpop.f32.mrb[0].mxu0
      %v2333 = vpop.f32.mrb[0].mxu0
      %v2334 = vadd.f32 %v2237, %v2333
      %v2335 = vpop.f32.mrb[0].mxu0
      %2336 = vmatprep.mubr.bf16.mxu0 0
      %2337 = vmatmul.mubr.bf16.gmra.mrb[0].mxu0 %v2052
      %v2338 = vpop.f32.mrb[0].mxu0
      %v2339 = vadd.f32 %v2242, %v2338
      %v2340 = vpop.f32.mrb[0].mxu0
      %v2341 = vpop.f32.mrb[0].mxu0
      %v2342 = vadd.f32 %v2245, %v2341
      %v2343 = vpop.f32.mrb[0].mxu0
      %2344 = vdwg.mxu0
      %v2345 = vmax.f32 %v2283, 0.0
      %v2346 = vmax.f32 %v2286, 0.0
      %v2347 = vmax.f32 %v2291, 0.0
      %v2348 = vmax.f32 %v2294, 0.0
      %v2349 = vmax.f32 %v2299, 0.0
      %v2350 = vmax.f32 %v2302, 0.0
      %v2351 = vmax.f32 %v2307, 0.0
      %v2352 = vmax.f32 %v2310, 0.0
      %v2353 = vmax.f32 %v2315, 0.0
      %v2354 = vmax.f32 %v2318, 0.0
      %v2355 = vmax.f32 %v2323, 0.0
      %v2356 = vmax.f32 %v2326, 0.0
      %v2357 = vmax.f32 %v2331, 0.0
      %v2358 = vmax.f32 %v2334, 0.0
      %v2359 = vmax.f32 %v2339, 0.0
      %v2360 = vmax.f32 %v2342, 0.0
      %v2361 = vmax.f32 %v2345, %v2347
      %v2362 = vmax.f32 %v2346, %v2348
      %v2363 = vmax.f32 %v2349, %v2351
      %v2364 = vmax.f32 %v2350, %v2352
      %v2365 = vmax.f32 %v2353, %v2355
      %v2366 = vmax.f32 %v2354, %v2356
      %v2367 = vmax.f32 %v2357, %v2359
      %v2368 = vmax.f32 %v2358, %v2360
      %v2377 = vcombine.high %v2361, %v2361
      %v2379 = vunpack.c.l.s4 1983009808
      %v2380 = vunpack.c.0.s8 %v2379
      %v2381 = vlaneseq
      %v2382 = vshrl.u32 %v2381, 7
      %v2383 = vsub.s32 %v2380, %v2382
      %v2384 = vrot.slane %v2361, %v2383
      %v2386 = vunpack.c.l.s4 1983009808
      %v2387 = vunpack.c.0.s8 %v2386
      %v2388 = vlaneseq
      %v2389 = vshrl.u32 %v2388, 7
      %v2390 = vsub.s32 %v2387, %v2389
      %v2391 = vrot.slane %v2377, %v2390
      %v2392 = vcombine.high %v2384, %v2384
      %v2393 = vcombine.high %v2391, %v2391
      %v2394 = vcombine.high %v2362, %v2362
      %v2396 = vunpack.c.l.s4 1983009808
      %v2397 = vunpack.c.0.s8 %v2396
      %v2398 = vlaneseq
      %v2399 = vshrl.u32 %v2398, 7
      %v2400 = vsub.s32 %v2397, %v2399
      %v2401 = vrot.slane %v2362, %v2400
      %v2403 = vunpack.c.l.s4 1983009808
      %v2404 = vunpack.c.0.s8 %v2403
      %v2405 = vlaneseq
      %v2406 = vshrl.u32 %v2405, 7
      %v2407 = vsub.s32 %v2404, %v2406
      %v2408 = vrot.slane %v2394, %v2407
      %v2409 = vcombine.high %v2401, %v2401
      %v2410 = vcombine.high %v2408, %v2408
      %v2411 = vcombine.high %v2363, %v2363
      %v2413 = vunpack.c.l.s4 1983009808
      %v2414 = vunpack.c.0.s8 %v2413
      %v2415 = vlaneseq
      %v2416 = vshrl.u32 %v2415, 7
      %v2417 = vsub.s32 %v2414, %v2416
      %v2418 = vrot.slane %v2363, %v2417
      %v2420 = vunpack.c.l.s4 1983009808
      %v2421 = vunpack.c.0.s8 %v2420
      %v2422 = vlaneseq
      %v2423 = vshrl.u32 %v2422, 7
      %v2424 = vsub.s32 %v2421, %v2423
      %v2425 = vrot.slane %v2411, %v2424
      %v2426 = vcombine.high %v2418, %v2418
      %v2427 = vcombine.high %v2425, %v2425
      %v2428 = vcombine.high %v2364, %v2364
      %v2430 = vunpack.c.l.s4 1983009808
      %v2431 = vunpack.c.0.s8 %v2430
      %v2432 = vlaneseq
      %v2433 = vshrl.u32 %v2432, 7
      %v2434 = vsub.s32 %v2431, %v2433
      %v2435 = vrot.slane %v2364, %v2434
      %v2437 = vunpack.c.l.s4 1983009808
      %v2438 = vunpack.c.0.s8 %v2437
      %v2439 = vlaneseq
      %v2440 = vshrl.u32 %v2439, 7
      %v2441 = vsub.s32 %v2438, %v2440
      %v2442 = vrot.slane %v2428, %v2441
      %v2443 = vcombine.high %v2435, %v2435
      %v2444 = vcombine.high %v2442, %v2442
      %v2445 = vcombine.high %v2365, %v2365
      %v2447 = vunpack.c.l.s4 1983009808
      %v2448 = vunpack.c.0.s8 %v2447
      %v2449 = vlaneseq
      %v2450 = vshrl.u32 %v2449, 7
      %v2451 = vsub.s32 %v2448, %v2450
      %v2452 = vrot.slane %v2365, %v2451
      %v2454 = vunpack.c.l.s4 1983009808
      %v2455 = vunpack.c.0.s8 %v2454
      %v2456 = vlaneseq
      %v2457 = vshrl.u32 %v2456, 7
      %v2458 = vsub.s32 %v2455, %v2457
      %v2459 = vrot.slane %v2445, %v2458
      %v2460 = vcombine.high %v2452, %v2452
      %v2461 = vcombine.high %v2459, %v2459
      %v2462 = vcombine.high %v2366, %v2366
      %v2464 = vunpack.c.l.s4 1983009808
      %v2465 = vunpack.c.0.s8 %v2464
      %v2466 = vlaneseq
      %v2467 = vshrl.u32 %v2466, 7
      %v2468 = vsub.s32 %v2465, %v2467
      %v2469 = vrot.slane %v2366, %v2468
      %v2471 = vunpack.c.l.s4 1983009808
      %v2472 = vunpack.c.0.s8 %v2471
      %v2473 = vlaneseq
      %v2474 = vshrl.u32 %v2473, 7
      %v2475 = vsub.s32 %v2472, %v2474
      %v2476 = vrot.slane %v2462, %v2475
      %v2477 = vcombine.high %v2469, %v2469
      %v2478 = vcombine.high %v2476, %v2476
      %v2479 = vcombine.high %v2367, %v2367
      %v2481 = vunpack.c.l.s4 1983009808
      %v2482 = vunpack.c.0.s8 %v2481
      %v2483 = vlaneseq
      %v2484 = vshrl.u32 %v2483, 7
      %v2485 = vsub.s32 %v2482, %v2484
      %v2486 = vrot.slane %v2367, %v2485
      %v2488 = vunpack.c.l.s4 1983009808
      %v2489 = vunpack.c.0.s8 %v2488
      %v2490 = vlaneseq
      %v2491 = vshrl.u32 %v2490, 7
      %v2492 = vsub.s32 %v2489, %v2491
      %v2493 = vrot.slane %v2479, %v2492
      %v2494 = vcombine.high %v2486, %v2486
      %v2495 = vcombine.high %v2493, %v2493
      %v2496 = vcombine.high %v2368, %v2368
      %v2498 = vunpack.c.l.s4 1983009808
      %v2499 = vunpack.c.0.s8 %v2498
      %v2500 = vlaneseq
      %v2501 = vshrl.u32 %v2500, 7
      %v2502 = vsub.s32 %v2499, %v2501
      %v2503 = vrot.slane %v2368, %v2502
      %v2505 = vunpack.c.l.s4 1983009808
      %v2506 = vunpack.c.0.s8 %v2505
      %v2507 = vlaneseq
      %v2508 = vshrl.u32 %v2507, 7
      %v2509 = vsub.s32 %v2506, %v2508
      %v2510 = vrot.slane %v2496, %v2509
      %v2511 = vcombine.high %v2503, %v2503
      %v2512 = vcombine.high %v2510, %v2510
      %vm2545 = vcmask 517120
      %v2546 = vsel %vm2545, %v2384, -inf
      %v2547 = vrot.slane %v2546, 4
      %v2548 = vmax.f32 %v2546, %v2547
      %v2549 = vrot.slane %v2548, 2
      %v2550 = vmax.f32 %v2548, %v2549
      %v2551 = vrot.slane %v2550, 1
      %v2552 = vmax.f32 %v2550, %v2551
      %v2553 = vsel %vm2545, %v2392, -inf
      %v2554 = vrot.slane %v2553, 4
      %v2555 = vmax.f32 %v2553, %v2554
      %v2556 = vrot.slane %v2555, 2
      %v2557 = vmax.f32 %v2555, %v2556
      %v2558 = vrot.slane %v2557, 1
      %v2559 = vmax.f32 %v2557, %v2558
      %v2560 = vsel %vm2545, %v2391, -inf
      %v2561 = vrot.slane %v2560, 4
      %v2562 = vmax.f32 %v2560, %v2561
      %v2563 = vrot.slane %v2562, 2
      %v2564 = vmax.f32 %v2562, %v2563
      %v2565 = vrot.slane %v2564, 1
      %v2566 = vmax.f32 %v2564, %v2565
      %v2567 = vsel %vm2545, %v2393, -inf
      %v2568 = vrot.slane %v2567, 4
      %v2569 = vmax.f32 %v2567, %v2568
      %v2570 = vrot.slane %v2569, 2
      %v2571 = vmax.f32 %v2569, %v2570
      %v2572 = vrot.slane %v2571, 1
      %v2573 = vmax.f32 %v2571, %v2572
      %v2574 = vsel %vm2545, %v2401, -inf
      %v2575 = vrot.slane %v2574, 4
      %v2576 = vmax.f32 %v2574, %v2575
      %v2577 = vrot.slane %v2576, 2
      %v2578 = vmax.f32 %v2576, %v2577
      %v2579 = vrot.slane %v2578, 1
      %v2580 = vmax.f32 %v2578, %v2579
      %v2581 = vsel %vm2545, %v2409, -inf
      %v2582 = vrot.slane %v2581, 4
      %v2583 = vmax.f32 %v2581, %v2582
      %v2584 = vrot.slane %v2583, 2
      %v2585 = vmax.f32 %v2583, %v2584
      %v2586 = vrot.slane %v2585, 1
      %v2587 = vmax.f32 %v2585, %v2586
      %v2588 = vsel %vm2545, %v2408, -inf
      %v2589 = vrot.slane %v2588, 4
      %v2590 = vmax.f32 %v2588, %v2589
      %v2591 = vrot.slane %v2590, 2
      %v2592 = vmax.f32 %v2590, %v2591
      %v2593 = vrot.slane %v2592, 1
      %v2594 = vmax.f32 %v2592, %v2593
      %v2595 = vsel %vm2545, %v2410, -inf
      %v2596 = vrot.slane %v2595, 4
      %v2597 = vmax.f32 %v2595, %v2596
      %v2598 = vrot.slane %v2597, 2
      %v2599 = vmax.f32 %v2597, %v2598
      %v2600 = vrot.slane %v2599, 1
      %v2601 = vmax.f32 %v2599, %v2600
      %v2602 = vsel %vm2545, %v2418, -inf
      %v2603 = vrot.slane %v2602, 4
      %v2604 = vmax.f32 %v2602, %v2603
      %v2605 = vrot.slane %v2604, 2
      %v2606 = vmax.f32 %v2604, %v2605
      %v2607 = vrot.slane %v2606, 1
      %v2608 = vmax.f32 %v2606, %v2607
      %v2609 = vsel %vm2545, %v2426, -inf
      %v2610 = vrot.slane %v2609, 4
      %v2611 = vmax.f32 %v2609, %v2610
      %v2612 = vrot.slane %v2611, 2
      %v2613 = vmax.f32 %v2611, %v2612
      %v2614 = vrot.slane %v2613, 1
      %v2615 = vmax.f32 %v2613, %v2614
      %v2616 = vsel %vm2545, %v2425, -inf
      %v2617 = vrot.slane %v2616, 4
      %v2618 = vmax.f32 %v2616, %v2617
      %v2619 = vrot.slane %v2618, 2
      %v2620 = vmax.f32 %v2618, %v2619
      %v2621 = vrot.slane %v2620, 1
      %v2622 = vmax.f32 %v2620, %v2621
      %v2623 = vsel %vm2545, %v2427, -inf
      %v2624 = vrot.slane %v2623, 4
      %v2625 = vmax.f32 %v2623, %v2624
      %v2626 = vrot.slane %v2625, 2
      %v2627 = vmax.f32 %v2625, %v2626
      %v2628 = vrot.slane %v2627, 1
      %v2629 = vmax.f32 %v2627, %v2628
      %v2630 = vsel %vm2545, %v2435, -inf
      %v2631 = vrot.slane %v2630, 4
      %v2632 = vmax.f32 %v2630, %v2631
      %v2633 = vrot.slane %v2632, 2
      %v2634 = vmax.f32 %v2632, %v2633
      %v2635 = vrot.slane %v2634, 1
      %v2636 = vmax.f32 %v2634, %v2635
      %v2637 = vsel %vm2545, %v2443, -inf
      %v2638 = vrot.slane %v2637, 4
      %v2639 = vmax.f32 %v2637, %v2638
      %v2640 = vrot.slane %v2639, 2
      %v2641 = vmax.f32 %v2639, %v2640
      %v2642 = vrot.slane %v2641, 1
      %v2643 = vmax.f32 %v2641, %v2642
      %v2644 = vsel %vm2545, %v2442, -inf
      %v2645 = vrot.slane %v2644, 4
      %v2646 = vmax.f32 %v2644, %v2645
      %v2647 = vrot.slane %v2646, 2
      %v2648 = vmax.f32 %v2646, %v2647
      %v2649 = vrot.slane %v2648, 1
      %v2650 = vmax.f32 %v2648, %v2649
      %v2651 = vsel %vm2545, %v2444, -inf
      %v2652 = vrot.slane %v2651, 4
      %v2653 = vmax.f32 %v2651, %v2652
      %v2654 = vrot.slane %v2653, 2
      %v2655 = vmax.f32 %v2653, %v2654
      %v2656 = vrot.slane %v2655, 1
      %v2657 = vmax.f32 %v2655, %v2656
      %v2658 = vsel %vm2545, %v2452, -inf
      %v2659 = vrot.slane %v2658, 4
      %v2660 = vmax.f32 %v2658, %v2659
      %v2661 = vrot.slane %v2660, 2
      %v2662 = vmax.f32 %v2660, %v2661
      %v2663 = vrot.slane %v2662, 1
      %v2664 = vmax.f32 %v2662, %v2663
      %v2665 = vsel %vm2545, %v2460, -inf
      %v2666 = vrot.slane %v2665, 4
      %v2667 = vmax.f32 %v2665, %v2666
      %v2668 = vrot.slane %v2667, 2
      %v2669 = vmax.f32 %v2667, %v2668
      %v2670 = vrot.slane %v2669, 1
      %v2671 = vmax.f32 %v2669, %v2670
      %v2672 = vsel %vm2545, %v2459, -inf
      %v2673 = vrot.slane %v2672, 4
      %v2674 = vmax.f32 %v2672, %v2673
      %v2675 = vrot.slane %v2674, 2
      %v2676 = vmax.f32 %v2674, %v2675
      %v2677 = vrot.slane %v2676, 1
      %v2678 = vmax.f32 %v2676, %v2677
      %v2679 = vsel %vm2545, %v2461, -inf
      %v2680 = vrot.slane %v2679, 4
      %v2681 = vmax.f32 %v2679, %v2680
      %v2682 = vrot.slane %v2681, 2
      %v2683 = vmax.f32 %v2681, %v2682
      %v2684 = vrot.slane %v2683, 1
      %v2685 = vmax.f32 %v2683, %v2684
      %v2686 = vsel %vm2545, %v2469, -inf
      %v2687 = vrot.slane %v2686, 4
      %v2688 = vmax.f32 %v2686, %v2687
      %v2689 = vrot.slane %v2688, 2
      %v2690 = vmax.f32 %v2688, %v2689
      %v2691 = vrot.slane %v2690, 1
      %v2692 = vmax.f32 %v2690, %v2691
      %v2693 = vsel %vm2545, %v2477, -inf
      %v2694 = vrot.slane %v2693, 4
      %v2695 = vmax.f32 %v2693, %v2694
      %v2696 = vrot.slane %v2695, 2
      %v2697 = vmax.f32 %v2695, %v2696
      %v2698 = vrot.slane %v2697, 1
      %v2699 = vmax.f32 %v2697, %v2698
      %v2700 = vsel %vm2545, %v2476, -inf
      %v2701 = vrot.slane %v2700, 4
      %v2702 = vmax.f32 %v2700, %v2701
      %v2703 = vrot.slane %v2702, 2
      %v2704 = vmax.f32 %v2702, %v2703
      %v2705 = vrot.slane %v2704, 1
      %v2706 = vmax.f32 %v2704, %v2705
      %v2707 = vsel %vm2545, %v2478, -inf
      %v2708 = vrot.slane %v2707, 4
      %v2709 = vmax.f32 %v2707, %v2708
      %v2710 = vrot.slane %v2709, 2
      %v2711 = vmax.f32 %v2709, %v2710
      %v2712 = vrot.slane %v2711, 1
      %v2713 = vmax.f32 %v2711, %v2712
      %v2714 = vsel %vm2545, %v2486, -inf
      %v2715 = vrot.slane %v2714, 4
      %v2716 = vmax.f32 %v2714, %v2715
      %v2717 = vrot.slane %v2716, 2
      %v2718 = vmax.f32 %v2716, %v2717
      %v2719 = vrot.slane %v2718, 1
      %v2720 = vmax.f32 %v2718, %v2719
      %v2721 = vsel %vm2545, %v2494, -inf
      %v2722 = vrot.slane %v2721, 4
      %v2723 = vmax.f32 %v2721, %v2722
      %v2724 = vrot.slane %v2723, 2
      %v2725 = vmax.f32 %v2723, %v2724
      %v2726 = vrot.slane %v2725, 1
      %v2727 = vmax.f32 %v2725, %v2726
      %v2728 = vsel %vm2545, %v2493, -inf
      %v2729 = vrot.slane %v2728, 4
      %v2730 = vmax.f32 %v2728, %v2729
      %v2731 = vrot.slane %v2730, 2
      %v2732 = vmax.f32 %v2730, %v2731
      %v2733 = vrot.slane %v2732, 1
      %v2734 = vmax.f32 %v2732, %v2733
      %v2735 = vsel %vm2545, %v2495, -inf
      %v2736 = vrot.slane %v2735, 4
      %v2737 = vmax.f32 %v2735, %v2736
      %v2738 = vrot.slane %v2737, 2
      %v2739 = vmax.f32 %v2737, %v2738
      %v2740 = vrot.slane %v2739, 1
      %v2741 = vmax.f32 %v2739, %v2740
      %v2742 = vsel %vm2545, %v2503, -inf
      %v2743 = vrot.slane %v2742, 4
      %v2744 = vmax.f32 %v2742, %v2743
      %v2745 = vrot.slane %v2744, 2
      %v2746 = vmax.f32 %v2744, %v2745
      %v2747 = vrot.slane %v2746, 1
      %v2748 = vmax.f32 %v2746, %v2747
      %v2749 = vsel %vm2545, %v2511, -inf
      %v2750 = vrot.slane %v2749, 4
      %v2751 = vmax.f32 %v2749, %v2750
      %v2752 = vrot.slane %v2751, 2
      %v2753 = vmax.f32 %v2751, %v2752
      %v2754 = vrot.slane %v2753, 1
      %v2755 = vmax.f32 %v2753, %v2754
      %v2756 = vsel %vm2545, %v2510, -inf
      %v2757 = vrot.slane %v2756, 4
      %v2758 = vmax.f32 %v2756, %v2757
      %v2759 = vrot.slane %v2758, 2
      %v2760 = vmax.f32 %v2758, %v2759
      %v2761 = vrot.slane %v2760, 1
      %v2762 = vmax.f32 %v2760, %v2761
      %v2763 = vsel %vm2545, %v2512, -inf
      %v2764 = vrot.slane %v2763, 4
      %v2765 = vmax.f32 %v2763, %v2764
      %v2766 = vrot.slane %v2765, 2
      %v2767 = vmax.f32 %v2765, %v2766
      %v2768 = vrot.slane %v2767, 1
      %v2769 = vmax.f32 %v2767, %v2768
      %v2770 = vpack.c.bf16 %v2552, %v2552
      %v2771 = vpack.c.bf16 %v2559, %v2559
      %v2772 = vpack.c.bf16 %v2566, %v2566
      %v2773 = vpack.c.bf16 %v2573, %v2573
      %v2774 = vpack.c.bf16 %v2580, %v2580
      %v2775 = vpack.c.bf16 %v2587, %v2587
      %v2776 = vpack.c.bf16 %v2594, %v2594
      %v2777 = vpack.c.bf16 %v2601, %v2601
      %v2778 = vpack.c.bf16 %v2608, %v2608
      %v2779 = vpack.c.bf16 %v2615, %v2615
      %v2780 = vpack.c.bf16 %v2622, %v2622
      %v2781 = vpack.c.bf16 %v2629, %v2629
      %v2782 = vpack.c.bf16 %v2636, %v2636
      %v2783 = vpack.c.bf16 %v2643, %v2643
      %v2784 = vpack.c.bf16 %v2650, %v2650
      %v2785 = vpack.c.bf16 %v2657, %v2657
      %v2786 = vpack.c.bf16 %v2664, %v2664
      %v2787 = vpack.c.bf16 %v2671, %v2671
      %v2788 = vpack.c.bf16 %v2678, %v2678
      %v2789 = vpack.c.bf16 %v2685, %v2685
      %v2790 = vpack.c.bf16 %v2692, %v2692
      %v2791 = vpack.c.bf16 %v2699, %v2699
      %v2792 = vpack.c.bf16 %v2706, %v2706
      %v2793 = vpack.c.bf16 %v2713, %v2713
      %v2794 = vpack.c.bf16 %v2720, %v2720
      %v2795 = vpack.c.bf16 %v2727, %v2727
      %v2796 = vpack.c.bf16 %v2734, %v2734
      %v2797 = vpack.c.bf16 %v2741, %v2741
      %v2798 = vpack.c.bf16 %v2748, %v2748
      %v2799 = vpack.c.bf16 %v2755, %v2755
      %v2800 = vpack.c.bf16 %v2762, %v2762
      %v2801 = vpack.c.bf16 %v2769, %v2769
      %v2834 = vunpack.c.l.b16 %v2770
      %v2835 = vunpack.c.l.b16 %v2771
      %v2836 = vunpack.c.l.b16 %v2772
      %v2837 = vunpack.c.l.b16 %v2773
      %v2838 = vunpack.c.l.b16 %v2774
      %v2839 = vunpack.c.l.b16 %v2775
      %v2840 = vunpack.c.l.b16 %v2776
      %v2841 = vunpack.c.l.b16 %v2777
      %v2842 = vunpack.c.l.b16 %v2778
      %v2843 = vunpack.c.l.b16 %v2779
      %v2844 = vunpack.c.l.b16 %v2780
      %v2845 = vunpack.c.l.b16 %v2781
      %v2846 = vunpack.c.l.b16 %v2782
      %v2847 = vunpack.c.l.b16 %v2783
      %v2848 = vunpack.c.l.b16 %v2784
      %v2849 = vunpack.c.l.b16 %v2785
      %v2850 = vunpack.c.l.b16 %v2786
      %v2851 = vunpack.c.l.b16 %v2787
      %v2852 = vunpack.c.l.b16 %v2788
      %v2853 = vunpack.c.l.b16 %v2789
      %v2854 = vunpack.c.l.b16 %v2790
      %v2855 = vunpack.c.l.b16 %v2791
      %v2856 = vunpack.c.l.b16 %v2792
      %v2857 = vunpack.c.l.b16 %v2793
      %v2858 = vunpack.c.l.b16 %v2794
      %v2859 = vunpack.c.l.b16 %v2795
      %v2860 = vunpack.c.l.b16 %v2796
      %v2861 = vunpack.c.l.b16 %v2797
      %v2862 = vunpack.c.l.b16 %v2798
      %v2863 = vunpack.c.l.b16 %v2799
      %v2864 = vunpack.c.l.b16 %v2800
      %v2865 = vunpack.c.l.b16 %v2801
      %v2866 = vpack.c.b16 %v2834, %v2834
      %v2867 = vpack.c.b16 %v2835, %v2835
      %v2868 = vpack.c.b16 %v2836, %v2836
      %v2869 = vpack.c.b16 %v2837, %v2837
      %v2870 = vpack.c.b16 %v2838, %v2838
      %v2871 = vpack.c.b16 %v2839, %v2839
      %v2872 = vpack.c.b16 %v2840, %v2840
      %v2873 = vpack.c.b16 %v2841, %v2841
      %v2874 = vpack.c.b16 %v2842, %v2842
      %v2875 = vpack.c.b16 %v2843, %v2843
      %v2876 = vpack.c.b16 %v2844, %v2844
      %v2877 = vpack.c.b16 %v2845, %v2845
      %v2878 = vpack.c.b16 %v2846, %v2846
      %v2879 = vpack.c.b16 %v2847, %v2847
      %v2880 = vpack.c.b16 %v2848, %v2848
      %v2881 = vpack.c.b16 %v2849, %v2849
      %v2882 = vpack.c.b16 %v2850, %v2850
      %v2883 = vpack.c.b16 %v2851, %v2851
      %v2884 = vpack.c.b16 %v2852, %v2852
      %v2885 = vpack.c.b16 %v2853, %v2853
      %v2886 = vpack.c.b16 %v2854, %v2854
      %v2887 = vpack.c.b16 %v2855, %v2855
      %v2888 = vpack.c.b16 %v2856, %v2856
      %v2889 = vpack.c.b16 %v2857, %v2857
      %v2890 = vpack.c.b16 %v2858, %v2858
      %v2891 = vpack.c.b16 %v2859, %v2859
      %v2892 = vpack.c.b16 %v2860, %v2860
      %v2893 = vpack.c.b16 %v2861, %v2861
      %v2894 = vpack.c.b16 %v2862, %v2862
      %v2895 = vpack.c.b16 %v2863, %v2863
      %v2896 = vpack.c.b16 %v2864, %v2864
      %v2897 = vpack.c.b16 %v2865, %v2865
      %v2898 = vunpack.c.l.b16 %v2866
      %v2899 = vunpack.c.l.b16 %v2867
      %v2900 = vunpack.c.l.b16 %v2868
      %v2901 = vunpack.c.l.b16 %v2869
      %v2902 = vunpack.c.l.b16 %v2870
      %v2903 = vunpack.c.l.b16 %v2871
      %v2904 = vunpack.c.l.b16 %v2872
      %v2905 = vunpack.c.l.b16 %v2873
      %v2906 = vunpack.c.l.b16 %v2874
      %v2907 = vunpack.c.l.b16 %v2875
      %v2908 = vunpack.c.l.b16 %v2876
      %v2909 = vunpack.c.l.b16 %v2877
      %v2910 = vunpack.c.l.b16 %v2878
      %v2911 = vunpack.c.l.b16 %v2879
      %v2912 = vunpack.c.l.b16 %v2880
      %v2913 = vunpack.c.l.b16 %v2881
      %v2914 = vunpack.c.l.b16 %v2882
      %v2915 = vunpack.c.l.b16 %v2883
      %v2916 = vunpack.c.l.b16 %v2884
      %v2917 = vunpack.c.l.b16 %v2885
      %v2918 = vunpack.c.l.b16 %v2886
      %v2919 = vunpack.c.l.b16 %v2887
      %v2920 = vunpack.c.l.b16 %v2888
      %v2921 = vunpack.c.l.b16 %v2889
      %v2922 = vunpack.c.l.b16 %v2890
      %v2923 = vunpack.c.l.b16 %v2891
      %v2924 = vunpack.c.l.b16 %v2892
      %v2925 = vunpack.c.l.b16 %v2893
      %v2926 = vunpack.c.l.b16 %v2894
      %v2927 = vunpack.c.l.b16 %v2895
      %v2928 = vunpack.c.l.b16 %v2896
      %v2929 = vunpack.c.l.b16 %v2897
      %vm2930 = vcmask 1041409
      %v2931 = vsel %vm2930, %v2899, %v2898
      %vm2932 = vcmask 1042434
      %v2933 = vsel %vm2932, %v2900, %v2931
      %vm2934 = vcmask 1043459
      %v2935 = vsel %vm2934, %v2901, %v2933
      %vm2936 = vcmask 1044484
      %v2937 = vsel %vm2936, %v2902, %v2935
      %vm2938 = vcmask 1045509
      %v2939 = vsel %vm2938, %v2903, %v2937
      %vm2940 = vcmask 1046534
      %v2941 = vsel %vm2940, %v2904, %v2939
      %vm2942 = vcmask 1047559
      %v2943 = vsel %vm2942, %v2905, %v2941
      %v2944 = vsel %vm2930, %v2907, %v2906
      %v2945 = vsel %vm2932, %v2908, %v2944
      %v2946 = vsel %vm2934, %v2909, %v2945
      %v2947 = vsel %vm2936, %v2910, %v2946
      %v2948 = vsel %vm2938, %v2911, %v2947
      %v2949 = vsel %vm2940, %v2912, %v2948
      %v2950 = vsel %vm2942, %v2913, %v2949
      %v2951 = vsel %vm2930, %v2915, %v2914
      %v2952 = vsel %vm2932, %v2916, %v2951
      %v2953 = vsel %vm2934, %v2917, %v2952
      %v2954 = vsel %vm2936, %v2918, %v2953
      %v2955 = vsel %vm2938, %v2919, %v2954
      %v2956 = vsel %vm2940, %v2920, %v2955
      %v2957 = vsel %vm2942, %v2921, %v2956
      %v2958 = vsel %vm2930, %v2923, %v2922
      %v2959 = vsel %vm2932, %v2924, %v2958
      %v2960 = vsel %vm2934, %v2925, %v2959
      %v2961 = vsel %vm2936, %v2926, %v2960
      %v2962 = vsel %vm2938, %v2927, %v2961
      %v2963 = vsel %vm2940, %v2928, %v2962
      %v2964 = vsel %vm2942, %v2929, %v2963
      %v2965 = vpack.c.b16 %v2943, %v2943
      %v2966 = vpack.c.b16 %v2950, %v2950
      %v2967 = vpack.c.b16 %v2957, %v2957
      %v2968 = vpack.c.b16 %v2964, %v2964
      %vm2973 = vcmask 519168
      %2974 = vst.msk [vmem:[%s192] sm:$0xf] %vm2973, %v2965
      %2975 = vst.msk [vmem:[%s192 + $0x4] sm:$0xf] %vm2973, %v2966
      %2976 = vst.msk [vmem:[%s192 + $0x8] sm:$0xf] %vm2973, %v2967
      %2977 = vst.msk [vmem:[%s192 + $0xc] sm:$0xf] %vm2973, %v2968
      %s2978 = smul.u32 4, %s19
      %p2979 = scmp.lt.s32.totalorder %s18, 1
      %s2980 = scalar_select %p2979, %s18, 1
      %p2981 = scmp.lt.s32.totalorder %s2978, 7
      %s2982 = scalar_select %p2981, %s2978, 7
      %s2983 = smul.addr %s2980, 8
      %s2984 = sadd.s32 %s2982, %s2983
      %s2985 = smul.addr %s2984, 4
      %s2986 = scalar_lea.vmem %s3, %s2985
      // Predicated region
      $region33: #{vgg16_forward.5} parent=31 // pred_check
        %p2987 = pneg %p114
      $region34: #{vgg16_forward.5} parent=31 // pred_check_branch
        %2989 = sbr.rel (%p2987) target = $region36
      $region35: #{vgg16_forward.5} parent=31 // pred_region
        %s2990 = smul.u32 4, %s19
      $region36: #{vgg16_forward.5} parent=31 // pred_fallthru
        _
    $region32: #{vgg16_forward.5} parent=5 // pred_fallthru
      _
    %p2991 = scmp.le.s32.totalorder 2, %s9
    // Predicated region
    $region37: #{vgg16_forward.5} parent=5 // pred_check
      %p2992 = pneg %p2991
    $region38: #{vgg16_forward.5} parent=5 // pred_check_branch
      %2994 = sbr.rel (%p2992) target = $region40
    $region39: #{vgg16_forward.5} parent=5 // pred_region
      %s2995 = ssub.s32 %s9, 2
      // Predicated region
      $region41: #{vgg16_forward.5} parent=39 // pred_check
        %p2996 = pneg %p120
      $region42: #{vgg16_forward.5} parent=39 // pred_check_branch
        %2998 = sbr.rel (%p2996) target = $region44
      $region43: #{vgg16_forward.5} parent=39 // pred_region
        %s2999 = smul.u32 4, %s21
        %p3000 = scmp.lt.s32.totalorder %s20, 1
        %s3001 = scalar_select %p3000, %s20, 1
        %p3002 = scmp.lt.s32.totalorder %s2999, 7
        %s3003 = scalar_select %p3002, %s2999, 7
        %s3004 = smul.addr %s3001, 8
        %s3005 = sadd.s32 %s3003, %s3004
        %s3006 = smul.addr %s3005, 4
        %s3007 = scalar_lea.vmem %s3, %s3006
      $region44: #{vgg16_forward.5} parent=39 // pred_fallthru
        _
    $region40: #{vgg16_forward.5} parent=5 // pred_fallthru
      _
  $region6: #{vgg16_forward.5} parent=0 // loop_footer
    %s13 = sadd.s32 1, %s9
  $region7: #{vgg16_forward.5} parent=0 // loop_footer_branch
    %8 = sbr.rel target = $region3
  $region8: #{vgg16_forward.5} parent=0 // loop_exit
    _

</llo_original>
